<compile_context>
chip_gen: v7x
topology: tpu7x:2x2x1
jax: 0.10.0
libtpu: 0.0.40
codegen_flags: <defaults>
</compile_context>

<pallas_src>
import jax
import jax.numpy as jnp
from jax.experimental import pallas as pl
from jax.experimental.pallas import tpu as pltpu

# ----------------------------- model sizes --------------------------------
B, S, H = 2, 8, 32          # batch, max_sequence_length, hidden_size
BS = B * S
NH, DH = 4, 8               # attention heads, head dim (NH * DH == H)
I = 64                      # FFN intermediate size
NCLASSES = 5                # params.n_classes
NCOL = 128                  # lane-padded width for output / vector slab
VOCAB = 50                  # synthetic vocab
NLAYERS = 2                 # synthetic encoder depth
LN_EPS = 1e-12

# -------------------- vector-slab row layout (biases / LN) -----------------
ROW_EMB_G, ROW_EMB_B = 0, 1
ROW_LAYER0 = 2
(R_BQKV, R_BO, R_LN1G, R_LN1B, R_BI, R_BO2, R_LN2G, R_LN2B) = range(8)
ROWS_PER_LAYER = 8
ROW_HEAD = ROW_LAYER0 + NLAYERS * ROWS_PER_LAYER
(R_BATT, R_UATT, R_B1, R_B2) = range(4)
N_ROWS = ROW_HEAD + 4


# ----------------------------- kernel helpers ------------------------------
def _layernorm(x, g, b, eps=LN_EPS):
    mu = jnp.mean(x, axis=-1, keepdims=True)
    var = jnp.mean((x - mu) ** 2, axis=-1, keepdims=True)
    return (x - mu) * jax.lax.rsqrt(var + eps) * g + b


def _gelu(x):
    # TODO(synk): tanh-approximate GELU; BERT uses erf-GELU (numerically close).
    c = 0.7978845608028654  # sqrt(2/pi)
    return 0.5 * x * (1.0 + jnp.tanh(c * (x + 0.044715 * x * x * x)))


def _split_heads(x):
    # (BS, H) -> (NH*B, S, DH), head-major batch order.
    # Lane slices + leading-dim concat only (no transposes).
    parts = [x[:, h * DH:(h + 1) * DH].reshape(B, S, DH) for h in range(NH)]
    return jnp.concatenate(parts, axis=0)


def _merge_heads(x):
    # (NH*B, S, DH) -> (BS, H): leading slices + lane concat.
    parts = [x[h * B:(h + 1) * B].reshape(BS, DH) for h in range(NH)]
    return jnp.concatenate(parts, axis=-1)


# ------------------------- fused forward kernel ----------------------------
def bert_fused_kernel(x_ref, mask_ref, wqkv_ref, wo_ref, wi_ref, wo2_ref,
                      whead_ref, vec_ref, prob_ref):
    wqkv = wqkv_ref[...]     # (L, H, 3H)       bf16
    wo = wo_ref[...]         # (L, H, H)        bf16
    wi = wi_ref[...]         # (L, H, I)        bf16
    wo2 = wo2_ref[...]       # (L, I, H)        bf16
    whead = whead_ref[...]   # (H, 128 + 2H)    bf16  [w2_pad | w_att | w1]
    vec = vec_ref[...]       # (N_ROWS, 128)    f32   biases / LN params

    def vrow(r, w=H):
        return vec[r:r + 1, :w]                      # (1, w) static slice

    # ---- embedding LayerNorm (fused)
    x2 = _layernorm(x_ref[...], vrow(ROW_EMB_G), vrow(ROW_EMB_B))   # (BS, H)

    # ---- additive key mask, broadcast once, head-major (NH*B, S, S)
    mask3 = jnp.broadcast_to(mask_ref[...].reshape(B, 1, S), (B, S, S))
    mask_full = jnp.concatenate([mask3] * NH, axis=0)               # (NH*B,S,S)

    scale = 1.0 / (DH ** 0.5)

    # ---- encoder layers (static unroll; weights stacked over NLAYERS)
    for l in range(NLAYERS):
        base = ROW_LAYER0 + l * ROWS_PER_LAYER
        x2b = x2.astype(jnp.bfloat16)

        # Fused QKV projection: one bf16 dot per layer, f32 accumulate.
        qkv = (jnp.dot(x2b, wqkv[l], preferred_element_type=jnp.float32)
               + vrow(base + R_BQKV, 3 * H))                        # (BS, 3H)
        q = _split_heads(qkv[:, :H] * scale).astype(jnp.bfloat16)
        k = _split_heads(qkv[:, H:2 * H]).astype(jnp.bfloat16)
        v = _split_heads(qkv[:, 2 * H:3 * H]).astype(jnp.bfloat16)

        # One batched score/softmax/context pass over all B*NH heads.
        s = jnp.einsum('bqd,bkd->bqk', q, k,
                       preferred_element_type=jnp.float32) + mask_full
        s = s - jnp.max(s, axis=-1, keepdims=True)
        p = jnp.exp(s)
        p = p * (1.0 / jnp.sum(p, axis=-1, keepdims=True))
        ctx = jnp.einsum('bqk,bkd->bqd', p.astype(jnp.bfloat16), v,
                         preferred_element_type=jnp.float32)        # (NH*B,S,DH)

        # Collapsed output projection: lane-concat heads, one (H,H) dot.
        attn = (jnp.dot(_merge_heads(ctx).astype(jnp.bfloat16), wo[l],
                        preferred_element_type=jnp.float32)
                + vrow(base + R_BO))
        x1 = _layernorm(x2 + attn, vrow(base + R_LN1G), vrow(base + R_LN1B))

        # FFN
        x1b = x1.astype(jnp.bfloat16)
        hdn = _gelu(jnp.dot(x1b, wi[l], preferred_element_type=jnp.float32)
                    + vrow(base + R_BI, I))
        ffn = (jnp.dot(hdn.astype(jnp.bfloat16), wo2[l],
                       preferred_element_type=jnp.float32)
               + vrow(base + R_BO2))
        x2 = _layernorm(x1 + ffn, vrow(base + R_LN2G), vrow(base + R_LN2B))

    # ---- HAN attention pooling (lane-dense scores over S) + classifier.
    # TODO(synk): reference HanAttention receives no attention mask, so padded
    # positions intentionally participate in the pooling softmax.
    emb3 = x2.reshape(B, S, H)
    x2b = x2.astype(jnp.bfloat16)
    w2p = whead[:, :NCOL]                  # (H, 128)  zero-padded past NCLASSES
    w_att = whead[:, NCOL:NCOL + H]        # (H, H)
    w1 = whead[:, NCOL + H:NCOL + 2 * H]   # (H, H)

    u = jnp.tanh(jnp.dot(x2b, w_att, preferred_element_type=jnp.float32)
                 + vrow(ROW_HEAD + R_BATT))                          # (BS, H)
    scores = jnp.sum(u.reshape(B, S, H)
                     * vrow(ROW_HEAD + R_UATT).reshape(1, 1, H), axis=-1)  # (B,S)
    scores = scores - jnp.max(scores, axis=-1, keepdims=True)
    e = jnp.exp(scores)
    alpha = e * (1.0 / jnp.sum(e, axis=-1, keepdims=True))           # (B, S)
    att = jnp.einsum('bqs,bsh->bqh',
                     alpha.reshape(B, 1, S).astype(jnp.bfloat16),
                     emb3.astype(jnp.bfloat16),
                     preferred_element_type=jnp.float32).reshape(B, H)

    h1 = jnp.maximum(
        jnp.dot(att.astype(jnp.bfloat16), w1,
                preferred_element_type=jnp.float32) + vrow(ROW_HEAD + R_B1),
        0.0)
    prob_ref[...] = (jnp.dot(h1.astype(jnp.bfloat16), w2p,
                             preferred_element_type=jnp.float32)
                     + vrow(ROW_HEAD + R_B2, NCOL))                  # (B, 128)


# ------------------------------ pallas wrapper ------------------------------
def _spec(shape):
    nd = len(shape)
    return pl.BlockSpec(shape, lambda i, _nd=nd: (0,) * _nd)


def bert_text_model_forward(packed, speechs, input_ids, attention_mask):
    del speechs  # present but unused by the reference forward pass

    # Embedding gather + sum in plain JAX (data-dependent gather); LN in-kernel.
    # TODO(synk): could be folded into the kernel via scalar-prefetched ids.
    we = packed['word_emb'][input_ids]                   # (B, S, H)
    pe = packed['pos_emb'][None, :, :]                   # (1, S, H)
    te = packed['type_emb'][0][None, None, :]            # (1, 1, H)  (type-id 0)
    x = (we + pe + te).reshape(BS, H).astype(jnp.float32)
    mask_bias = (1.0 - attention_mask.astype(jnp.float32)) * (-1e9)  # (B, S)

    args = (x, mask_bias, packed['wqkv'], packed['wo'], packed['wi'],
            packed['wo2'], packed['whead'], packed['vecs'])

    prob_pad = pl.pallas_call(
        bert_fused_kernel,
        out_shape=jax.ShapeDtypeStruct((B, NCOL), jnp.float32),
        grid=(1,),
        in_specs=[_spec(a.shape) for a in args],
        out_specs=_spec((B, NCOL)),
        compiler_params=pltpu.CompilerParams(
            dimension_semantics=("arbitrary",)),
    )(*args)
    return prob_pad[:, :NCLASSES]


# ------------------------------ parameter init -----------------------------
def init_params(key):
    keys = iter(jax.random.split(key, 64))

    def w(shape):
        return jax.random.normal(next(keys), shape, jnp.float32) * 0.02

    layers = []
    for _ in range(NLAYERS):
        layers.append({
            'wq': w((H, H)), 'wk': w((H, H)), 'wv': w((H, H)), 'wo': w((H, H)),
            'bq': jnp.zeros((H,)), 'bk': jnp.zeros((H,)), 'bv': jnp.zeros((H,)),
            'bo': jnp.zeros((H,)),
            'ln1_g': jnp.ones((H,)), 'ln1_b': jnp.zeros((H,)),
            'wi': w((H, I)), 'bi': jnp.zeros((I,)),
            'wo2': w((I, H)), 'bo2': jnp.zeros((H,)),
            'ln2_g': jnp.ones((H,)), 'ln2_b': jnp.zeros((H,)),
        })
    return {
        'word_emb': w((VOCAB, H)), 'pos_emb': w((S, H)), 'type_emb': w((2, H)),
        'emb_ln_g': jnp.ones((H,)), 'emb_ln_b': jnp.zeros((H,)),
        'layers': layers,
        'head': {
            # TODO(synk): HanAttention source not given; standard HAN form assumed.
            'w_att': w((H, H)), 'b_att': jnp.zeros((H,)), 'u_att': w((H,)),
            'w1': w((H, H)), 'b1': jnp.zeros((H,)),
            'w2': w((H, NCLASSES)), 'b2': jnp.zeros((NCLASSES,)),
        },
    }


def pack_params(p):
    """Pack params into a few lane-dense kernel slabs (bf16 weights, f32 vecs)."""
    def row(v):
        v = jnp.asarray(v, jnp.float32).reshape(-1)
        return jnp.pad(v, (0, NCOL - v.shape[0]))

    rows = [row(p['emb_ln_g']), row(p['emb_ln_b'])]
    wqkv, wo, wi, wo2 = [], [], [], []
    for l in range(NLAYERS):
        e = p['layers'][l]
        wqkv.append(jnp.concatenate([e['wq'], e['wk'], e['wv']], axis=1))
        wo.append(e['wo']); wi.append(e['wi']); wo2.append(e['wo2'])
        rows += [row(jnp.concatenate([e['bq'], e['bk'], e['bv']])),
                 row(e['bo']), row(e['ln1_g']), row(e['ln1_b']),
                 row(e['bi']), row(e['bo2']), row(e['ln2_g']), row(e['ln2_b'])]
    h = p['head']
    rows += [row(h['b_att']), row(h['u_att']), row(h['b1']), row(h['b2'])]

    w2_pad = jnp.pad(h['w2'], ((0, 0), (0, NCOL - NCLASSES)))        # (H, 128)
    whead = jnp.concatenate([w2_pad, h['w_att'], h['w1']], axis=1)   # (H, 192)

    vecs = jnp.stack(rows)                                           # (22, 128)
    assert vecs.shape == (N_ROWS, NCOL)
    return {
        'word_emb': p['word_emb'], 'pos_emb': p['pos_emb'],
        'type_emb': p['type_emb'],
        'wqkv': jnp.stack(wqkv).astype(jnp.bfloat16),    # (L, H, 3H)
        'wo': jnp.stack(wo).astype(jnp.bfloat16),        # (L, H, H)
        'wi': jnp.stack(wi).astype(jnp.bfloat16),        # (L, H, I)
        'wo2': jnp.stack(wo2).astype(jnp.bfloat16),      # (L, I, H)
        'whead': whead.astype(jnp.bfloat16),             # (H, 192)
        'vecs': vecs,                                    # (22, 128) f32
    }


# ----------------------------------- main -----------------------------------
if __name__ == "__main__":
    root = jax.random.PRNGKey(0)
    pkey, dkey = jax.random.split(root)
    params = init_params(pkey)
    packed = pack_params(params)

    input_ids = jax.random.randint(dkey, (B, S), 0, VOCAB, dtype=jnp.int32)
    attention_mask = jnp.ones((B, S), jnp.int32).at[1, S - 2:].set(0)  # pad last 2
    speechs = jnp.zeros((B, 16), jnp.float32)  # present but unused (as in reference)

    prob = bert_text_model_forward(packed, speechs, input_ids, attention_mask)
    prob = jax.block_until_ready(prob)
    assert prob.shape == (B, NCLASSES) and prob.dtype == jnp.float32
    assert bool(jnp.all(jnp.isfinite(prob)))
    print("KERNEL_OK")
</pallas_src>

<mosaic_0001>
module attributes {stable_mosaic.version = 11 : i64} {
  func.func @bert_fused_kernel(%arg0: i32, %arg1: memref<16x32xf32, #tpu.memory_space<vmem>>, %arg2: memref<2x8xf32, #tpu.memory_space<vmem>>, %arg3: memref<2x32x96xbf16, #tpu.memory_space<vmem>>, %arg4: memref<2x32x32xbf16, #tpu.memory_space<vmem>>, %arg5: memref<2x32x64xbf16, #tpu.memory_space<vmem>>, %arg6: memref<2x64x32xbf16, #tpu.memory_space<vmem>>, %arg7: memref<32x192xbf16, #tpu.memory_space<vmem>>, %arg8: memref<22x128xf32, #tpu.memory_space<vmem>>, %arg9: memref<2x128xf32, #tpu.memory_space<vmem>>) attributes {dimension_semantics = [#tpu.dimension_semantics<arbitrary>], iteration_bounds = array<i64: 1>, scalar_prefetch = 0 : i64, scratch_operands = 0 : i64, tpu.core_type = #tpu.core_type<tc>, window_params = [{pipeline_mode = #tpu.pipeline_mode<synchronous>, transform_indices = @transform_0, window_bounds = array<i64: 16, 32>}, {pipeline_mode = #tpu.pipeline_mode<synchronous>, transform_indices = @transform_1, window_bounds = array<i64: 2, 8>}, {pipeline_mode = #tpu.pipeline_mode<synchronous>, transform_indices = @transform_2, window_bounds = array<i64: 2, 32, 96>}, {pipeline_mode = #tpu.pipeline_mode<synchronous>, transform_indices = @transform_3, window_bounds = array<i64: 2, 32, 32>}, {pipeline_mode = #tpu.pipeline_mode<synchronous>, transform_indices = @transform_4, window_bounds = array<i64: 2, 32, 64>}, {pipeline_mode = #tpu.pipeline_mode<synchronous>, transform_indices = @transform_5, window_bounds = array<i64: 2, 64, 32>}, {pipeline_mode = #tpu.pipeline_mode<synchronous>, transform_indices = @transform_6, window_bounds = array<i64: 32, 192>}, {pipeline_mode = #tpu.pipeline_mode<synchronous>, transform_indices = @transform_7, window_bounds = array<i64: 22, 128>}, {pipeline_mode = #tpu.pipeline_mode<synchronous>, transform_indices = @transform_8, window_bounds = array<i64: 2, 128>}]} {
    %c0 = arith.constant 0 : index
    %c0_0 = arith.constant 0 : index
    %c0_1 = arith.constant 0 : index
    %0 = vector.load %arg3[%c0, %c0_0, %c0_1] : memref<2x32x96xbf16, #tpu.memory_space<vmem>>, vector<2x32x96xbf16>
    %c0_2 = arith.constant 0 : index
    %c0_3 = arith.constant 0 : index
    %c0_4 = arith.constant 0 : index
    %1 = vector.load %arg4[%c0_2, %c0_3, %c0_4] : memref<2x32x32xbf16, #tpu.memory_space<vmem>>, vector<2x32x32xbf16>
    %c0_5 = arith.constant 0 : index
    %c0_6 = arith.constant 0 : index
    %c0_7 = arith.constant 0 : index
    %2 = vector.load %arg5[%c0_5, %c0_6, %c0_7] : memref<2x32x64xbf16, #tpu.memory_space<vmem>>, vector<2x32x64xbf16>
    %c0_8 = arith.constant 0 : index
    %c0_9 = arith.constant 0 : index
    %c0_10 = arith.constant 0 : index
    %3 = vector.load %arg6[%c0_8, %c0_9, %c0_10] : memref<2x64x32xbf16, #tpu.memory_space<vmem>>, vector<2x64x32xbf16>
    %c0_11 = arith.constant 0 : index
    %c0_12 = arith.constant 0 : index
    %4 = vector.load %arg7[%c0_11, %c0_12] : memref<32x192xbf16, #tpu.memory_space<vmem>>, vector<32x192xbf16>
    %c0_13 = arith.constant 0 : index
    %c0_14 = arith.constant 0 : index
    %5 = vector.load %arg8[%c0_13, %c0_14] : memref<22x128xf32, #tpu.memory_space<vmem>>, vector<22x128xf32>
    %c0_15 = arith.constant 0 : index
    %c0_16 = arith.constant 0 : index
    %6 = vector.load %arg1[%c0_15, %c0_16] : memref<16x32xf32, #tpu.memory_space<vmem>>, vector<16x32xf32>
    %7 = vector.extract_strided_slice %5 {offsets = [0, 0], sizes = [1, 32], strides = [1, 1]} : vector<22x128xf32> to vector<1x32xf32>
    %8 = vector.extract_strided_slice %5 {offsets = [1, 0], sizes = [1, 32], strides = [1, 1]} : vector<22x128xf32> to vector<1x32xf32>
    %cst = arith.constant dense<0.000000e+00> : vector<16xf32>
    %9 = vector.multi_reduction <add>, %6, %cst [1] : vector<16x32xf32> to vector<16xf32>
    %10 = vector.shape_cast %9 : vector<16xf32> to vector<16x1xf32>
    %cst_17 = arith.constant 3.200000e+01 : f32
    %11 = vector.broadcast %cst_17 : f32 to vector<16x1xf32>
    %12 = arith.divf %10, %11 : vector<16x1xf32>
    %13 = vector.broadcast %12 : vector<16x1xf32> to vector<16x32xf32>
    %14 = arith.subf %6, %13 : vector<16x32xf32>
    %15 = arith.mulf %14, %14 : vector<16x32xf32>
    %cst_18 = arith.constant dense<0.000000e+00> : vector<16xf32>
    %16 = vector.multi_reduction <add>, %15, %cst_18 [1] : vector<16x32xf32> to vector<16xf32>
    %17 = vector.shape_cast %16 : vector<16xf32> to vector<16x1xf32>
    %cst_19 = arith.constant 3.200000e+01 : f32
    %18 = vector.broadcast %cst_19 : f32 to vector<16x1xf32>
    %19 = arith.divf %17, %18 : vector<16x1xf32>
    %20 = vector.broadcast %12 : vector<16x1xf32> to vector<16x32xf32>
    %21 = arith.subf %6, %20 : vector<16x32xf32>
    %cst_20 = arith.constant 9.99999996E-13 : f32
    %22 = vector.broadcast %cst_20 : f32 to vector<16x1xf32>
    %23 = arith.addf %19, %22 : vector<16x1xf32>
    %24 = math.rsqrt %23 : vector<16x1xf32>
    %25 = vector.broadcast %24 : vector<16x1xf32> to vector<16x32xf32>
    %26 = arith.mulf %21, %25 : vector<16x32xf32>
    %27 = vector.broadcast %7 : vector<1x32xf32> to vector<16x32xf32>
    %28 = arith.mulf %26, %27 : vector<16x32xf32>
    %29 = vector.broadcast %8 : vector<1x32xf32> to vector<16x32xf32>
    %30 = arith.addf %28, %29 : vector<16x32xf32>
    %c0_21 = arith.constant 0 : index
    %c0_22 = arith.constant 0 : index
    %31 = vector.load %arg2[%c0_21, %c0_22] : memref<2x8xf32, #tpu.memory_space<vmem>>, vector<2x8xf32>
    %32 = vector.shape_cast %31 : vector<2x8xf32> to vector<2x1x8xf32>
    %33 = vector.shape_cast %32 : vector<2x1x8xf32> to vector<2x1x8xf32>
    %34 = vector.broadcast %33 : vector<2x1x8xf32> to vector<2x8x8xf32>
    %35 = tpu.concatenate %34, %34, %34, %34 in 0 : vector<2x8x8xf32>, vector<2x8x8xf32>, vector<2x8x8xf32>, vector<2x8x8xf32> -> vector<8x8x8xf32>
    %36 = arith.truncf %30 : vector<16x32xf32> to vector<16x32xbf16>
    %37 = vector.extract_strided_slice %0 {offsets = [0, 0, 0], sizes = [1, 32, 96], strides = [1, 1, 1]} : vector<2x32x96xbf16> to vector<1x32x96xbf16>
    %38 = vector.shape_cast %37 : vector<1x32x96xbf16> to vector<32x96xbf16>
    %cst_23 = arith.constant dense<0.000000e+00> : vector<16x96xf32>
    %39 = tpu.matmul %36, %38, %cst_23 {dimension_numbers = #tpu.dot_dimension_numbers<[1], [0], [0], [1], [0, 0, 1, 1], [], []>} : vector<16x32xbf16>, vector<32x96xbf16>, vector<16x96xf32> -> vector<16x96xf32>
    %40 = vector.extract_strided_slice %5 {offsets = [2, 0], sizes = [1, 96], strides = [1, 1]} : vector<22x128xf32> to vector<1x96xf32>
    %41 = vector.broadcast %40 : vector<1x96xf32> to vector<16x96xf32>
    %42 = arith.addf %39, %41 : vector<16x96xf32>
    %43 = vector.extract_strided_slice %42 {offsets = [0, 0], sizes = [16, 32], strides = [1, 1]} : vector<16x96xf32> to vector<16x32xf32>
    %cst_24 = arith.constant 0.353553385 : f32
    %44 = vector.broadcast %cst_24 : f32 to vector<16x32xf32>
    %45 = arith.mulf %43, %44 : vector<16x32xf32>
    %46 = vector.extract_strided_slice %45 {offsets = [0, 0], sizes = [16, 8], strides = [1, 1]} : vector<16x32xf32> to vector<16x8xf32>
    %47 = vector.shape_cast %46 : vector<16x8xf32> to vector<2x8x8xf32>
    %48 = vector.extract_strided_slice %45 {offsets = [0, 8], sizes = [16, 8], strides = [1, 1]} : vector<16x32xf32> to vector<16x8xf32>
    %49 = vector.shape_cast %48 : vector<16x8xf32> to vector<2x8x8xf32>
    %50 = vector.extract_strided_slice %45 {offsets = [0, 16], sizes = [16, 8], strides = [1, 1]} : vector<16x32xf32> to vector<16x8xf32>
    %51 = vector.shape_cast %50 : vector<16x8xf32> to vector<2x8x8xf32>
    %52 = vector.extract_strided_slice %45 {offsets = [0, 24], sizes = [16, 8], strides = [1, 1]} : vector<16x32xf32> to vector<16x8xf32>
    %53 = vector.shape_cast %52 : vector<16x8xf32> to vector<2x8x8xf32>
    %54 = tpu.concatenate %47, %49, %51, %53 in 0 : vector<2x8x8xf32>, vector<2x8x8xf32>, vector<2x8x8xf32>, vector<2x8x8xf32> -> vector<8x8x8xf32>
    %55 = arith.truncf %54 : vector<8x8x8xf32> to vector<8x8x8xbf16>
    %56 = vector.extract_strided_slice %42 {offsets = [0, 32], sizes = [16, 32], strides = [1, 1]} : vector<16x96xf32> to vector<16x32xf32>
    %57 = vector.extract_strided_slice %56 {offsets = [0, 0], sizes = [16, 8], strides = [1, 1]} : vector<16x32xf32> to vector<16x8xf32>
    %58 = vector.shape_cast %57 : vector<16x8xf32> to vector<2x8x8xf32>
    %59 = vector.extract_strided_slice %56 {offsets = [0, 8], sizes = [16, 8], strides = [1, 1]} : vector<16x32xf32> to vector<16x8xf32>
    %60 = vector.shape_cast %59 : vector<16x8xf32> to vector<2x8x8xf32>
    %61 = vector.extract_strided_slice %56 {offsets = [0, 16], sizes = [16, 8], strides = [1, 1]} : vector<16x32xf32> to vector<16x8xf32>
    %62 = vector.shape_cast %61 : vector<16x8xf32> to vector<2x8x8xf32>
    %63 = vector.extract_strided_slice %56 {offsets = [0, 24], sizes = [16, 8], strides = [1, 1]} : vector<16x32xf32> to vector<16x8xf32>
    %64 = vector.shape_cast %63 : vector<16x8xf32> to vector<2x8x8xf32>
    %65 = tpu.concatenate %58, %60, %62, %64 in 0 : vector<2x8x8xf32>, vector<2x8x8xf32>, vector<2x8x8xf32>, vector<2x8x8xf32> -> vector<8x8x8xf32>
    %66 = arith.truncf %65 : vector<8x8x8xf32> to vector<8x8x8xbf16>
    %67 = vector.extract_strided_slice %42 {offsets = [0, 64], sizes = [16, 32], strides = [1, 1]} : vector<16x96xf32> to vector<16x32xf32>
    %68 = vector.extract_strided_slice %67 {offsets = [0, 0], sizes = [16, 8], strides = [1, 1]} : vector<16x32xf32> to vector<16x8xf32>
    %69 = vector.shape_cast %68 : vector<16x8xf32> to vector<2x8x8xf32>
    %70 = vector.extract_strided_slice %67 {offsets = [0, 8], sizes = [16, 8], strides = [1, 1]} : vector<16x32xf32> to vector<16x8xf32>
    %71 = vector.shape_cast %70 : vector<16x8xf32> to vector<2x8x8xf32>
    %72 = vector.extract_strided_slice %67 {offsets = [0, 16], sizes = [16, 8], strides = [1, 1]} : vector<16x32xf32> to vector<16x8xf32>
    %73 = vector.shape_cast %72 : vector<16x8xf32> to vector<2x8x8xf32>
    %74 = vector.extract_strided_slice %67 {offsets = [0, 24], sizes = [16, 8], strides = [1, 1]} : vector<16x32xf32> to vector<16x8xf32>
    %75 = vector.shape_cast %74 : vector<16x8xf32> to vector<2x8x8xf32>
    %76 = tpu.concatenate %69, %71, %73, %75 in 0 : vector<2x8x8xf32>, vector<2x8x8xf32>, vector<2x8x8xf32>, vector<2x8x8xf32> -> vector<8x8x8xf32>
    %77 = arith.truncf %76 : vector<8x8x8xf32> to vector<8x8x8xbf16>
    "tpu.trace_start"() <{level = 10 : i32, message = "bqd,bkd->bqk"}> : () -> ()
    %cst_25 = arith.constant dense<0.000000e+00> : vector<8x8x8xf32>
    %78 = tpu.matmul %55, %66, %cst_25 {dimension_numbers = #tpu.dot_dimension_numbers<[2], [2], [1], [1], [0, 0, 0, 1, 1, 1], [0], [0]>} : vector<8x8x8xbf16>, vector<8x8x8xbf16>, vector<8x8x8xf32> -> vector<8x8x8xf32>
    "tpu.trace_stop"() : () -> ()
    %79 = arith.addf %78, %35 : vector<8x8x8xf32>
    %cst_26 = arith.constant dense<0xFF800000> : vector<8x8xf32>
    %80 = vector.multi_reduction <maximumf>, %79, %cst_26 [2] : vector<8x8x8xf32> to vector<8x8xf32>
    %81 = vector.shape_cast %80 : vector<8x8xf32> to vector<8x8x1xf32>
    %82 = vector.broadcast %81 : vector<8x8x1xf32> to vector<8x8x8xf32>
    %83 = arith.subf %79, %82 : vector<8x8x8xf32>
    %84 = math.exp %83 : vector<8x8x8xf32>
    %cst_27 = arith.constant dense<0.000000e+00> : vector<8x8xf32>
    %85 = vector.multi_reduction <add>, %84, %cst_27 [2] : vector<8x8x8xf32> to vector<8x8xf32>
    %86 = vector.shape_cast %85 : vector<8x8xf32> to vector<8x8x1xf32>
    %cst_28 = arith.constant 1.000000e+00 : f32
    %87 = vector.broadcast %cst_28 : f32 to vector<8x8x1xf32>
    %88 = arith.divf %87, %86 : vector<8x8x1xf32>
    %89 = vector.broadcast %88 : vector<8x8x1xf32> to vector<8x8x8xf32>
    %90 = arith.mulf %84, %89 : vector<8x8x8xf32>
    %91 = arith.truncf %90 : vector<8x8x8xf32> to vector<8x8x8xbf16>
    "tpu.trace_start"() <{level = 10 : i32, message = "bqk,bkd->bqd"}> : () -> ()
    %cst_29 = arith.constant dense<0.000000e+00> : vector<8x8x8xf32>
    %92 = tpu.matmul %91, %77, %cst_29 {dimension_numbers = #tpu.dot_dimension_numbers<[2], [1], [1], [2], [0, 0, 0, 1, 1, 2], [0], [0]>} : vector<8x8x8xbf16>, vector<8x8x8xbf16>, vector<8x8x8xf32> -> vector<8x8x8xf32>
    "tpu.trace_stop"() : () -> ()
    %93 = vector.extract_strided_slice %92 {offsets = [0, 0, 0], sizes = [2, 8, 8], strides = [1, 1, 1]} : vector<8x8x8xf32> to vector<2x8x8xf32>
    %94 = vector.shape_cast %93 : vector<2x8x8xf32> to vector<16x8xf32>
    %95 = vector.extract_strided_slice %92 {offsets = [2, 0, 0], sizes = [2, 8, 8], strides = [1, 1, 1]} : vector<8x8x8xf32> to vector<2x8x8xf32>
    %96 = vector.shape_cast %95 : vector<2x8x8xf32> to vector<16x8xf32>
    %97 = vector.extract_strided_slice %92 {offsets = [4, 0, 0], sizes = [2, 8, 8], strides = [1, 1, 1]} : vector<8x8x8xf32> to vector<2x8x8xf32>
    %98 = vector.shape_cast %97 : vector<2x8x8xf32> to vector<16x8xf32>
    %99 = vector.extract_strided_slice %92 {offsets = [6, 0, 0], sizes = [2, 8, 8], strides = [1, 1, 1]} : vector<8x8x8xf32> to vector<2x8x8xf32>
    %100 = vector.shape_cast %99 : vector<2x8x8xf32> to vector<16x8xf32>
    %101 = tpu.concatenate %94, %96, %98, %100 in 1 : vector<16x8xf32>, vector<16x8xf32>, vector<16x8xf32>, vector<16x8xf32> -> vector<16x32xf32>
    %102 = arith.truncf %101 : vector<16x32xf32> to vector<16x32xbf16>
    %103 = vector.extract_strided_slice %1 {offsets = [0, 0, 0], sizes = [1, 32, 32], strides = [1, 1, 1]} : vector<2x32x32xbf16> to vector<1x32x32xbf16>
    %104 = vector.shape_cast %103 : vector<1x32x32xbf16> to vector<32x32xbf16>
    %cst_30 = arith.constant dense<0.000000e+00> : vector<16x32xf32>
    %105 = tpu.matmul %102, %104, %cst_30 {dimension_numbers = #tpu.dot_dimension_numbers<[1], [0], [0], [1], [0, 0, 1, 1], [], []>} : vector<16x32xbf16>, vector<32x32xbf16>, vector<16x32xf32> -> vector<16x32xf32>
    %106 = vector.extract_strided_slice %5 {offsets = [3, 0], sizes = [1, 32], strides = [1, 1]} : vector<22x128xf32> to vector<1x32xf32>
    %107 = vector.broadcast %106 : vector<1x32xf32> to vector<16x32xf32>
    %108 = arith.addf %105, %107 : vector<16x32xf32>
    %109 = arith.addf %30, %108 : vector<16x32xf32>
    %110 = vector.extract_strided_slice %5 {offsets = [4, 0], sizes = [1, 32], strides = [1, 1]} : vector<22x128xf32> to vector<1x32xf32>
    %111 = vector.extract_strided_slice %5 {offsets = [5, 0], sizes = [1, 32], strides = [1, 1]} : vector<22x128xf32> to vector<1x32xf32>
    %cst_31 = arith.constant dense<0.000000e+00> : vector<16xf32>
    %112 = vector.multi_reduction <add>, %109, %cst_31 [1] : vector<16x32xf32> to vector<16xf32>
    %113 = vector.shape_cast %112 : vector<16xf32> to vector<16x1xf32>
    %cst_32 = arith.constant 3.200000e+01 : f32
    %114 = vector.broadcast %cst_32 : f32 to vector<16x1xf32>
    %115 = arith.divf %113, %114 : vector<16x1xf32>
    %116 = vector.broadcast %115 : vector<16x1xf32> to vector<16x32xf32>
    %117 = arith.subf %109, %116 : vector<16x32xf32>
    %118 = arith.mulf %117, %117 : vector<16x32xf32>
    %cst_33 = arith.constant dense<0.000000e+00> : vector<16xf32>
    %119 = vector.multi_reduction <add>, %118, %cst_33 [1] : vector<16x32xf32> to vector<16xf32>
    %120 = vector.shape_cast %119 : vector<16xf32> to vector<16x1xf32>
    %cst_34 = arith.constant 3.200000e+01 : f32
    %121 = vector.broadcast %cst_34 : f32 to vector<16x1xf32>
    %122 = arith.divf %120, %121 : vector<16x1xf32>
    %123 = vector.broadcast %115 : vector<16x1xf32> to vector<16x32xf32>
    %124 = arith.subf %109, %123 : vector<16x32xf32>
    %cst_35 = arith.constant 9.99999996E-13 : f32
    %125 = vector.broadcast %cst_35 : f32 to vector<16x1xf32>
    %126 = arith.addf %122, %125 : vector<16x1xf32>
    %127 = math.rsqrt %126 : vector<16x1xf32>
    %128 = vector.broadcast %127 : vector<16x1xf32> to vector<16x32xf32>
    %129 = arith.mulf %124, %128 : vector<16x32xf32>
    %130 = vector.broadcast %110 : vector<1x32xf32> to vector<16x32xf32>
    %131 = arith.mulf %129, %130 : vector<16x32xf32>
    %132 = vector.broadcast %111 : vector<1x32xf32> to vector<16x32xf32>
    %133 = arith.addf %131, %132 : vector<16x32xf32>
    %134 = arith.truncf %133 : vector<16x32xf32> to vector<16x32xbf16>
    %135 = vector.extract_strided_slice %2 {offsets = [0, 0, 0], sizes = [1, 32, 64], strides = [1, 1, 1]} : vector<2x32x64xbf16> to vector<1x32x64xbf16>
    %136 = vector.shape_cast %135 : vector<1x32x64xbf16> to vector<32x64xbf16>
    %cst_36 = arith.constant dense<0.000000e+00> : vector<16x64xf32>
    %137 = tpu.matmul %134, %136, %cst_36 {dimension_numbers = #tpu.dot_dimension_numbers<[1], [0], [0], [1], [0, 0, 1, 1], [], []>} : vector<16x32xbf16>, vector<32x64xbf16>, vector<16x64xf32> -> vector<16x64xf32>
    %138 = vector.extract_strided_slice %5 {offsets = [6, 0], sizes = [1, 64], strides = [1, 1]} : vector<22x128xf32> to vector<1x64xf32>
    %139 = vector.broadcast %138 : vector<1x64xf32> to vector<16x64xf32>
    %140 = arith.addf %137, %139 : vector<16x64xf32>
    %cst_37 = arith.constant 5.000000e-01 : f32
    %141 = vector.broadcast %cst_37 : f32 to vector<16x64xf32>
    %142 = arith.mulf %141, %140 : vector<16x64xf32>
    %cst_38 = arith.constant 4.471500e-02 : f32
    %143 = vector.broadcast %cst_38 : f32 to vector<16x64xf32>
    %144 = arith.mulf %143, %140 : vector<16x64xf32>
    %145 = arith.mulf %144, %140 : vector<16x64xf32>
    %146 = arith.mulf %145, %140 : vector<16x64xf32>
    %147 = arith.addf %140, %146 : vector<16x64xf32>
    %cst_39 = arith.constant 0.797884583 : f32
    %148 = vector.broadcast %cst_39 : f32 to vector<16x64xf32>
    %149 = arith.mulf %148, %147 : vector<16x64xf32>
    %150 = math.tanh %149 : vector<16x64xf32>
    %cst_40 = arith.constant 1.000000e+00 : f32
    %151 = vector.broadcast %cst_40 : f32 to vector<16x64xf32>
    %152 = arith.addf %151, %150 : vector<16x64xf32>
    %153 = arith.mulf %142, %152 : vector<16x64xf32>
    %154 = arith.truncf %153 : vector<16x64xf32> to vector<16x64xbf16>
    %155 = vector.extract_strided_slice %3 {offsets = [0, 0, 0], sizes = [1, 64, 32], strides = [1, 1, 1]} : vector<2x64x32xbf16> to vector<1x64x32xbf16>
    %156 = vector.shape_cast %155 : vector<1x64x32xbf16> to vector<64x32xbf16>
    %cst_41 = arith.constant dense<0.000000e+00> : vector<16x32xf32>
    %157 = tpu.matmul %154, %156, %cst_41 {dimension_numbers = #tpu.dot_dimension_numbers<[1], [0], [0], [1], [0, 0, 1, 1], [], []>} : vector<16x64xbf16>, vector<64x32xbf16>, vector<16x32xf32> -> vector<16x32xf32>
    %158 = vector.extract_strided_slice %5 {offsets = [7, 0], sizes = [1, 32], strides = [1, 1]} : vector<22x128xf32> to vector<1x32xf32>
    %159 = vector.broadcast %158 : vector<1x32xf32> to vector<16x32xf32>
    %160 = arith.addf %157, %159 : vector<16x32xf32>
    %161 = arith.addf %133, %160 : vector<16x32xf32>
    %162 = vector.extract_strided_slice %5 {offsets = [8, 0], sizes = [1, 32], strides = [1, 1]} : vector<22x128xf32> to vector<1x32xf32>
    %163 = vector.extract_strided_slice %5 {offsets = [9, 0], sizes = [1, 32], strides = [1, 1]} : vector<22x128xf32> to vector<1x32xf32>
    %cst_42 = arith.constant dense<0.000000e+00> : vector<16xf32>
    %164 = vector.multi_reduction <add>, %161, %cst_42 [1] : vector<16x32xf32> to vector<16xf32>
    %165 = vector.shape_cast %164 : vector<16xf32> to vector<16x1xf32>
    %cst_43 = arith.constant 3.200000e+01 : f32
    %166 = vector.broadcast %cst_43 : f32 to vector<16x1xf32>
    %167 = arith.divf %165, %166 : vector<16x1xf32>
    %168 = vector.broadcast %167 : vector<16x1xf32> to vector<16x32xf32>
    %169 = arith.subf %161, %168 : vector<16x32xf32>
    %170 = arith.mulf %169, %169 : vector<16x32xf32>
    %cst_44 = arith.constant dense<0.000000e+00> : vector<16xf32>
    %171 = vector.multi_reduction <add>, %170, %cst_44 [1] : vector<16x32xf32> to vector<16xf32>
    %172 = vector.shape_cast %171 : vector<16xf32> to vector<16x1xf32>
    %cst_45 = arith.constant 3.200000e+01 : f32
    %173 = vector.broadcast %cst_45 : f32 to vector<16x1xf32>
    %174 = arith.divf %172, %173 : vector<16x1xf32>
    %175 = vector.broadcast %167 : vector<16x1xf32> to vector<16x32xf32>
    %176 = arith.subf %161, %175 : vector<16x32xf32>
    %cst_46 = arith.constant 9.99999996E-13 : f32
    %177 = vector.broadcast %cst_46 : f32 to vector<16x1xf32>
    %178 = arith.addf %174, %177 : vector<16x1xf32>
    %179 = math.rsqrt %178 : vector<16x1xf32>
    %180 = vector.broadcast %179 : vector<16x1xf32> to vector<16x32xf32>
    %181 = arith.mulf %176, %180 : vector<16x32xf32>
    %182 = vector.broadcast %162 : vector<1x32xf32> to vector<16x32xf32>
    %183 = arith.mulf %181, %182 : vector<16x32xf32>
    %184 = vector.broadcast %163 : vector<1x32xf32> to vector<16x32xf32>
    %185 = arith.addf %183, %184 : vector<16x32xf32>
    %186 = arith.truncf %185 : vector<16x32xf32> to vector<16x32xbf16>
    %187 = vector.extract_strided_slice %0 {offsets = [1, 0, 0], sizes = [1, 32, 96], strides = [1, 1, 1]} : vector<2x32x96xbf16> to vector<1x32x96xbf16>
    %188 = vector.shape_cast %187 : vector<1x32x96xbf16> to vector<32x96xbf16>
    %cst_47 = arith.constant dense<0.000000e+00> : vector<16x96xf32>
    %189 = tpu.matmul %186, %188, %cst_47 {dimension_numbers = #tpu.dot_dimension_numbers<[1], [0], [0], [1], [0, 0, 1, 1], [], []>} : vector<16x32xbf16>, vector<32x96xbf16>, vector<16x96xf32> -> vector<16x96xf32>
    %190 = vector.extract_strided_slice %5 {offsets = [10, 0], sizes = [1, 96], strides = [1, 1]} : vector<22x128xf32> to vector<1x96xf32>
    %191 = vector.broadcast %190 : vector<1x96xf32> to vector<16x96xf32>
    %192 = arith.addf %189, %191 : vector<16x96xf32>
    %193 = vector.extract_strided_slice %192 {offsets = [0, 0], sizes = [16, 32], strides = [1, 1]} : vector<16x96xf32> to vector<16x32xf32>
    %cst_48 = arith.constant 0.353553385 : f32
    %194 = vector.broadcast %cst_48 : f32 to vector<16x32xf32>
    %195 = arith.mulf %193, %194 : vector<16x32xf32>
    %196 = vector.extract_strided_slice %195 {offsets = [0, 0], sizes = [16, 8], strides = [1, 1]} : vector<16x32xf32> to vector<16x8xf32>
    %197 = vector.shape_cast %196 : vector<16x8xf32> to vector<2x8x8xf32>
    %198 = vector.extract_strided_slice %195 {offsets = [0, 8], sizes = [16, 8], strides = [1, 1]} : vector<16x32xf32> to vector<16x8xf32>
    %199 = vector.shape_cast %198 : vector<16x8xf32> to vector<2x8x8xf32>
    %200 = vector.extract_strided_slice %195 {offsets = [0, 16], sizes = [16, 8], strides = [1, 1]} : vector<16x32xf32> to vector<16x8xf32>
    %201 = vector.shape_cast %200 : vector<16x8xf32> to vector<2x8x8xf32>
    %202 = vector.extract_strided_slice %195 {offsets = [0, 24], sizes = [16, 8], strides = [1, 1]} : vector<16x32xf32> to vector<16x8xf32>
    %203 = vector.shape_cast %202 : vector<16x8xf32> to vector<2x8x8xf32>
    %204 = tpu.concatenate %197, %199, %201, %203 in 0 : vector<2x8x8xf32>, vector<2x8x8xf32>, vector<2x8x8xf32>, vector<2x8x8xf32> -> vector<8x8x8xf32>
    %205 = arith.truncf %204 : vector<8x8x8xf32> to vector<8x8x8xbf16>
    %206 = vector.extract_strided_slice %192 {offsets = [0, 32], sizes = [16, 32], strides = [1, 1]} : vector<16x96xf32> to vector<16x32xf32>
    %207 = vector.extract_strided_slice %206 {offsets = [0, 0], sizes = [16, 8], strides = [1, 1]} : vector<16x32xf32> to vector<16x8xf32>
    %208 = vector.shape_cast %207 : vector<16x8xf32> to vector<2x8x8xf32>
    %209 = vector.extract_strided_slice %206 {offsets = [0, 8], sizes = [16, 8], strides = [1, 1]} : vector<16x32xf32> to vector<16x8xf32>
    %210 = vector.shape_cast %209 : vector<16x8xf32> to vector<2x8x8xf32>
    %211 = vector.extract_strided_slice %206 {offsets = [0, 16], sizes = [16, 8], strides = [1, 1]} : vector<16x32xf32> to vector<16x8xf32>
    %212 = vector.shape_cast %211 : vector<16x8xf32> to vector<2x8x8xf32>
    %213 = vector.extract_strided_slice %206 {offsets = [0, 24], sizes = [16, 8], strides = [1, 1]} : vector<16x32xf32> to vector<16x8xf32>
    %214 = vector.shape_cast %213 : vector<16x8xf32> to vector<2x8x8xf32>
    %215 = tpu.concatenate %208, %210, %212, %214 in 0 : vector<2x8x8xf32>, vector<2x8x8xf32>, vector<2x8x8xf32>, vector<2x8x8xf32> -> vector<8x8x8xf32>
    %216 = arith.truncf %215 : vector<8x8x8xf32> to vector<8x8x8xbf16>
    %217 = vector.extract_strided_slice %192 {offsets = [0, 64], sizes = [16, 32], strides = [1, 1]} : vector<16x96xf32> to vector<16x32xf32>
    %218 = vector.extract_strided_slice %217 {offsets = [0, 0], sizes = [16, 8], strides = [1, 1]} : vector<16x32xf32> to vector<16x8xf32>
    %219 = vector.shape_cast %218 : vector<16x8xf32> to vector<2x8x8xf32>
    %220 = vector.extract_strided_slice %217 {offsets = [0, 8], sizes = [16, 8], strides = [1, 1]} : vector<16x32xf32> to vector<16x8xf32>
    %221 = vector.shape_cast %220 : vector<16x8xf32> to vector<2x8x8xf32>
    %222 = vector.extract_strided_slice %217 {offsets = [0, 16], sizes = [16, 8], strides = [1, 1]} : vector<16x32xf32> to vector<16x8xf32>
    %223 = vector.shape_cast %222 : vector<16x8xf32> to vector<2x8x8xf32>
    %224 = vector.extract_strided_slice %217 {offsets = [0, 24], sizes = [16, 8], strides = [1, 1]} : vector<16x32xf32> to vector<16x8xf32>
    %225 = vector.shape_cast %224 : vector<16x8xf32> to vector<2x8x8xf32>
    %226 = tpu.concatenate %219, %221, %223, %225 in 0 : vector<2x8x8xf32>, vector<2x8x8xf32>, vector<2x8x8xf32>, vector<2x8x8xf32> -> vector<8x8x8xf32>
    %227 = arith.truncf %226 : vector<8x8x8xf32> to vector<8x8x8xbf16>
    "tpu.trace_start"() <{level = 10 : i32, message = "bqd,bkd->bqk"}> : () -> ()
    %cst_49 = arith.constant dense<0.000000e+00> : vector<8x8x8xf32>
    %228 = tpu.matmul %205, %216, %cst_49 {dimension_numbers = #tpu.dot_dimension_numbers<[2], [2], [1], [1], [0, 0, 0, 1, 1, 1], [0], [0]>} : vector<8x8x8xbf16>, vector<8x8x8xbf16>, vector<8x8x8xf32> -> vector<8x8x8xf32>
    "tpu.trace_stop"() : () -> ()
    %229 = arith.addf %228, %35 : vector<8x8x8xf32>
    %cst_50 = arith.constant dense<0xFF800000> : vector<8x8xf32>
    %230 = vector.multi_reduction <maximumf>, %229, %cst_50 [2] : vector<8x8x8xf32> to vector<8x8xf32>
    %231 = vector.shape_cast %230 : vector<8x8xf32> to vector<8x8x1xf32>
    %232 = vector.broadcast %231 : vector<8x8x1xf32> to vector<8x8x8xf32>
    %233 = arith.subf %229, %232 : vector<8x8x8xf32>
    %234 = math.exp %233 : vector<8x8x8xf32>
    %cst_51 = arith.constant dense<0.000000e+00> : vector<8x8xf32>
    %235 = vector.multi_reduction <add>, %234, %cst_51 [2] : vector<8x8x8xf32> to vector<8x8xf32>
    %236 = vector.shape_cast %235 : vector<8x8xf32> to vector<8x8x1xf32>
    %cst_52 = arith.constant 1.000000e+00 : f32
    %237 = vector.broadcast %cst_52 : f32 to vector<8x8x1xf32>
    %238 = arith.divf %237, %236 : vector<8x8x1xf32>
    %239 = vector.broadcast %238 : vector<8x8x1xf32> to vector<8x8x8xf32>
    %240 = arith.mulf %234, %239 : vector<8x8x8xf32>
    %241 = arith.truncf %240 : vector<8x8x8xf32> to vector<8x8x8xbf16>
    "tpu.trace_start"() <{level = 10 : i32, message = "bqk,bkd->bqd"}> : () -> ()
    %cst_53 = arith.constant dense<0.000000e+00> : vector<8x8x8xf32>
    %242 = tpu.matmul %241, %227, %cst_53 {dimension_numbers = #tpu.dot_dimension_numbers<[2], [1], [1], [2], [0, 0, 0, 1, 1, 2], [0], [0]>} : vector<8x8x8xbf16>, vector<8x8x8xbf16>, vector<8x8x8xf32> -> vector<8x8x8xf32>
    "tpu.trace_stop"() : () -> ()
    %243 = vector.extract_strided_slice %242 {offsets = [0, 0, 0], sizes = [2, 8, 8], strides = [1, 1, 1]} : vector<8x8x8xf32> to vector<2x8x8xf32>
    %244 = vector.shape_cast %243 : vector<2x8x8xf32> to vector<16x8xf32>
    %245 = vector.extract_strided_slice %242 {offsets = [2, 0, 0], sizes = [2, 8, 8], strides = [1, 1, 1]} : vector<8x8x8xf32> to vector<2x8x8xf32>
    %246 = vector.shape_cast %245 : vector<2x8x8xf32> to vector<16x8xf32>
    %247 = vector.extract_strided_slice %242 {offsets = [4, 0, 0], sizes = [2, 8, 8], strides = [1, 1, 1]} : vector<8x8x8xf32> to vector<2x8x8xf32>
    %248 = vector.shape_cast %247 : vector<2x8x8xf32> to vector<16x8xf32>
    %249 = vector.extract_strided_slice %242 {offsets = [6, 0, 0], sizes = [2, 8, 8], strides = [1, 1, 1]} : vector<8x8x8xf32> to vector<2x8x8xf32>
    %250 = vector.shape_cast %249 : vector<2x8x8xf32> to vector<16x8xf32>
    %251 = tpu.concatenate %244, %246, %248, %250 in 1 : vector<16x8xf32>, vector<16x8xf32>, vector<16x8xf32>, vector<16x8xf32> -> vector<16x32xf32>
    %252 = arith.truncf %251 : vector<16x32xf32> to vector<16x32xbf16>
    %253 = vector.extract_strided_slice %1 {offsets = [1, 0, 0], sizes = [1, 32, 32], strides = [1, 1, 1]} : vector<2x32x32xbf16> to vector<1x32x32xbf16>
    %254 = vector.shape_cast %253 : vector<1x32x32xbf16> to vector<32x32xbf16>
    %cst_54 = arith.constant dense<0.000000e+00> : vector<16x32xf32>
    %255 = tpu.matmul %252, %254, %cst_54 {dimension_numbers = #tpu.dot_dimension_numbers<[1], [0], [0], [1], [0, 0, 1, 1], [], []>} : vector<16x32xbf16>, vector<32x32xbf16>, vector<16x32xf32> -> vector<16x32xf32>
    %256 = vector.extract_strided_slice %5 {offsets = [11, 0], sizes = [1, 32], strides = [1, 1]} : vector<22x128xf32> to vector<1x32xf32>
    %257 = vector.broadcast %256 : vector<1x32xf32> to vector<16x32xf32>
    %258 = arith.addf %255, %257 : vector<16x32xf32>
    %259 = arith.addf %185, %258 : vector<16x32xf32>
    %260 = vector.extract_strided_slice %5 {offsets = [12, 0], sizes = [1, 32], strides = [1, 1]} : vector<22x128xf32> to vector<1x32xf32>
    %261 = vector.extract_strided_slice %5 {offsets = [13, 0], sizes = [1, 32], strides = [1, 1]} : vector<22x128xf32> to vector<1x32xf32>
    %cst_55 = arith.constant dense<0.000000e+00> : vector<16xf32>
    %262 = vector.multi_reduction <add>, %259, %cst_55 [1] : vector<16x32xf32> to vector<16xf32>
    %263 = vector.shape_cast %262 : vector<16xf32> to vector<16x1xf32>
    %cst_56 = arith.constant 3.200000e+01 : f32
    %264 = vector.broadcast %cst_56 : f32 to vector<16x1xf32>
    %265 = arith.divf %263, %264 : vector<16x1xf32>
    %266 = vector.broadcast %265 : vector<16x1xf32> to vector<16x32xf32>
    %267 = arith.subf %259, %266 : vector<16x32xf32>
    %268 = arith.mulf %267, %267 : vector<16x32xf32>
    %cst_57 = arith.constant dense<0.000000e+00> : vector<16xf32>
    %269 = vector.multi_reduction <add>, %268, %cst_57 [1] : vector<16x32xf32> to vector<16xf32>
    %270 = vector.shape_cast %269 : vector<16xf32> to vector<16x1xf32>
    %cst_58 = arith.constant 3.200000e+01 : f32
    %271 = vector.broadcast %cst_58 : f32 to vector<16x1xf32>
    %272 = arith.divf %270, %271 : vector<16x1xf32>
    %273 = vector.broadcast %265 : vector<16x1xf32> to vector<16x32xf32>
    %274 = arith.subf %259, %273 : vector<16x32xf32>
    %cst_59 = arith.constant 9.99999996E-13 : f32
    %275 = vector.broadcast %cst_59 : f32 to vector<16x1xf32>
    %276 = arith.addf %272, %275 : vector<16x1xf32>
    %277 = math.rsqrt %276 : vector<16x1xf32>
    %278 = vector.broadcast %277 : vector<16x1xf32> to vector<16x32xf32>
    %279 = arith.mulf %274, %278 : vector<16x32xf32>
    %280 = vector.broadcast %260 : vector<1x32xf32> to vector<16x32xf32>
    %281 = arith.mulf %279, %280 : vector<16x32xf32>
    %282 = vector.broadcast %261 : vector<1x32xf32> to vector<16x32xf32>
    %283 = arith.addf %281, %282 : vector<16x32xf32>
    %284 = arith.truncf %283 : vector<16x32xf32> to vector<16x32xbf16>
    %285 = vector.extract_strided_slice %2 {offsets = [1, 0, 0], sizes = [1, 32, 64], strides = [1, 1, 1]} : vector<2x32x64xbf16> to vector<1x32x64xbf16>
    %286 = vector.shape_cast %285 : vector<1x32x64xbf16> to vector<32x64xbf16>
    %cst_60 = arith.constant dense<0.000000e+00> : vector<16x64xf32>
    %287 = tpu.matmul %284, %286, %cst_60 {dimension_numbers = #tpu.dot_dimension_numbers<[1], [0], [0], [1], [0, 0, 1, 1], [], []>} : vector<16x32xbf16>, vector<32x64xbf16>, vector<16x64xf32> -> vector<16x64xf32>
    %288 = vector.extract_strided_slice %5 {offsets = [14, 0], sizes = [1, 64], strides = [1, 1]} : vector<22x128xf32> to vector<1x64xf32>
    %289 = vector.broadcast %288 : vector<1x64xf32> to vector<16x64xf32>
    %290 = arith.addf %287, %289 : vector<16x64xf32>
    %cst_61 = arith.constant 5.000000e-01 : f32
    %291 = vector.broadcast %cst_61 : f32 to vector<16x64xf32>
    %292 = arith.mulf %291, %290 : vector<16x64xf32>
    %cst_62 = arith.constant 4.471500e-02 : f32
    %293 = vector.broadcast %cst_62 : f32 to vector<16x64xf32>
    %294 = arith.mulf %293, %290 : vector<16x64xf32>
    %295 = arith.mulf %294, %290 : vector<16x64xf32>
    %296 = arith.mulf %295, %290 : vector<16x64xf32>
    %297 = arith.addf %290, %296 : vector<16x64xf32>
    %cst_63 = arith.constant 0.797884583 : f32
    %298 = vector.broadcast %cst_63 : f32 to vector<16x64xf32>
    %299 = arith.mulf %298, %297 : vector<16x64xf32>
    %300 = math.tanh %299 : vector<16x64xf32>
    %cst_64 = arith.constant 1.000000e+00 : f32
    %301 = vector.broadcast %cst_64 : f32 to vector<16x64xf32>
    %302 = arith.addf %301, %300 : vector<16x64xf32>
    %303 = arith.mulf %292, %302 : vector<16x64xf32>
    %304 = arith.truncf %303 : vector<16x64xf32> to vector<16x64xbf16>
    %305 = vector.extract_strided_slice %3 {offsets = [1, 0, 0], sizes = [1, 64, 32], strides = [1, 1, 1]} : vector<2x64x32xbf16> to vector<1x64x32xbf16>
    %306 = vector.shape_cast %305 : vector<1x64x32xbf16> to vector<64x32xbf16>
    %cst_65 = arith.constant dense<0.000000e+00> : vector<16x32xf32>
    %307 = tpu.matmul %304, %306, %cst_65 {dimension_numbers = #tpu.dot_dimension_numbers<[1], [0], [0], [1], [0, 0, 1, 1], [], []>} : vector<16x64xbf16>, vector<64x32xbf16>, vector<16x32xf32> -> vector<16x32xf32>
    %308 = vector.extract_strided_slice %5 {offsets = [15, 0], sizes = [1, 32], strides = [1, 1]} : vector<22x128xf32> to vector<1x32xf32>
    %309 = vector.broadcast %308 : vector<1x32xf32> to vector<16x32xf32>
    %310 = arith.addf %307, %309 : vector<16x32xf32>
    %311 = arith.addf %283, %310 : vector<16x32xf32>
    %312 = vector.extract_strided_slice %5 {offsets = [16, 0], sizes = [1, 32], strides = [1, 1]} : vector<22x128xf32> to vector<1x32xf32>
    %313 = vector.extract_strided_slice %5 {offsets = [17, 0], sizes = [1, 32], strides = [1, 1]} : vector<22x128xf32> to vector<1x32xf32>
    %cst_66 = arith.constant dense<0.000000e+00> : vector<16xf32>
    %314 = vector.multi_reduction <add>, %311, %cst_66 [1] : vector<16x32xf32> to vector<16xf32>
    %315 = vector.shape_cast %314 : vector<16xf32> to vector<16x1xf32>
    %cst_67 = arith.constant 3.200000e+01 : f32
    %316 = vector.broadcast %cst_67 : f32 to vector<16x1xf32>
    %317 = arith.divf %315, %316 : vector<16x1xf32>
    %318 = vector.broadcast %317 : vector<16x1xf32> to vector<16x32xf32>
    %319 = arith.subf %311, %318 : vector<16x32xf32>
    %320 = arith.mulf %319, %319 : vector<16x32xf32>
    %cst_68 = arith.constant dense<0.000000e+00> : vector<16xf32>
    %321 = vector.multi_reduction <add>, %320, %cst_68 [1] : vector<16x32xf32> to vector<16xf32>
    %322 = vector.shape_cast %321 : vector<16xf32> to vector<16x1xf32>
    %cst_69 = arith.constant 3.200000e+01 : f32
    %323 = vector.broadcast %cst_69 : f32 to vector<16x1xf32>
    %324 = arith.divf %322, %323 : vector<16x1xf32>
    %325 = vector.broadcast %317 : vector<16x1xf32> to vector<16x32xf32>
    %326 = arith.subf %311, %325 : vector<16x32xf32>
    %cst_70 = arith.constant 9.99999996E-13 : f32
    %327 = vector.broadcast %cst_70 : f32 to vector<16x1xf32>
    %328 = arith.addf %324, %327 : vector<16x1xf32>
    %329 = math.rsqrt %328 : vector<16x1xf32>
    %330 = vector.broadcast %329 : vector<16x1xf32> to vector<16x32xf32>
    %331 = arith.mulf %326, %330 : vector<16x32xf32>
    %332 = vector.broadcast %312 : vector<1x32xf32> to vector<16x32xf32>
    %333 = arith.mulf %331, %332 : vector<16x32xf32>
    %334 = vector.broadcast %313 : vector<1x32xf32> to vector<16x32xf32>
    %335 = arith.addf %333, %334 : vector<16x32xf32>
    %336 = vector.shape_cast %335 : vector<16x32xf32> to vector<2x8x32xf32>
    %337 = arith.truncf %335 : vector<16x32xf32> to vector<16x32xbf16>
    %338 = vector.extract_strided_slice %4 {offsets = [0, 0], sizes = [32, 128], strides = [1, 1]} : vector<32x192xbf16> to vector<32x128xbf16>
    %339 = vector.extract_strided_slice %4 {offsets = [0, 128], sizes = [32, 32], strides = [1, 1]} : vector<32x192xbf16> to vector<32x32xbf16>
    %340 = vector.extract_strided_slice %4 {offsets = [0, 160], sizes = [32, 32], strides = [1, 1]} : vector<32x192xbf16> to vector<32x32xbf16>
    %cst_71 = arith.constant dense<0.000000e+00> : vector<16x32xf32>
    %341 = tpu.matmul %337, %339, %cst_71 {dimension_numbers = #tpu.dot_dimension_numbers<[1], [0], [0], [1], [0, 0, 1, 1], [], []>} : vector<16x32xbf16>, vector<32x32xbf16>, vector<16x32xf32> -> vector<16x32xf32>
    %342 = vector.extract_strided_slice %5 {offsets = [18, 0], sizes = [1, 32], strides = [1, 1]} : vector<22x128xf32> to vector<1x32xf32>
    %343 = vector.broadcast %342 : vector<1x32xf32> to vector<16x32xf32>
    %344 = arith.addf %341, %343 : vector<16x32xf32>
    %345 = math.tanh %344 : vector<16x32xf32>
    %346 = vector.shape_cast %345 : vector<16x32xf32> to vector<2x8x32xf32>
    %347 = vector.extract_strided_slice %5 {offsets = [19, 0], sizes = [1, 32], strides = [1, 1]} : vector<22x128xf32> to vector<1x32xf32>
    %348 = vector.shape_cast %347 : vector<1x32xf32> to vector<1x1x32xf32>
    %349 = vector.broadcast %348 : vector<1x1x32xf32> to vector<2x8x32xf32>
    %350 = arith.mulf %346, %349 : vector<2x8x32xf32>
    %cst_72 = arith.constant dense<0.000000e+00> : vector<2x8xf32>
    %351 = vector.multi_reduction <add>, %350, %cst_72 [2] : vector<2x8x32xf32> to vector<2x8xf32>
    %cst_73 = arith.constant dense<0xFF800000> : vector<2xf32>
    %352 = vector.multi_reduction <maximumf>, %351, %cst_73 [1] : vector<2x8xf32> to vector<2xf32>
    %353 = vector.shape_cast %352 : vector<2xf32> to vector<2x1xf32>
    %354 = vector.broadcast %353 : vector<2x1xf32> to vector<2x8xf32>
    %355 = arith.subf %351, %354 : vector<2x8xf32>
    %356 = math.exp %355 : vector<2x8xf32>
    %cst_74 = arith.constant dense<0.000000e+00> : vector<2xf32>
    %357 = vector.multi_reduction <add>, %356, %cst_74 [1] : vector<2x8xf32> to vector<2xf32>
    %358 = vector.shape_cast %357 : vector<2xf32> to vector<2x1xf32>
    %cst_75 = arith.constant 1.000000e+00 : f32
    %359 = vector.broadcast %cst_75 : f32 to vector<2x1xf32>
    %360 = arith.divf %359, %358 : vector<2x1xf32>
    %361 = vector.broadcast %360 : vector<2x1xf32> to vector<2x8xf32>
    %362 = arith.mulf %356, %361 : vector<2x8xf32>
    %363 = vector.shape_cast %362 : vector<2x8xf32> to vector<2x1x8xf32>
    %364 = arith.truncf %363 : vector<2x1x8xf32> to vector<2x1x8xbf16>
    %365 = arith.truncf %336 : vector<2x8x32xf32> to vector<2x8x32xbf16>
    "tpu.trace_start"() <{level = 10 : i32, message = "bqs,bsh->bqh"}> : () -> ()
    %cst_76 = arith.constant dense<0.000000e+00> : vector<2x1x32xf32>
    %366 = tpu.matmul %364, %365, %cst_76 {dimension_numbers = #tpu.dot_dimension_numbers<[2], [1], [1], [2], [0, 0, 0, 1, 1, 2], [0], [0]>} : vector<2x1x8xbf16>, vector<2x8x32xbf16>, vector<2x1x32xf32> -> vector<2x1x32xf32>
    "tpu.trace_stop"() : () -> ()
    %367 = vector.shape_cast %366 : vector<2x1x32xf32> to vector<2x32xf32>
    %368 = arith.truncf %367 : vector<2x32xf32> to vector<2x32xbf16>
    %cst_77 = arith.constant dense<0.000000e+00> : vector<2x32xf32>
    %369 = tpu.matmul %368, %340, %cst_77 {dimension_numbers = #tpu.dot_dimension_numbers<[1], [0], [0], [1], [0, 0, 1, 1], [], []>} : vector<2x32xbf16>, vector<32x32xbf16>, vector<2x32xf32> -> vector<2x32xf32>
    %370 = vector.extract_strided_slice %5 {offsets = [20, 0], sizes = [1, 32], strides = [1, 1]} : vector<22x128xf32> to vector<1x32xf32>
    %371 = vector.broadcast %370 : vector<1x32xf32> to vector<2x32xf32>
    %372 = arith.addf %369, %371 : vector<2x32xf32>
    %cst_78 = arith.constant 0.000000e+00 : f32
    %373 = vector.broadcast %cst_78 : f32 to vector<2x32xf32>
    %374 = arith.maximumf %372, %373 : vector<2x32xf32>
    %375 = arith.truncf %374 : vector<2x32xf32> to vector<2x32xbf16>
    %cst_79 = arith.constant dense<0.000000e+00> : vector<2x128xf32>
    %376 = tpu.matmul %375, %338, %cst_79 {dimension_numbers = #tpu.dot_dimension_numbers<[1], [0], [0], [1], [0, 0, 1, 1], [], []>} : vector<2x32xbf16>, vector<32x128xbf16>, vector<2x128xf32> -> vector<2x128xf32>
    %377 = vector.extract_strided_slice %5 {offsets = [21, 0], sizes = [1, 128], strides = [1, 1]} : vector<22x128xf32> to vector<1x128xf32>
    %378 = vector.broadcast %377 : vector<1x128xf32> to vector<2x128xf32>
    %379 = arith.addf %376, %378 : vector<2x128xf32>
    %c0_80 = arith.constant 0 : index
    %c0_81 = arith.constant 0 : index
    %380 = vector.load %arg9[%c0_80, %c0_81] : memref<2x128xf32, #tpu.memory_space<vmem>>, vector<2x128xf32>
    tpu.vector_store %arg9[%c0_80, %c0_81], %379 {strides = array<i32>} : memref<2x128xf32, #tpu.memory_space<vmem>>, vector<2x128xf32>,
    return
  }
  func.func @transform_0(%arg0: i32) -> (i32, i32) {
    %c0_i32 = arith.constant 0 : i32
    %c0_i32_0 = arith.constant 0 : i32
    %c0_i32_1 = arith.constant 0 : i32
    return %c0_i32, %c0_i32_0 : i32, i32
  }
  func.func @transform_1(%arg0: i32) -> (i32, i32) {
    %c0_i32 = arith.constant 0 : i32
    %c0_i32_0 = arith.constant 0 : i32
    %c0_i32_1 = arith.constant 0 : i32
    return %c0_i32, %c0_i32_0 : i32, i32
  }
  func.func @transform_2(%arg0: i32) -> (i32, i32, i32) {
    %c0_i32 = arith.constant 0 : i32
    %c0_i32_0 = arith.constant 0 : i32
    %c0_i32_1 = arith.constant 0 : i32
    %c0_i32_2 = arith.constant 0 : i32
    return %c0_i32, %c0_i32_0, %c0_i32_1 : i32, i32, i32
  }
  func.func @transform_3(%arg0: i32) -> (i32, i32, i32) {
    %c0_i32 = arith.constant 0 : i32
    %c0_i32_0 = arith.constant 0 : i32
    %c0_i32_1 = arith.constant 0 : i32
    %c0_i32_2 = arith.constant 0 : i32
    return %c0_i32, %c0_i32_0, %c0_i32_1 : i32, i32, i32
  }
  func.func @transform_4(%arg0: i32) -> (i32, i32, i32) {
    %c0_i32 = arith.constant 0 : i32
    %c0_i32_0 = arith.constant 0 : i32
    %c0_i32_1 = arith.constant 0 : i32
    %c0_i32_2 = arith.constant 0 : i32
    return %c0_i32, %c0_i32_0, %c0_i32_1 : i32, i32, i32
  }
  func.func @transform_5(%arg0: i32) -> (i32, i32, i32) {
    %c0_i32 = arith.constant 0 : i32
    %c0_i32_0 = arith.constant 0 : i32
    %c0_i32_1 = arith.constant 0 : i32
    %c0_i32_2 = arith.constant 0 : i32
    return %c0_i32, %c0_i32_0, %c0_i32_1 : i32, i32, i32
  }
  func.func @transform_6(%arg0: i32) -> (i32, i32) {
    %c0_i32 = arith.constant 0 : i32
    %c0_i32_0 = arith.constant 0 : i32
    %c0_i32_1 = arith.constant 0 : i32
    return %c0_i32, %c0_i32_0 : i32, i32
  }
  func.func @transform_7(%arg0: i32) -> (i32, i32) {
    %c0_i32 = arith.constant 0 : i32
    %c0_i32_0 = arith.constant 0 : i32
    %c0_i32_1 = arith.constant 0 : i32
    return %c0_i32, %c0_i32_0 : i32, i32
  }
  func.func @transform_8(%arg0: i32) -> (i32, i32) {
    %c0_i32 = arith.constant 0 : i32
    %c0_i32_0 = arith.constant 0 : i32
    %c0_i32_1 = arith.constant 0 : i32
    return %c0_i32, %c0_i32_0 : i32, i32
  }
}

</mosaic_0001>

<llo_original>
// kernel: tpu_custom_call.1
$region0: #{tpu_custom_call.1}
  #allocation0 [shape = 'u32[]', space=smem, size = 0x4, offset = 0x4, fixed_abs, tag = 'smem constant byte address 0x4 - core index']
  #allocation1 [shape = 'u32[144,128]{1,0:T(1,128)}', space=vmem, size = 0x12000, scoped, tag = 'internal scratch']
  %s0 = inlined_call_operand.hbm [shape: f32[16,32], index: 0, kind: input, shape index: {}]
  %s1 = inlined_call_operand.vmem [shape: f32[2,8], index: 1, kind: input, shape index: {}]
  %s2 = inlined_call_operand.vmem [shape: bf16[2,32,96], index: 2, kind: input, shape index: {}]
  %s3 = inlined_call_operand.vmem [shape: bf16[2,32,32], index: 3, kind: input, shape index: {}]
  %s4 = inlined_call_operand.vmem [shape: bf16[2,32,64], index: 4, kind: input, shape index: {}]
  %s5 = inlined_call_operand.vmem [shape: bf16[2,64,32], index: 5, kind: input, shape index: {}]
  %s6 = inlined_call_operand.hbm [shape: bf16[32,192], index: 6, kind: input, shape index: {}]
  %s7 = inlined_call_operand.vmem [shape: f32[22,128], index: 7, kind: input, shape index: {}]
  %s8 = inlined_call_operand.hbm [shape: f32[2,128], index: 8, kind: output, shape index: {}]
  %s9 = sld [smem:[#allocation0]]
  $region50: #{tpu_custom_call.1} parent=0
    _
  %s11 = ssub.s32 1, %s9
  %s12 = scalar_select 0, %s11, %s9
  $region1: #{tpu_custom_call.1} parent=0
    #allocation2 [shape = 'u8[8192]{0}', space=vmem, size = 0x2000, scoped, tag = 'input window, operand 0, single buffered']
    #allocation3 [shape = 's32[1]{0}', space=sflag, size = 0x4, scoped, tag = 'scoped memory for tpu_custom_call.1']
    #allocation4 [shape = 's32[1]{0}', space=sflag, size = 0x4, scoped, tag = 'scoped memory for tpu_custom_call.1']
    #allocation5 [shape = 'u8[16384]{0}', space=vmem, size = 0x4000, scoped, tag = 'input window, operand 6, single buffered']
    #allocation6 [shape = 's32[1]{0}', space=sflag, size = 0x4, scoped, tag = 'scoped memory for tpu_custom_call.1']
    #allocation7 [shape = 'u8[1024]{0}', space=vmem, size = 0x400, scoped, tag = 'output window, operand 0, single buffered']
    %13 = vsyncpa [#allocation3], 0
    %14 = vsyncpa [#allocation6], 0
    %15 = vsyncpa [#allocation4], 0
    // Predicated region
    $region2: #{tpu_custom_call.1} parent=1 // pred_check
      _
    $region3: #{tpu_custom_call.1} parent=1 // pred_check_branch
      %17 = sbr.rel (0) target = $region5
    $region4: #{tpu_custom_call.1} parent=1 // pred_region
      %s19 = ssub.s32 256, 256
      %20 = vsyncadd [#allocation3], %s19
      %s21 = sshll.u32 [#allocation2], 4
      %s22 = int_to_ptr.vmem [resolvable:$true] %s21
      %27 = dma.hbm_to_vmem [thread:$0]  %s0, 256, %s22, [#allocation3], 128, 128, 8
    $region5: #{tpu_custom_call.1} parent=1 // pred_fallthru
      _
    // Predicated region
    $region6: #{tpu_custom_call.1} parent=1 // pred_check
      _
    $region7: #{tpu_custom_call.1} parent=1 // pred_check_branch
      %29 = sbr.rel (0) target = $region9
    $region8: #{tpu_custom_call.1} parent=1 // pred_region
      _
    $region9: #{tpu_custom_call.1} parent=1 // pred_fallthru
      _
    // Predicated region
    $region10: #{tpu_custom_call.1} parent=1 // pred_check
      _
    $region11: #{tpu_custom_call.1} parent=1 // pred_check_branch
      %31 = sbr.rel (0) target = $region13
    $region12: #{tpu_custom_call.1} parent=1 // pred_region
      _
    $region13: #{tpu_custom_call.1} parent=1 // pred_fallthru
      _
    // Predicated region
    $region14: #{tpu_custom_call.1} parent=1 // pred_check
      _
    $region15: #{tpu_custom_call.1} parent=1 // pred_check_branch
      %33 = sbr.rel (0) target = $region17
    $region16: #{tpu_custom_call.1} parent=1 // pred_region
      _
    $region17: #{tpu_custom_call.1} parent=1 // pred_fallthru
      _
    // Predicated region
    $region18: #{tpu_custom_call.1} parent=1 // pred_check
      _
    $region19: #{tpu_custom_call.1} parent=1 // pred_check_branch
      %35 = sbr.rel (0) target = $region21
    $region20: #{tpu_custom_call.1} parent=1 // pred_region
      _
    $region21: #{tpu_custom_call.1} parent=1 // pred_fallthru
      _
    // Predicated region
    $region22: #{tpu_custom_call.1} parent=1 // pred_check
      _
    $region23: #{tpu_custom_call.1} parent=1 // pred_check_branch
      %37 = sbr.rel (0) target = $region25
    $region24: #{tpu_custom_call.1} parent=1 // pred_region
      _
    $region25: #{tpu_custom_call.1} parent=1 // pred_fallthru
      _
    // Predicated region
    $region26: #{tpu_custom_call.1} parent=1 // pred_check
      _
    $region27: #{tpu_custom_call.1} parent=1 // pred_check_branch
      %39 = sbr.rel (0) target = $region29
    $region28: #{tpu_custom_call.1} parent=1 // pred_region
      %s41 = ssub.s32 512, 512
      %42 = vsyncadd [#allocation6], %s41
      %s43 = sshll.u32 [#allocation5], 4
      %s44 = int_to_ptr.vmem [resolvable:$true] %s43
      %49 = dma.hbm_to_vmem [thread:$0]  %s6, 512, %s44, [#allocation6], 128, 128, 8
    $region29: #{tpu_custom_call.1} parent=1 // pred_fallthru
      _
    // Predicated region
    $region30: #{tpu_custom_call.1} parent=1 // pred_check
      _
    $region31: #{tpu_custom_call.1} parent=1 // pred_check_branch
      %51 = sbr.rel (0) target = $region33
    $region32: #{tpu_custom_call.1} parent=1 // pred_region
      _
    $region33: #{tpu_custom_call.1} parent=1 // pred_fallthru
      _
    // Predicated region
    $region34: #{tpu_custom_call.1} parent=1 // pred_check
      _
    $region35: #{tpu_custom_call.1} parent=1 // pred_check_branch
      %53 = sbr.rel (0) target = $region37
    $region36: #{tpu_custom_call.1} parent=1 // pred_region
      %54 = dma.done [#allocation3], 256
    $region37: #{tpu_custom_call.1} parent=1 // pred_fallthru
      _
    // Predicated region
    $region38: #{tpu_custom_call.1} parent=1 // pred_check
      _
    $region39: #{tpu_custom_call.1} parent=1 // pred_check_branch
      %56 = sbr.rel (0) target = $region41
    $region40: #{tpu_custom_call.1} parent=1 // pred_region
      %57 = dma.done [#allocation6], 512
    $region41: #{tpu_custom_call.1} parent=1 // pred_fallthru
      _
    %v59 = vld [vmem:[%s2] sm:$0xf]
    %v60 = vld [vmem:[%s2 + $0x4] sm:$0xf]
    %v61 = vld [vmem:[%s2 + $0x8] sm:$0xf]
    %v62 = vld [vmem:[%s2 + $0xc] sm:$0xf]
    %v63 = vld [vmem:[%s2 + $0x10] sm:$0xf]
    %v64 = vld [vmem:[%s2 + $0x14] sm:$0xf]
    %v65 = vld [vmem:[%s2 + $0x18] sm:$0xf]
    %v66 = vld [vmem:[%s2 + $0x1c] sm:$0xf]
    %v67 = vld [vmem:[%s3] sm:$0xf]
    %v68 = vld [vmem:[%s3 + $0x4] sm:$0xf]
    %v69 = vld [vmem:[%s3 + $0x8] sm:$0xf]
    %v70 = vld [vmem:[%s3 + $0xc] sm:$0xf]
    %v71 = vld [vmem:[%s3 + $0x10] sm:$0xf]
    %v72 = vld [vmem:[%s3 + $0x14] sm:$0xf]
    %v73 = vld [vmem:[%s3 + $0x18] sm:$0xf]
    %v74 = vld [vmem:[%s3 + $0x1c] sm:$0xf]
    %v75 = vld [vmem:[%s4] sm:$0xf]
    %v76 = vld [vmem:[%s4 + $0x4] sm:$0xf]
    %v77 = vld [vmem:[%s4 + $0x8] sm:$0xf]
    %v78 = vld [vmem:[%s4 + $0xc] sm:$0xf]
    %v79 = vld [vmem:[%s4 + $0x10] sm:$0xf]
    %v80 = vld [vmem:[%s4 + $0x14] sm:$0xf]
    %v81 = vld [vmem:[%s4 + $0x18] sm:$0xf]
    %v82 = vld [vmem:[%s4 + $0x1c] sm:$0xf]
    %v83 = vld [vmem:[%s5] sm:$0xf]
    %v84 = vld [vmem:[%s5 + $0x4] sm:$0xf]
    %v85 = vld [vmem:[%s5 + $0x8] sm:$0xf]
    %v86 = vld [vmem:[%s5 + $0xc] sm:$0xf]
    %v87 = vld [vmem:[%s5 + $0x10] sm:$0xf]
    %v88 = vld [vmem:[%s5 + $0x14] sm:$0xf]
    %v89 = vld [vmem:[%s5 + $0x18] sm:$0xf]
    %v90 = vld [vmem:[%s5 + $0x1c] sm:$0xf]
    %v91 = vld [vmem:[%s5 + $0x20] sm:$0xf]
    %v92 = vld [vmem:[%s5 + $0x24] sm:$0xf]
    %v93 = vld [vmem:[%s5 + $0x28] sm:$0xf]
    %v94 = vld [vmem:[%s5 + $0x2c] sm:$0xf]
    %v95 = vld [vmem:[%s5 + $0x30] sm:$0xf]
    %v96 = vld [vmem:[%s5 + $0x34] sm:$0xf]
    %v97 = vld [vmem:[%s5 + $0x38] sm:$0xf]
    %v98 = vld [vmem:[%s5 + $0x3c] sm:$0xf]
    %v99 = vld [vmem:[#allocation5] sm:$0xff]
    %v100 = vld [vmem:[#allocation5 + $0x8] sm:$0xff]
    %v101 = vld [vmem:[#allocation5 + $0x10] sm:$0xff]
    %v102 = vld [vmem:[#allocation5 + $0x18] sm:$0xff]
    %v103 = vld [vmem:[%s7] sm:$0xff]
    %v104 = vld [vmem:[%s7 + $0x8] sm:$0xff]
    %v105 = vld [vmem:[%s7 + $0x10] sm:$0x3f]
    %v106 = vld [vmem:[#allocation2] sm:$0xff]
    %v107 = vld [vmem:[#allocation2 + $0x8] sm:$0xff]
    %vm108 = vcmask 261120
    %v109 = vsel %vm108, %v106, 0.0
    %110 = vadd.xlane.f32.xlu0 %v109
    %v111 = vpop.xlane.xlu0 %110
    %v112 = vsel %vm108, %v107, 0.0
    %113 = vadd.xlane.f32.xlu0 %v112
    %v114 = vpop.xlane.xlu0 %113
    %v115 = vrcp.pop 32.0
    %v116 = vmul.f32 %v111, %v115
    %v117 = vmul.f32 %v114, %v115
    %v118 = vsub.f32 %v106, %v116
    %v119 = vsub.f32 %v107, %v117
    %v120 = vmul.f32 %v118, %v118
    %v121 = vmul.f32 %v119, %v119
    %v122 = vsel %vm108, %v120, 0.0
    %123 = vadd.xlane.f32.xlu0 %v122
    %v124 = vpop.xlane.xlu0 %123
    %v125 = vsel %vm108, %v121, 0.0
    %126 = vadd.xlane.f32.xlu0 %v125
    %v127 = vpop.xlane.xlu0 %126
    %v128 = vmul.f32 %v124, %v115
    %v129 = vmul.f32 %v127, %v115
    %v130 = vadd.f32 %v128, 1e-12
    %v131 = vadd.f32 %v129, 1e-12
    %v132 = vrsqrt.pop %v130
    %v133 = vrsqrt.pop %v131
    %v134 = vmul.f32 %v118, %v132
    %v135 = vmul.f32 %v119, %v133
    %v136 = vlaneseq
    %v137 = vshrl.u32 %v136, 7
    %v138 = vsub.s32 0, %v137
    %v139 = vrot.slane %v103, %v138
    %v140 = vmul.f32 %v134, %v139
    %v141 = vmul.f32 %v135, %v139
    %v142 = vlaneseq
    %v143 = vshrl.u32 %v142, 7
    %v144 = vsub.s32 1, %v143
    %v145 = vrot.slane %v103, %v144
    %v146 = vadd.f32 %v140, %v145
    %v147 = vadd.f32 %v141, %v145
    %v148 = vld [vmem:[%s1] sm:$0x3]
    %v151 = vunpack.c.l.s4 1966171168
    %v152 = vunpack.c.0.s8 %v151
    %v153 = vlaneseq
    %v154 = vshrl.u32 %v153, 7
    %v155 = vsub.s32 %v152, %v154
    %v156 = vrot.slane %v148, %v155
    %v157 = vcombine.high %v156, %v156
    %v159 = vunpack.c.l.s4 1966171168
    %v160 = vunpack.c.0.s8 %v159
    %v161 = vlaneseq
    %v162 = vshrl.u32 %v161, 7
    %v163 = vsub.s32 %v160, %v162
    %v164 = vrot.slane %v156, %v163
    %v166 = vunpack.c.l.s4 1966171168
    %v167 = vunpack.c.0.s8 %v166
    %v168 = vlaneseq
    %v169 = vshrl.u32 %v168, 7
    %v170 = vsub.s32 %v167, %v169
    %v171 = vrot.slane %v157, %v170
    %v172 = vlaneseq
    %v173 = vshrl.u32 %v172, 7
    %v174 = vsub.s32 0, %v173
    %v175 = vrot.slane %v164, %v174
    %v176 = vlaneseq
    %v177 = vshrl.u32 %v176, 7
    %v178 = vsub.s32 0, %v177
    %v179 = vrot.slane %v171, %v178
    %v182 = vpack.c.bf16 %v147, %v146
    %v183 = vlaneseq
    %v184 = vshrl.u32 %v183, 7
    %v185 = vsub.s32 2, %v184
    %v186 = vrot.slane %v103, %v185
    %v191 = vunpack.c.l.b16 %v59
    %v192 = vunpack.c.l.b16 %v60
    %v193 = vunpack.c.l.b16 %v61
    %v194 = vunpack.c.l.b16 %v62
    %v195 = vpack.c.b16 %v192, %v191
    %v196 = vpack.c.b16 %v194, %v193
    %v200 = vsel %vm108, %v182, 0
    %202 = vmatprep.subr.bf16.mxu0 0
    %203 = vmatpush1.bf16.msra.mxu0 %v195
    %204 = vmatprep.subr.bf16.mxu0 0
    %205 = vmatpush1.bf16.msra.mxu0 %v196
    %206 = vmatprep.subr.bf16.mxu0 0
    %207 = vmatpush1.bf16.msra.mxu0 0
    %208 = vmatprep.subr.bf16.mxu0 0
    %209 = vmatpush1.bf16.msra.mxu0 0
    %210 = vmatprep.subr.bf16.mxu0 0
    %211 = vmatpush1.bf16.msra.mxu0 0
    %212 = vmatprep.subr.bf16.mxu0 0
    %213 = vmatpush1.bf16.msra.mxu0 0
    %214 = vmatprep.subr.bf16.mxu0 0
    %215 = vmatpush1.bf16.msra.mxu0 0
    %216 = vmatprep.subr.bf16.mxu0 0
    %217 = vmatpush1.bf16.msra.mxu0 0
    %218 = vmatprep.subr.bf16.mxu0 0
    %219 = vmatpush1.bf16.msra.mxu0 0
    %220 = vmatprep.subr.bf16.mxu0 0
    %221 = vmatpush1.bf16.msra.mxu0 0
    %222 = vmatprep.subr.bf16.mxu0 0
    %223 = vmatpush1.bf16.msra.mxu0 0
    %224 = vmatprep.subr.bf16.mxu0 0
    %225 = vmatpush1.bf16.msra.mxu0 0
    %226 = vmatprep.subr.bf16.mxu0 0
    %227 = vmatpush1.bf16.msra.mxu0 0
    %228 = vmatprep.subr.bf16.mxu0 0
    %229 = vmatpush1.bf16.msra.mxu0 0
    %230 = vmatprep.subr.bf16.mxu0 0
    %231 = vmatpush1.bf16.msra.mxu0 0
    %232 = vmatprep.subr.bf16.mxu0 0
    %233 = vmatpush1.bf16.msra.mxu0 0
    %234 = vmatprep.mubr.bf16.mxu0 0
    %235 = vmatmul.mubr.bf16.gmra.mrb[0].mxu0 %v200
    %v236 = vpop.f32.mrb[0].mxu0
    %v237 = vadd.f32 %v186, %v236
    %v238 = vpop.f32.mrb[0].mxu0
    %v239 = vpop.f32.mrb[0].mxu0
    %v240 = vadd.f32 %v186, %v239
    %v241 = vpop.f32.mrb[0].mxu0
    %242 = vdwg.mxu0
    %v243 = vmul.f32 %v237, 0.35355338
    %v244 = vmul.f32 %v240, 0.35355338
    %247 = vrot.lane.b32.xlu0 %v243, 120
    %v248 = vpop.permute.xlu0 %247
    %249 = vrot.lane.b32.xlu0 %v244, 120
    %v250 = vpop.permute.xlu0 %249
    %253 = vrot.lane.b32.xlu0 %v243, 112
    %v254 = vpop.permute.xlu0 %253
    %255 = vrot.lane.b32.xlu0 %v244, 112
    %v256 = vpop.permute.xlu0 %255
    %259 = vrot.lane.b32.xlu0 %v243, 104
    %v260 = vpop.permute.xlu0 %259
    %261 = vrot.lane.b32.xlu0 %v244, 104
    %v262 = vpop.permute.xlu0 %261
    %v265 = vpack.c.bf16 %v243, %v243
    %v266 = vpack.c.bf16 %v244, %v244
    %v267 = vpack.c.bf16 %v248, %v248
    %v268 = vpack.c.bf16 %v250, %v250
    %v269 = vpack.c.bf16 %v254, %v254
    %v270 = vpack.c.bf16 %v256, %v256
    %v271 = vpack.c.bf16 %v260, %v260
    %v272 = vpack.c.bf16 %v262, %v262
    %275 = vrot.lane.b32.xlu0 %v237, 120
    %v276 = vpop.permute.xlu0 %275
    %277 = vrot.lane.b32.xlu0 %v240, 120
    %v278 = vpop.permute.xlu0 %277
    %281 = vrot.lane.b32.xlu0 %v237, 112
    %v282 = vpop.permute.xlu0 %281
    %283 = vrot.lane.b32.xlu0 %v240, 112
    %v284 = vpop.permute.xlu0 %283
    %287 = vrot.lane.b32.xlu0 %v237, 104
    %v288 = vpop.permute.xlu0 %287
    %289 = vrot.lane.b32.xlu0 %v240, 104
    %v290 = vpop.permute.xlu0 %289
    %v293 = vpack.c.bf16 %v237, %v237
    %v294 = vpack.c.bf16 %v240, %v240
    %v295 = vpack.c.bf16 %v276, %v276
    %v296 = vpack.c.bf16 %v278, %v278
    %v297 = vpack.c.bf16 %v282, %v282
    %v298 = vpack.c.bf16 %v284, %v284
    %v299 = vpack.c.bf16 %v288, %v288
    %v300 = vpack.c.bf16 %v290, %v290
    %302 = vrot.lane.b32.xlu0 %v293, 96
    %v303 = vpop.permute.xlu0 %302
    %vm304 = vcmask 64512
    %v306 = vsel %vm304, %v265, 0
    %v309 = vsel %vm304, %v303, 0
    %311 = vmatprep.subr.bf16.mxu0 0
    %312 = vmatpush1.bf16.xpose.msra.mxu0 %v309
    %313 = vmatprep.subr.bf16.mxu0 0
    %314 = vmatpush1.bf16.xpose.msra.mxu0 0
    %315 = vmatprep.subr.bf16.mxu0 0
    %316 = vmatpush1.bf16.xpose.msra.mxu0 0
    %317 = vmatprep.subr.bf16.mxu0 0
    %318 = vmatpush1.bf16.xpose.msra.mxu0 0
    %319 = vmatprep.subr.bf16.mxu0 0
    %320 = vmatpush1.bf16.xpose.msra.mxu0 0
    %321 = vmatprep.subr.bf16.mxu0 0
    %322 = vmatpush1.bf16.xpose.msra.mxu0 0
    %323 = vmatprep.subr.bf16.mxu0 0
    %324 = vmatpush1.bf16.xpose.msra.mxu0 0
    %325 = vmatprep.subr.bf16.mxu0 0
    %326 = vmatpush1.bf16.xpose.msra.mxu0 0
    %327 = vmatprep.subr.bf16.mxu0 0
    %328 = vmatpush1.bf16.xpose.msra.mxu0 0
    %329 = vmatprep.subr.bf16.mxu0 0
    %330 = vmatpush1.bf16.xpose.msra.mxu0 0
    %331 = vmatprep.subr.bf16.mxu0 0
    %332 = vmatpush1.bf16.xpose.msra.mxu0 0
    %333 = vmatprep.subr.bf16.mxu0 0
    %334 = vmatpush1.bf16.xpose.msra.mxu0 0
    %335 = vmatprep.subr.bf16.mxu0 0
    %336 = vmatpush1.bf16.xpose.msra.mxu0 0
    %337 = vmatprep.subr.bf16.mxu0 0
    %338 = vmatpush1.bf16.xpose.msra.mxu0 0
    %339 = vmatprep.subr.bf16.mxu0 0
    %340 = vmatpush1.bf16.xpose.msra.mxu0 0
    %341 = vmatprep.subr.bf16.mxu0 0
    %342 = vmatpush1.bf16.xpose.msra.mxu0 0
    %343 = vmatprep.mubr.bf16.mxu0 0
    %344 = vmatmul.mubr.bf16.gmra.mrb[0].mxu0 %v306
    %v345 = vpop.f32.mrb[0].mxu0
    %v346 = vadd.f32 %v175, %v345
    %v347 = vpop.f32.mrb[0].mxu0
    %v348 = vpop.f32.mrb[0].mxu0
    %v349 = vpop.f32.mrb[0].mxu0
    %350 = vdwg.mxu0
    %352 = vrot.lane.b32.xlu0 %v294, 96
    %v353 = vpop.permute.xlu0 %352
    %v355 = vsel %vm304, %v266, 0
    %v358 = vsel %vm304, %v353, 0
    %360 = vmatprep.subr.bf16.mxu0 0
    %361 = vmatpush1.bf16.xpose.msra.mxu0 %v358
    %362 = vmatprep.subr.bf16.mxu0 0
    %363 = vmatpush1.bf16.xpose.msra.mxu0 0
    %364 = vmatprep.subr.bf16.mxu0 0
    %365 = vmatpush1.bf16.xpose.msra.mxu0 0
    %366 = vmatprep.subr.bf16.mxu0 0
    %367 = vmatpush1.bf16.xpose.msra.mxu0 0
    %368 = vmatprep.subr.bf16.mxu0 0
    %369 = vmatpush1.bf16.xpose.msra.mxu0 0
    %370 = vmatprep.subr.bf16.mxu0 0
    %371 = vmatpush1.bf16.xpose.msra.mxu0 0
    %372 = vmatprep.subr.bf16.mxu0 0
    %373 = vmatpush1.bf16.xpose.msra.mxu0 0
    %374 = vmatprep.subr.bf16.mxu0 0
    %375 = vmatpush1.bf16.xpose.msra.mxu0 0
    %376 = vmatprep.subr.bf16.mxu0 0
    %377 = vmatpush1.bf16.xpose.msra.mxu0 0
    %378 = vmatprep.subr.bf16.mxu0 0
    %379 = vmatpush1.bf16.xpose.msra.mxu0 0
    %380 = vmatprep.subr.bf16.mxu0 0
    %381 = vmatpush1.bf16.xpose.msra.mxu0 0
    %382 = vmatprep.subr.bf16.mxu0 0
    %383 = vmatpush1.bf16.xpose.msra.mxu0 0
    %384 = vmatprep.subr.bf16.mxu0 0
    %385 = vmatpush1.bf16.xpose.msra.mxu0 0
    %386 = vmatprep.subr.bf16.mxu0 0
    %387 = vmatpush1.bf16.xpose.msra.mxu0 0
    %388 = vmatprep.subr.bf16.mxu0 0
    %389 = vmatpush1.bf16.xpose.msra.mxu0 0
    %390 = vmatprep.subr.bf16.mxu0 0
    %391 = vmatpush1.bf16.xpose.msra.mxu0 0
    %392 = vmatprep.mubr.bf16.mxu0 0
    %393 = vmatmul.mubr.bf16.gmra.mrb[0].mxu0 %v355
    %v394 = vpop.f32.mrb[0].mxu0
    %v395 = vadd.f32 %v179, %v394
    %v396 = vpop.f32.mrb[0].mxu0
    %v397 = vpop.f32.mrb[0].mxu0
    %v398 = vpop.f32.mrb[0].mxu0
    %399 = vdwg.mxu0
    %401 = vrot.lane.b32.xlu0 %v295, 96
    %v402 = vpop.permute.xlu0 %401
    %v404 = vsel %vm304, %v267, 0
    %v407 = vsel %vm304, %v402, 0
    %409 = vmatprep.subr.bf16.mxu0 0
    %410 = vmatpush1.bf16.xpose.msra.mxu0 %v407
    %411 = vmatprep.subr.bf16.mxu0 0
    %412 = vmatpush1.bf16.xpose.msra.mxu0 0
    %413 = vmatprep.subr.bf16.mxu0 0
    %414 = vmatpush1.bf16.xpose.msra.mxu0 0
    %415 = vmatprep.subr.bf16.mxu0 0
    %416 = vmatpush1.bf16.xpose.msra.mxu0 0
    %417 = vmatprep.subr.bf16.mxu0 0
    %418 = vmatpush1.bf16.xpose.msra.mxu0 0
    %419 = vmatprep.subr.bf16.mxu0 0
    %420 = vmatpush1.bf16.xpose.msra.mxu0 0
    %421 = vmatprep.subr.bf16.mxu0 0
    %422 = vmatpush1.bf16.xpose.msra.mxu0 0
    %423 = vmatprep.subr.bf16.mxu0 0
    %424 = vmatpush1.bf16.xpose.msra.mxu0 0
    %425 = vmatprep.subr.bf16.mxu0 0
    %426 = vmatpush1.bf16.xpose.msra.mxu0 0
    %427 = vmatprep.subr.bf16.mxu0 0
    %428 = vmatpush1.bf16.xpose.msra.mxu0 0
    %429 = vmatprep.subr.bf16.mxu0 0
    %430 = vmatpush1.bf16.xpose.msra.mxu0 0
    %431 = vmatprep.subr.bf16.mxu0 0
    %432 = vmatpush1.bf16.xpose.msra.mxu0 0
    %433 = vmatprep.subr.bf16.mxu0 0
    %434 = vmatpush1.bf16.xpose.msra.mxu0 0
    %435 = vmatprep.subr.bf16.mxu0 0
    %436 = vmatpush1.bf16.xpose.msra.mxu0 0
    %437 = vmatprep.subr.bf16.mxu0 0
    %438 = vmatpush1.bf16.xpose.msra.mxu0 0
    %439 = vmatprep.subr.bf16.mxu0 0
    %440 = vmatpush1.bf16.xpose.msra.mxu0 0
    %441 = vmatprep.mubr.bf16.mxu0 0
    %442 = vmatmul.mubr.bf16.gmra.mrb[0].mxu0 %v404
    %v443 = vpop.f32.mrb[0].mxu0
    %v444 = vadd.f32 %v175, %v443
    %v445 = vpop.f32.mrb[0].mxu0
    %v446 = vpop.f32.mrb[0].mxu0
    %v447 = vpop.f32.mrb[0].mxu0
    %448 = vdwg.mxu0
    %450 = vrot.lane.b32.xlu0 %v296, 96
    %v451 = vpop.permute.xlu0 %450
    %v453 = vsel %vm304, %v268, 0
    %v456 = vsel %vm304, %v451, 0
    %458 = vmatprep.subr.bf16.mxu0 0
    %459 = vmatpush1.bf16.xpose.msra.mxu0 %v456
    %460 = vmatprep.subr.bf16.mxu0 0
    %461 = vmatpush1.bf16.xpose.msra.mxu0 0
    %462 = vmatprep.subr.bf16.mxu0 0
    %463 = vmatpush1.bf16.xpose.msra.mxu0 0
    %464 = vmatprep.subr.bf16.mxu0 0
    %465 = vmatpush1.bf16.xpose.msra.mxu0 0
    %466 = vmatprep.subr.bf16.mxu0 0
    %467 = vmatpush1.bf16.xpose.msra.mxu0 0
    %468 = vmatprep.subr.bf16.mxu0 0
    %469 = vmatpush1.bf16.xpose.msra.mxu0 0
    %470 = vmatprep.subr.bf16.mxu0 0
    %471 = vmatpush1.bf16.xpose.msra.mxu0 0
    %472 = vmatprep.subr.bf16.mxu0 0
    %473 = vmatpush1.bf16.xpose.msra.mxu0 0
    %474 = vmatprep.subr.bf16.mxu0 0
    %475 = vmatpush1.bf16.xpose.msra.mxu0 0
    %476 = vmatprep.subr.bf16.mxu0 0
    %477 = vmatpush1.bf16.xpose.msra.mxu0 0
    %478 = vmatprep.subr.bf16.mxu0 0
    %479 = vmatpush1.bf16.xpose.msra.mxu0 0
    %480 = vmatprep.subr.bf16.mxu0 0
    %481 = vmatpush1.bf16.xpose.msra.mxu0 0
    %482 = vmatprep.subr.bf16.mxu0 0
    %483 = vmatpush1.bf16.xpose.msra.mxu0 0
    %484 = vmatprep.subr.bf16.mxu0 0
    %485 = vmatpush1.bf16.xpose.msra.mxu0 0
    %486 = vmatprep.subr.bf16.mxu0 0
    %487 = vmatpush1.bf16.xpose.msra.mxu0 0
    %488 = vmatprep.subr.bf16.mxu0 0
    %489 = vmatpush1.bf16.xpose.msra.mxu0 0
    %490 = vmatprep.mubr.bf16.mxu0 0
    %491 = vmatmul.mubr.bf16.gmra.mrb[0].mxu0 %v453
    %v492 = vpop.f32.mrb[0].mxu0
    %v493 = vadd.f32 %v179, %v492
    %v494 = vpop.f32.mrb[0].mxu0
    %v495 = vpop.f32.mrb[0].mxu0
    %v496 = vpop.f32.mrb[0].mxu0
    %497 = vdwg.mxu0
    %499 = vrot.lane.b32.xlu0 %v297, 96
    %v500 = vpop.permute.xlu0 %499
    %v502 = vsel %vm304, %v269, 0
    %v505 = vsel %vm304, %v500, 0
    %507 = vmatprep.subr.bf16.mxu0 0
    %508 = vmatpush1.bf16.xpose.msra.mxu0 %v505
    %509 = vmatprep.subr.bf16.mxu0 0
    %510 = vmatpush1.bf16.xpose.msra.mxu0 0
    %511 = vmatprep.subr.bf16.mxu0 0
    %512 = vmatpush1.bf16.xpose.msra.mxu0 0
    %513 = vmatprep.subr.bf16.mxu0 0
    %514 = vmatpush1.bf16.xpose.msra.mxu0 0
    %515 = vmatprep.subr.bf16.mxu0 0
    %516 = vmatpush1.bf16.xpose.msra.mxu0 0
    %517 = vmatprep.subr.bf16.mxu0 0
    %518 = vmatpush1.bf16.xpose.msra.mxu0 0
    %519 = vmatprep.subr.bf16.mxu0 0
    %520 = vmatpush1.bf16.xpose.msra.mxu0 0
    %521 = vmatprep.subr.bf16.mxu0 0
    %522 = vmatpush1.bf16.xpose.msra.mxu0 0
    %523 = vmatprep.subr.bf16.mxu0 0
    %524 = vmatpush1.bf16.xpose.msra.mxu0 0
    %525 = vmatprep.subr.bf16.mxu0 0
    %526 = vmatpush1.bf16.xpose.msra.mxu0 0
    %527 = vmatprep.subr.bf16.mxu0 0
    %528 = vmatpush1.bf16.xpose.msra.mxu0 0
    %529 = vmatprep.subr.bf16.mxu0 0
    %530 = vmatpush1.bf16.xpose.msra.mxu0 0
    %531 = vmatprep.subr.bf16.mxu0 0
    %532 = vmatpush1.bf16.xpose.msra.mxu0 0
    %533 = vmatprep.subr.bf16.mxu0 0
    %534 = vmatpush1.bf16.xpose.msra.mxu0 0
    %535 = vmatprep.subr.bf16.mxu0 0
    %536 = vmatpush1.bf16.xpose.msra.mxu0 0
    %537 = vmatprep.subr.bf16.mxu0 0
    %538 = vmatpush1.bf16.xpose.msra.mxu0 0
    %539 = vmatprep.mubr.bf16.mxu0 0
    %540 = vmatmul.mubr.bf16.gmra.mrb[0].mxu0 %v502
    %v541 = vpop.f32.mrb[0].mxu0
    %v542 = vadd.f32 %v175, %v541
    %v543 = vpop.f32.mrb[0].mxu0
    %v544 = vpop.f32.mrb[0].mxu0
    %v545 = vpop.f32.mrb[0].mxu0
    %546 = vdwg.mxu0
    %548 = vrot.lane.b32.xlu0 %v298, 96
    %v549 = vpop.permute.xlu0 %548
    %v551 = vsel %vm304, %v270, 0
    %v554 = vsel %vm304, %v549, 0
    %556 = vmatprep.subr.bf16.mxu0 0
    %557 = vmatpush1.bf16.xpose.msra.mxu0 %v554
    %558 = vmatprep.subr.bf16.mxu0 0
    %559 = vmatpush1.bf16.xpose.msra.mxu0 0
    %560 = vmatprep.subr.bf16.mxu0 0
    %561 = vmatpush1.bf16.xpose.msra.mxu0 0
    %562 = vmatprep.subr.bf16.mxu0 0
    %563 = vmatpush1.bf16.xpose.msra.mxu0 0
    %564 = vmatprep.subr.bf16.mxu0 0
    %565 = vmatpush1.bf16.xpose.msra.mxu0 0
    %566 = vmatprep.subr.bf16.mxu0 0
    %567 = vmatpush1.bf16.xpose.msra.mxu0 0
    %568 = vmatprep.subr.bf16.mxu0 0
    %569 = vmatpush1.bf16.xpose.msra.mxu0 0
    %570 = vmatprep.subr.bf16.mxu0 0
    %571 = vmatpush1.bf16.xpose.msra.mxu0 0
    %572 = vmatprep.subr.bf16.mxu0 0
    %573 = vmatpush1.bf16.xpose.msra.mxu0 0
    %574 = vmatprep.subr.bf16.mxu0 0
    %575 = vmatpush1.bf16.xpose.msra.mxu0 0
    %576 = vmatprep.subr.bf16.mxu0 0
    %577 = vmatpush1.bf16.xpose.msra.mxu0 0
    %578 = vmatprep.subr.bf16.mxu0 0
    %579 = vmatpush1.bf16.xpose.msra.mxu0 0
    %580 = vmatprep.subr.bf16.mxu0 0
    %581 = vmatpush1.bf16.xpose.msra.mxu0 0
    %582 = vmatprep.subr.bf16.mxu0 0
    %583 = vmatpush1.bf16.xpose.msra.mxu0 0
    %584 = vmatprep.subr.bf16.mxu0 0
    %585 = vmatpush1.bf16.xpose.msra.mxu0 0
    %586 = vmatprep.subr.bf16.mxu0 0
    %587 = vmatpush1.bf16.xpose.msra.mxu0 0
    %588 = vmatprep.mubr.bf16.mxu0 0
    %589 = vmatmul.mubr.bf16.gmra.mrb[0].mxu0 %v551
    %v590 = vpop.f32.mrb[0].mxu0
    %v591 = vadd.f32 %v179, %v590
    %v592 = vpop.f32.mrb[0].mxu0
    %v593 = vpop.f32.mrb[0].mxu0
    %v594 = vpop.f32.mrb[0].mxu0
    %595 = vdwg.mxu0
    %597 = vrot.lane.b32.xlu0 %v299, 96
    %v598 = vpop.permute.xlu0 %597
    %v600 = vsel %vm304, %v271, 0
    %v603 = vsel %vm304, %v598, 0
    %605 = vmatprep.subr.bf16.mxu0 0
    %606 = vmatpush1.bf16.xpose.msra.mxu0 %v603
    %607 = vmatprep.subr.bf16.mxu0 0
    %608 = vmatpush1.bf16.xpose.msra.mxu0 0
    %609 = vmatprep.subr.bf16.mxu0 0
    %610 = vmatpush1.bf16.xpose.msra.mxu0 0
    %611 = vmatprep.subr.bf16.mxu0 0
    %612 = vmatpush1.bf16.xpose.msra.mxu0 0
    %613 = vmatprep.subr.bf16.mxu0 0
    %614 = vmatpush1.bf16.xpose.msra.mxu0 0
    %615 = vmatprep.subr.bf16.mxu0 0
    %616 = vmatpush1.bf16.xpose.msra.mxu0 0
    %617 = vmatprep.subr.bf16.mxu0 0
    %618 = vmatpush1.bf16.xpose.msra.mxu0 0
    %619 = vmatprep.subr.bf16.mxu0 0
    %620 = vmatpush1.bf16.xpose.msra.mxu0 0
    %621 = vmatprep.subr.bf16.mxu0 0
    %622 = vmatpush1.bf16.xpose.msra.mxu0 0
    %623 = vmatprep.subr.bf16.mxu0 0
    %624 = vmatpush1.bf16.xpose.msra.mxu0 0
    %625 = vmatprep.subr.bf16.mxu0 0
    %626 = vmatpush1.bf16.xpose.msra.mxu0 0
    %627 = vmatprep.subr.bf16.mxu0 0
    %628 = vmatpush1.bf16.xpose.msra.mxu0 0
    %629 = vmatprep.subr.bf16.mxu0 0
    %630 = vmatpush1.bf16.xpose.msra.mxu0 0
    %631 = vmatprep.subr.bf16.mxu0 0
    %632 = vmatpush1.bf16.xpose.msra.mxu0 0
    %633 = vmatprep.subr.bf16.mxu0 0
    %634 = vmatpush1.bf16.xpose.msra.mxu0 0
    %635 = vmatprep.subr.bf16.mxu0 0
    %636 = vmatpush1.bf16.xpose.msra.mxu0 0
    %637 = vmatprep.mubr.bf16.mxu0 0
    %638 = vmatmul.mubr.bf16.gmra.mrb[0].mxu0 %v600
    %v639 = vpop.f32.mrb[0].mxu0
    %v640 = vadd.f32 %v175, %v639
    %v641 = vpop.f32.mrb[0].mxu0
    %v642 = vpop.f32.mrb[0].mxu0
    %v643 = vpop.f32.mrb[0].mxu0
    %644 = vdwg.mxu0
    %646 = vrot.lane.b32.xlu0 %v300, 96
    %v647 = vpop.permute.xlu0 %646
    %v649 = vsel %vm304, %v272, 0
    %v652 = vsel %vm304, %v647, 0
    %654 = vmatprep.subr.bf16.mxu0 0
    %655 = vmatpush1.bf16.xpose.msra.mxu0 %v652
    %656 = vmatprep.subr.bf16.mxu0 0
    %657 = vmatpush1.bf16.xpose.msra.mxu0 0
    %658 = vmatprep.subr.bf16.mxu0 0
    %659 = vmatpush1.bf16.xpose.msra.mxu0 0
    %660 = vmatprep.subr.bf16.mxu0 0
    %661 = vmatpush1.bf16.xpose.msra.mxu0 0
    %662 = vmatprep.subr.bf16.mxu0 0
    %663 = vmatpush1.bf16.xpose.msra.mxu0 0
    %664 = vmatprep.subr.bf16.mxu0 0
    %665 = vmatpush1.bf16.xpose.msra.mxu0 0
    %666 = vmatprep.subr.bf16.mxu0 0
    %667 = vmatpush1.bf16.xpose.msra.mxu0 0
    %668 = vmatprep.subr.bf16.mxu0 0
    %669 = vmatpush1.bf16.xpose.msra.mxu0 0
    %670 = vmatprep.subr.bf16.mxu0 0
    %671 = vmatpush1.bf16.xpose.msra.mxu0 0
    %672 = vmatprep.subr.bf16.mxu0 0
    %673 = vmatpush1.bf16.xpose.msra.mxu0 0
    %674 = vmatprep.subr.bf16.mxu0 0
    %675 = vmatpush1.bf16.xpose.msra.mxu0 0
    %676 = vmatprep.subr.bf16.mxu0 0
    %677 = vmatpush1.bf16.xpose.msra.mxu0 0
    %678 = vmatprep.subr.bf16.mxu0 0
    %679 = vmatpush1.bf16.xpose.msra.mxu0 0
    %680 = vmatprep.subr.bf16.mxu0 0
    %681 = vmatpush1.bf16.xpose.msra.mxu0 0
    %682 = vmatprep.subr.bf16.mxu0 0
    %683 = vmatpush1.bf16.xpose.msra.mxu0 0
    %684 = vmatprep.subr.bf16.mxu0 0
    %685 = vmatpush1.bf16.xpose.msra.mxu0 0
    %686 = vmatprep.mubr.bf16.mxu0 0
    %687 = vmatmul.mubr.bf16.gmra.mrb[0].mxu0 %v649
    %v688 = vpop.f32.mrb[0].mxu0
    %v689 = vadd.f32 %v179, %v688
    %v690 = vpop.f32.mrb[0].mxu0
    %v691 = vpop.f32.mrb[0].mxu0
    %v692 = vpop.f32.mrb[0].mxu0
    %693 = vdwg.mxu0
    %v694 = vsel %vm304, %v346, -inf
    %695 = vmax.xlane.f32.xlu0 %v694
    %v696 = vpop.xlane.xlu0 %695
    %v697 = vsel %vm304, %v395, -inf
    %698 = vmax.xlane.f32.xlu0 %v697
    %v699 = vpop.xlane.xlu0 %698
    %v700 = vsel %vm304, %v444, -inf
    %701 = vmax.xlane.f32.xlu0 %v700
    %v702 = vpop.xlane.xlu0 %701
    %v703 = vsel %vm304, %v493, -inf
    %704 = vmax.xlane.f32.xlu0 %v703
    %v705 = vpop.xlane.xlu0 %704
    %v706 = vsel %vm304, %v542, -inf
    %707 = vmax.xlane.f32.xlu0 %v706
    %v708 = vpop.xlane.xlu0 %707
    %v709 = vsel %vm304, %v591, -inf
    %710 = vmax.xlane.f32.xlu0 %v709
    %v711 = vpop.xlane.xlu0 %710
    %v712 = vsel %vm304, %v640, -inf
    %713 = vmax.xlane.f32.xlu0 %v712
    %v714 = vpop.xlane.xlu0 %713
    %v715 = vsel %vm304, %v689, -inf
    %716 = vmax.xlane.f32.xlu0 %v715
    %v717 = vpop.xlane.xlu0 %716
    %v718 = vsub.f32 %v346, %v696
    %v719 = vsub.f32 %v395, %v699
    %v720 = vsub.f32 %v444, %v702
    %v721 = vsub.f32 %v493, %v705
    %v722 = vsub.f32 %v542, %v708
    %v723 = vsub.f32 %v591, %v711
    %v724 = vsub.f32 %v640, %v714
    %v725 = vsub.f32 %v689, %v717
    %v726 = vmul.f32 %v718, 1.442695
    %v727 = vpow.pop %v726
    %v728 = vmul.f32 %v719, 1.442695
    %v729 = vpow.pop %v728
    %v730 = vmul.f32 %v720, 1.442695
    %v731 = vpow.pop %v730
    %v732 = vmul.f32 %v721, 1.442695
    %v733 = vpow.pop %v732
    %v734 = vmul.f32 %v722, 1.442695
    %v735 = vpow.pop %v734
    %v736 = vmul.f32 %v723, 1.442695
    %v737 = vpow.pop %v736
    %v738 = vmul.f32 %v724, 1.442695
    %v739 = vpow.pop %v738
    %v740 = vmul.f32 %v725, 1.442695
    %v741 = vpow.pop %v740
    %v742 = vsel %vm304, %v727, 0.0
    %743 = vadd.xlane.f32.xlu0 %v742
    %v744 = vpop.xlane.xlu0 %743
    %v745 = vsel %vm304, %v729, 0.0
    %746 = vadd.xlane.f32.xlu0 %v745
    %v747 = vpop.xlane.xlu0 %746
    %v748 = vsel %vm304, %v731, 0.0
    %749 = vadd.xlane.f32.xlu0 %v748
    %v750 = vpop.xlane.xlu0 %749
    %v751 = vsel %vm304, %v733, 0.0
    %752 = vadd.xlane.f32.xlu0 %v751
    %v753 = vpop.xlane.xlu0 %752
    %v754 = vsel %vm304, %v735, 0.0
    %755 = vadd.xlane.f32.xlu0 %v754
    %v756 = vpop.xlane.xlu0 %755
    %v757 = vsel %vm304, %v737, 0.0
    %758 = vadd.xlane.f32.xlu0 %v757
    %v759 = vpop.xlane.xlu0 %758
    %v760 = vsel %vm304, %v739, 0.0
    %761 = vadd.xlane.f32.xlu0 %v760
    %v762 = vpop.xlane.xlu0 %761
    %v763 = vsel %vm304, %v741, 0.0
    %764 = vadd.xlane.f32.xlu0 %v763
    %v765 = vpop.xlane.xlu0 %764
    %v766 = vrcp.pop %v744
    %v767 = vmul.f32 1.0, %v766
    %v768 = vrcp.pop %v747
    %v769 = vmul.f32 1.0, %v768
    %v770 = vrcp.pop %v750
    %v771 = vmul.f32 1.0, %v770
    %v772 = vrcp.pop %v753
    %v773 = vmul.f32 1.0, %v772
    %v774 = vrcp.pop %v756
    %v775 = vmul.f32 1.0, %v774
    %v776 = vrcp.pop %v759
    %v777 = vmul.f32 1.0, %v776
    %v778 = vrcp.pop %v762
    %v779 = vmul.f32 1.0, %v778
    %v780 = vrcp.pop %v765
    %v781 = vmul.f32 1.0, %v780
    %v782 = vmul.f32 %v727, %v767
    %v783 = vmul.f32 %v729, %v769
    %v784 = vmul.f32 %v731, %v771
    %v785 = vmul.f32 %v733, %v773
    %v786 = vmul.f32 %v735, %v775
    %v787 = vmul.f32 %v737, %v777
    %v788 = vmul.f32 %v739, %v779
    %v789 = vmul.f32 %v741, %v781
    %v790 = vpack.c.bf16 %v782, %v782
    %v791 = vpack.c.bf16 %v783, %v783
    %v792 = vpack.c.bf16 %v784, %v784
    %v793 = vpack.c.bf16 %v785, %v785
    %v794 = vpack.c.bf16 %v786, %v786
    %v795 = vpack.c.bf16 %v787, %v787
    %v796 = vpack.c.bf16 %v788, %v788
    %v797 = vpack.c.bf16 %v789, %v789
    %798 = vrot.lane.b32.xlu0 %v293, 64
    %v799 = vpop.permute.xlu0 %798
    %v801 = vsel %vm304, %v790, 0
    %vm803 = vcmask 1043456
    %v805 = vsel %vm803, %v799, 0
    %807 = vmatprep.subr.bf16.mxu0 0
    %808 = vmatpush1.bf16.msra.mxu0 %v805
    %809 = vmatprep.subr.bf16.mxu0 0
    %810 = vmatpush1.bf16.msra.mxu0 0
    %811 = vmatprep.subr.bf16.mxu0 0
    %812 = vmatpush1.bf16.msra.mxu0 0
    %813 = vmatprep.subr.bf16.mxu0 0
    %814 = vmatpush1.bf16.msra.mxu0 0
    %815 = vmatprep.subr.bf16.mxu0 0
    %816 = vmatpush1.bf16.msra.mxu0 0
    %817 = vmatprep.subr.bf16.mxu0 0
    %818 = vmatpush1.bf16.msra.mxu0 0
    %819 = vmatprep.subr.bf16.mxu0 0
    %820 = vmatpush1.bf16.msra.mxu0 0
    %821 = vmatprep.subr.bf16.mxu0 0
    %822 = vmatpush1.bf16.msra.mxu0 0
    %823 = vmatprep.subr.bf16.mxu0 0
    %824 = vmatpush1.bf16.msra.mxu0 0
    %825 = vmatprep.subr.bf16.mxu0 0
    %826 = vmatpush1.bf16.msra.mxu0 0
    %827 = vmatprep.subr.bf16.mxu0 0
    %828 = vmatpush1.bf16.msra.mxu0 0
    %829 = vmatprep.subr.bf16.mxu0 0
    %830 = vmatpush1.bf16.msra.mxu0 0
    %831 = vmatprep.subr.bf16.mxu0 0
    %832 = vmatpush1.bf16.msra.mxu0 0
    %833 = vmatprep.subr.bf16.mxu0 0
    %834 = vmatpush1.bf16.msra.mxu0 0
    %835 = vmatprep.subr.bf16.mxu0 0
    %836 = vmatpush1.bf16.msra.mxu0 0
    %837 = vmatprep.subr.bf16.mxu0 0
    %838 = vmatpush1.bf16.msra.mxu0 0
    %839 = vmatprep.mubr.bf16.mxu0 0
    %840 = vmatmul.mubr.bf16.gmra.mrb[0].mxu0 %v801
    %v841 = vpop.f32.mrb[0].mxu0
    %v842 = vadd.f32 0.0, %v841
    %v843 = vpop.f32.mrb[0].mxu0
    %v844 = vpop.f32.mrb[0].mxu0
    %v845 = vpop.f32.mrb[0].mxu0
    %846 = vdwg.mxu0
    %847 = vrot.lane.b32.xlu0 %v294, 64
    %v848 = vpop.permute.xlu0 %847
    %v850 = vsel %vm304, %v791, 0
    %v853 = vsel %vm803, %v848, 0
    %855 = vmatprep.subr.bf16.mxu0 0
    %856 = vmatpush1.bf16.msra.mxu0 %v853
    %857 = vmatprep.subr.bf16.mxu0 0
    %858 = vmatpush1.bf16.msra.mxu0 0
    %859 = vmatprep.subr.bf16.mxu0 0
    %860 = vmatpush1.bf16.msra.mxu0 0
    %861 = vmatprep.subr.bf16.mxu0 0
    %862 = vmatpush1.bf16.msra.mxu0 0
    %863 = vmatprep.subr.bf16.mxu0 0
    %864 = vmatpush1.bf16.msra.mxu0 0
    %865 = vmatprep.subr.bf16.mxu0 0
    %866 = vmatpush1.bf16.msra.mxu0 0
    %867 = vmatprep.subr.bf16.mxu0 0
    %868 = vmatpush1.bf16.msra.mxu0 0
    %869 = vmatprep.subr.bf16.mxu0 0
    %870 = vmatpush1.bf16.msra.mxu0 0
    %871 = vmatprep.subr.bf16.mxu0 0
    %872 = vmatpush1.bf16.msra.mxu0 0
    %873 = vmatprep.subr.bf16.mxu0 0
    %874 = vmatpush1.bf16.msra.mxu0 0
    %875 = vmatprep.subr.bf16.mxu0 0
    %876 = vmatpush1.bf16.msra.mxu0 0
    %877 = vmatprep.subr.bf16.mxu0 0
    %878 = vmatpush1.bf16.msra.mxu0 0
    %879 = vmatprep.subr.bf16.mxu0 0
    %880 = vmatpush1.bf16.msra.mxu0 0
    %881 = vmatprep.subr.bf16.mxu0 0
    %882 = vmatpush1.bf16.msra.mxu0 0
    %883 = vmatprep.subr.bf16.mxu0 0
    %884 = vmatpush1.bf16.msra.mxu0 0
    %885 = vmatprep.subr.bf16.mxu0 0
    %886 = vmatpush1.bf16.msra.mxu0 0
    %887 = vmatprep.mubr.bf16.mxu0 0
    %888 = vmatmul.mubr.bf16.gmra.mrb[0].mxu0 %v850
    %v889 = vpop.f32.mrb[0].mxu0
    %v890 = vadd.f32 0.0, %v889
    %v891 = vpop.f32.mrb[0].mxu0
    %v892 = vpop.f32.mrb[0].mxu0
    %v893 = vpop.f32.mrb[0].mxu0
    %894 = vdwg.mxu0
    %895 = vrot.lane.b32.xlu0 %v295, 64
    %v896 = vpop.permute.xlu0 %895
    %v898 = vsel %vm304, %v792, 0
    %v901 = vsel %vm803, %v896, 0
    %903 = vmatprep.subr.bf16.mxu0 0
    %904 = vmatpush1.bf16.msra.mxu0 %v901
    %905 = vmatprep.subr.bf16.mxu0 0
    %906 = vmatpush1.bf16.msra.mxu0 0
    %907 = vmatprep.subr.bf16.mxu0 0
    %908 = vmatpush1.bf16.msra.mxu0 0
    %909 = vmatprep.subr.bf16.mxu0 0
    %910 = vmatpush1.bf16.msra.mxu0 0
    %911 = vmatprep.subr.bf16.mxu0 0
    %912 = vmatpush1.bf16.msra.mxu0 0
    %913 = vmatprep.subr.bf16.mxu0 0
    %914 = vmatpush1.bf16.msra.mxu0 0
    %915 = vmatprep.subr.bf16.mxu0 0
    %916 = vmatpush1.bf16.msra.mxu0 0
    %917 = vmatprep.subr.bf16.mxu0 0
    %918 = vmatpush1.bf16.msra.mxu0 0
    %919 = vmatprep.subr.bf16.mxu0 0
    %920 = vmatpush1.bf16.msra.mxu0 0
    %921 = vmatprep.subr.bf16.mxu0 0
    %922 = vmatpush1.bf16.msra.mxu0 0
    %923 = vmatprep.subr.bf16.mxu0 0
    %924 = vmatpush1.bf16.msra.mxu0 0
    %925 = vmatprep.subr.bf16.mxu0 0
    %926 = vmatpush1.bf16.msra.mxu0 0
    %927 = vmatprep.subr.bf16.mxu0 0
    %928 = vmatpush1.bf16.msra.mxu0 0
    %929 = vmatprep.subr.bf16.mxu0 0
    %930 = vmatpush1.bf16.msra.mxu0 0
    %931 = vmatprep.subr.bf16.mxu0 0
    %932 = vmatpush1.bf16.msra.mxu0 0
    %933 = vmatprep.subr.bf16.mxu0 0
    %934 = vmatpush1.bf16.msra.mxu0 0
    %935 = vmatprep.mubr.bf16.mxu0 0
    %936 = vmatmul.mubr.bf16.gmra.mrb[0].mxu0 %v898
    %v937 = vpop.f32.mrb[0].mxu0
    %v938 = vadd.f32 0.0, %v937
    %v939 = vpop.f32.mrb[0].mxu0
    %v940 = vpop.f32.mrb[0].mxu0
    %v941 = vpop.f32.mrb[0].mxu0
    %942 = vdwg.mxu0
    %943 = vrot.lane.b32.xlu0 %v296, 64
    %v944 = vpop.permute.xlu0 %943
    %v946 = vsel %vm304, %v793, 0
    %v949 = vsel %vm803, %v944, 0
    %951 = vmatprep.subr.bf16.mxu0 0
    %952 = vmatpush1.bf16.msra.mxu0 %v949
    %953 = vmatprep.subr.bf16.mxu0 0
    %954 = vmatpush1.bf16.msra.mxu0 0
    %955 = vmatprep.subr.bf16.mxu0 0
    %956 = vmatpush1.bf16.msra.mxu0 0
    %957 = vmatprep.subr.bf16.mxu0 0
    %958 = vmatpush1.bf16.msra.mxu0 0
    %959 = vmatprep.subr.bf16.mxu0 0
    %960 = vmatpush1.bf16.msra.mxu0 0
    %961 = vmatprep.subr.bf16.mxu0 0
    %962 = vmatpush1.bf16.msra.mxu0 0
    %963 = vmatprep.subr.bf16.mxu0 0
    %964 = vmatpush1.bf16.msra.mxu0 0
    %965 = vmatprep.subr.bf16.mxu0 0
    %966 = vmatpush1.bf16.msra.mxu0 0
    %967 = vmatprep.subr.bf16.mxu0 0
    %968 = vmatpush1.bf16.msra.mxu0 0
    %969 = vmatprep.subr.bf16.mxu0 0
    %970 = vmatpush1.bf16.msra.mxu0 0
    %971 = vmatprep.subr.bf16.mxu0 0
    %972 = vmatpush1.bf16.msra.mxu0 0
    %973 = vmatprep.subr.bf16.mxu0 0
    %974 = vmatpush1.bf16.msra.mxu0 0
    %975 = vmatprep.subr.bf16.mxu0 0
    %976 = vmatpush1.bf16.msra.mxu0 0
    %977 = vmatprep.subr.bf16.mxu0 0
    %978 = vmatpush1.bf16.msra.mxu0 0
    %979 = vmatprep.subr.bf16.mxu0 0
    %980 = vmatpush1.bf16.msra.mxu0 0
    %981 = vmatprep.subr.bf16.mxu0 0
    %982 = vmatpush1.bf16.msra.mxu0 0
    %983 = vmatprep.mubr.bf16.mxu0 0
    %984 = vmatmul.mubr.bf16.gmra.mrb[0].mxu0 %v946
    %v985 = vpop.f32.mrb[0].mxu0
    %v986 = vadd.f32 0.0, %v985
    %v987 = vpop.f32.mrb[0].mxu0
    %v988 = vpop.f32.mrb[0].mxu0
    %v989 = vpop.f32.mrb[0].mxu0
    %990 = vdwg.mxu0
    %991 = vrot.lane.b32.xlu0 %v297, 64
    %v992 = vpop.permute.xlu0 %991
    %v994 = vsel %vm304, %v794, 0
    %v997 = vsel %vm803, %v992, 0
    %999 = vmatprep.subr.bf16.mxu0 0
    %1000 = vmatpush1.bf16.msra.mxu0 %v997
    %1001 = vmatprep.subr.bf16.mxu0 0
    %1002 = vmatpush1.bf16.msra.mxu0 0
    %1003 = vmatprep.subr.bf16.mxu0 0
    %1004 = vmatpush1.bf16.msra.mxu0 0
    %1005 = vmatprep.subr.bf16.mxu0 0
    %1006 = vmatpush1.bf16.msra.mxu0 0
    %1007 = vmatprep.subr.bf16.mxu0 0
    %1008 = vmatpush1.bf16.msra.mxu0 0
    %1009 = vmatprep.subr.bf16.mxu0 0
    %1010 = vmatpush1.bf16.msra.mxu0 0
    %1011 = vmatprep.subr.bf16.mxu0 0
    %1012 = vmatpush1.bf16.msra.mxu0 0
    %1013 = vmatprep.subr.bf16.mxu0 0
    %1014 = vmatpush1.bf16.msra.mxu0 0
    %1015 = vmatprep.subr.bf16.mxu0 0
    %1016 = vmatpush1.bf16.msra.mxu0 0
    %1017 = vmatprep.subr.bf16.mxu0 0
    %1018 = vmatpush1.bf16.msra.mxu0 0
    %1019 = vmatprep.subr.bf16.mxu0 0
    %1020 = vmatpush1.bf16.msra.mxu0 0
    %1021 = vmatprep.subr.bf16.mxu0 0
    %1022 = vmatpush1.bf16.msra.mxu0 0
    %1023 = vmatprep.subr.bf16.mxu0 0
    %1024 = vmatpush1.bf16.msra.mxu0 0
    %1025 = vmatprep.subr.bf16.mxu0 0
    %1026 = vmatpush1.bf16.msra.mxu0 0
    %1027 = vmatprep.subr.bf16.mxu0 0
    %1028 = vmatpush1.bf16.msra.mxu0 0
    %1029 = vmatprep.subr.bf16.mxu0 0
    %1030 = vmatpush1.bf16.msra.mxu0 0
    %1031 = vmatprep.mubr.bf16.mxu0 0
    %1032 = vmatmul.mubr.bf16.gmra.mrb[0].mxu0 %v994
    %v1033 = vpop.f32.mrb[0].mxu0
    %v1034 = vadd.f32 0.0, %v1033
    %v1035 = vpop.f32.mrb[0].mxu0
    %v1036 = vpop.f32.mrb[0].mxu0
    %v1037 = vpop.f32.mrb[0].mxu0
    %1038 = vdwg.mxu0
    %1039 = vrot.lane.b32.xlu0 %v298, 64
    %v1040 = vpop.permute.xlu0 %1039
    %v1042 = vsel %vm304, %v795, 0
    %v1045 = vsel %vm803, %v1040, 0
    %1047 = vmatprep.subr.bf16.mxu0 0
    %1048 = vmatpush1.bf16.msra.mxu0 %v1045
    %1049 = vmatprep.subr.bf16.mxu0 0
    %1050 = vmatpush1.bf16.msra.mxu0 0
    %1051 = vmatprep.subr.bf16.mxu0 0
    %1052 = vmatpush1.bf16.msra.mxu0 0
    %1053 = vmatprep.subr.bf16.mxu0 0
    %1054 = vmatpush1.bf16.msra.mxu0 0
    %1055 = vmatprep.subr.bf16.mxu0 0
    %1056 = vmatpush1.bf16.msra.mxu0 0
    %1057 = vmatprep.subr.bf16.mxu0 0
    %1058 = vmatpush1.bf16.msra.mxu0 0
    %1059 = vmatprep.subr.bf16.mxu0 0
    %1060 = vmatpush1.bf16.msra.mxu0 0
    %1061 = vmatprep.subr.bf16.mxu0 0
    %1062 = vmatpush1.bf16.msra.mxu0 0
    %1063 = vmatprep.subr.bf16.mxu0 0
    %1064 = vmatpush1.bf16.msra.mxu0 0
    %1065 = vmatprep.subr.bf16.mxu0 0
    %1066 = vmatpush1.bf16.msra.mxu0 0
    %1067 = vmatprep.subr.bf16.mxu0 0
    %1068 = vmatpush1.bf16.msra.mxu0 0
    %1069 = vmatprep.subr.bf16.mxu0 0
    %1070 = vmatpush1.bf16.msra.mxu0 0
    %1071 = vmatprep.subr.bf16.mxu0 0
    %1072 = vmatpush1.bf16.msra.mxu0 0
    %1073 = vmatprep.subr.bf16.mxu0 0
    %1074 = vmatpush1.bf16.msra.mxu0 0
    %1075 = vmatprep.subr.bf16.mxu0 0
    %1076 = vmatpush1.bf16.msra.mxu0 0
    %1077 = vmatprep.subr.bf16.mxu0 0
    %1078 = vmatpush1.bf16.msra.mxu0 0
    %1079 = vmatprep.mubr.bf16.mxu0 0
    %1080 = vmatmul.mubr.bf16.gmra.mrb[0].mxu0 %v1042
    %v1081 = vpop.f32.mrb[0].mxu0
    %v1082 = vadd.f32 0.0, %v1081
    %v1083 = vpop.f32.mrb[0].mxu0
    %v1084 = vpop.f32.mrb[0].mxu0
    %v1085 = vpop.f32.mrb[0].mxu0
    %1086 = vdwg.mxu0
    %1087 = vrot.lane.b32.xlu0 %v299, 64
    %v1088 = vpop.permute.xlu0 %1087
    %v1090 = vsel %vm304, %v796, 0
    %v1093 = vsel %vm803, %v1088, 0
    %1095 = vmatprep.subr.bf16.mxu0 0
    %1096 = vmatpush1.bf16.msra.mxu0 %v1093
    %1097 = vmatprep.subr.bf16.mxu0 0
    %1098 = vmatpush1.bf16.msra.mxu0 0
    %1099 = vmatprep.subr.bf16.mxu0 0
    %1100 = vmatpush1.bf16.msra.mxu0 0
    %1101 = vmatprep.subr.bf16.mxu0 0
    %1102 = vmatpush1.bf16.msra.mxu0 0
    %1103 = vmatprep.subr.bf16.mxu0 0
    %1104 = vmatpush1.bf16.msra.mxu0 0
    %1105 = vmatprep.subr.bf16.mxu0 0
    %1106 = vmatpush1.bf16.msra.mxu0 0
    %1107 = vmatprep.subr.bf16.mxu0 0
    %1108 = vmatpush1.bf16.msra.mxu0 0
    %1109 = vmatprep.subr.bf16.mxu0 0
    %1110 = vmatpush1.bf16.msra.mxu0 0
    %1111 = vmatprep.subr.bf16.mxu0 0
    %1112 = vmatpush1.bf16.msra.mxu0 0
    %1113 = vmatprep.subr.bf16.mxu0 0
    %1114 = vmatpush1.bf16.msra.mxu0 0
    %1115 = vmatprep.subr.bf16.mxu0 0
    %1116 = vmatpush1.bf16.msra.mxu0 0
    %1117 = vmatprep.subr.bf16.mxu0 0
    %1118 = vmatpush1.bf16.msra.mxu0 0
    %1119 = vmatprep.subr.bf16.mxu0 0
    %1120 = vmatpush1.bf16.msra.mxu0 0
    %1121 = vmatprep.subr.bf16.mxu0 0
    %1122 = vmatpush1.bf16.msra.mxu0 0
    %1123 = vmatprep.subr.bf16.mxu0 0
    %1124 = vmatpush1.bf16.msra.mxu0 0
    %1125 = vmatprep.subr.bf16.mxu0 0
    %1126 = vmatpush1.bf16.msra.mxu0 0
    %1127 = vmatprep.mubr.bf16.mxu0 0
    %1128 = vmatmul.mubr.bf16.gmra.mrb[0].mxu0 %v1090
    %v1129 = vpop.f32.mrb[0].mxu0
    %v1130 = vadd.f32 0.0, %v1129
    %v1131 = vpop.f32.mrb[0].mxu0
    %v1132 = vpop.f32.mrb[0].mxu0
    %v1133 = vpop.f32.mrb[0].mxu0
    %1134 = vdwg.mxu0
    %1135 = vrot.lane.b32.xlu0 %v300, 64
    %v1136 = vpop.permute.xlu0 %1135
    %v1138 = vsel %vm304, %v797, 0
    %v1141 = vsel %vm803, %v1136, 0
    %1143 = vmatprep.subr.bf16.mxu0 0
    %1144 = vmatpush1.bf16.msra.mxu0 %v1141
    %1145 = vmatprep.subr.bf16.mxu0 0
    %1146 = vmatpush1.bf16.msra.mxu0 0
    %1147 = vmatprep.subr.bf16.mxu0 0
    %1148 = vmatpush1.bf16.msra.mxu0 0
    %1149 = vmatprep.subr.bf16.mxu0 0
    %1150 = vmatpush1.bf16.msra.mxu0 0
    %1151 = vmatprep.subr.bf16.mxu0 0
    %1152 = vmatpush1.bf16.msra.mxu0 0
    %1153 = vmatprep.subr.bf16.mxu0 0
    %1154 = vmatpush1.bf16.msra.mxu0 0
    %1155 = vmatprep.subr.bf16.mxu0 0
    %1156 = vmatpush1.bf16.msra.mxu0 0
    %1157 = vmatprep.subr.bf16.mxu0 0
    %1158 = vmatpush1.bf16.msra.mxu0 0
    %1159 = vmatprep.subr.bf16.mxu0 0
    %1160 = vmatpush1.bf16.msra.mxu0 0
    %1161 = vmatprep.subr.bf16.mxu0 0
    %1162 = vmatpush1.bf16.msra.mxu0 0
    %1163 = vmatprep.subr.bf16.mxu0 0
    %1164 = vmatpush1.bf16.msra.mxu0 0
    %1165 = vmatprep.subr.bf16.mxu0 0
    %1166 = vmatpush1.bf16.msra.mxu0 0
    %1167 = vmatprep.subr.bf16.mxu0 0
    %1168 = vmatpush1.bf16.msra.mxu0 0
    %1169 = vmatprep.subr.bf16.mxu0 0
    %1170 = vmatpush1.bf16.msra.mxu0 0
    %1171 = vmatprep.subr.bf16.mxu0 0
    %1172 = vmatpush1.bf16.msra.mxu0 0
    %1173 = vmatprep.subr.bf16.mxu0 0
    %1174 = vmatpush1.bf16.msra.mxu0 0
    %1175 = vmatprep.mubr.bf16.mxu0 0
    %1176 = vmatmul.mubr.bf16.gmra.mrb[0].mxu0 %v1138
    %v1177 = vpop.f32.mrb[0].mxu0
    %v1178 = vadd.f32 0.0, %v1177
    %v1179 = vpop.f32.mrb[0].mxu0
    %v1180 = vpop.f32.mrb[0].mxu0
    %v1181 = vpop.f32.mrb[0].mxu0
    %1182 = vdwg.mxu0
    %1185 = vrot.lane.b32.xlu0 %v938, 8
    %v1186 = vpop.permute.xlu0 %1185
    %1187 = vrot.lane.b32.xlu0 %v986, 8
    %v1188 = vpop.permute.xlu0 %1187
    %1193 = vrot.lane.b32.xlu0 %v1034, 16
    %v1194 = vpop.permute.xlu0 %1193
    %1195 = vrot.lane.b32.xlu0 %v1082, 16
    %v1196 = vpop.permute.xlu0 %1195
    %1201 = vrot.lane.b32.xlu0 %v1130, 24
    %v1202 = vpop.permute.xlu0 %1201
    %1203 = vrot.lane.b32.xlu0 %v1178, 24
    %v1204 = vpop.permute.xlu0 %1203
    %v1207 = vsel %vm304, %v842, %v1186
    %v1208 = vsel %vm304, %v890, %v1188
    %vm1209 = vcmask 130048
    %v1210 = vsel %vm1209, %v1207, %v1194
    %v1211 = vsel %vm1209, %v1208, %v1196
    %vm1212 = vcmask 195584
    %v1213 = vsel %vm1212, %v1210, %v1202
    %v1214 = vsel %vm1212, %v1211, %v1204
    %v1215 = vpack.c.bf16 %v1214, %v1213
    %v1216 = vlaneseq
    %v1217 = vshrl.u32 %v1216, 7
    %v1218 = vsub.s32 3, %v1217
    %v1219 = vrot.slane %v103, %v1218
    %v1224 = vunpack.c.l.b16 %v67
    %v1225 = vunpack.c.l.b16 %v68
    %v1226 = vunpack.c.l.b16 %v69
    %v1227 = vunpack.c.l.b16 %v70
    %v1228 = vpack.c.b16 %v1225, %v1224
    %v1229 = vpack.c.b16 %v1227, %v1226
    %v1233 = vsel %vm108, %v1215, 0
    %1235 = vmatprep.subr.bf16.mxu0 0
    %1236 = vmatpush1.bf16.msra.mxu0 %v1228
    %1237 = vmatprep.subr.bf16.mxu0 0
    %1238 = vmatpush1.bf16.msra.mxu0 %v1229
    %1239 = vmatprep.subr.bf16.mxu0 0
    %1240 = vmatpush1.bf16.msra.mxu0 0
    %1241 = vmatprep.subr.bf16.mxu0 0
    %1242 = vmatpush1.bf16.msra.mxu0 0
    %1243 = vmatprep.subr.bf16.mxu0 0
    %1244 = vmatpush1.bf16.msra.mxu0 0
    %1245 = vmatprep.subr.bf16.mxu0 0
    %1246 = vmatpush1.bf16.msra.mxu0 0
    %1247 = vmatprep.subr.bf16.mxu0 0
    %1248 = vmatpush1.bf16.msra.mxu0 0
    %1249 = vmatprep.subr.bf16.mxu0 0
    %1250 = vmatpush1.bf16.msra.mxu0 0
    %1251 = vmatprep.subr.bf16.mxu0 0
    %1252 = vmatpush1.bf16.msra.mxu0 0
    %1253 = vmatprep.subr.bf16.mxu0 0
    %1254 = vmatpush1.bf16.msra.mxu0 0
    %1255 = vmatprep.subr.bf16.mxu0 0
    %1256 = vmatpush1.bf16.msra.mxu0 0
    %1257 = vmatprep.subr.bf16.mxu0 0
    %1258 = vmatpush1.bf16.msra.mxu0 0
    %1259 = vmatprep.subr.bf16.mxu0 0
    %1260 = vmatpush1.bf16.msra.mxu0 0
    %1261 = vmatprep.subr.bf16.mxu0 0
    %1262 = vmatpush1.bf16.msra.mxu0 0
    %1263 = vmatprep.subr.bf16.mxu0 0
    %1264 = vmatpush1.bf16.msra.mxu0 0
    %1265 = vmatprep.subr.bf16.mxu0 0
    %1266 = vmatpush1.bf16.msra.mxu0 0
    %1267 = vmatprep.mubr.bf16.mxu0 0
    %1268 = vmatmul.mubr.bf16.gmra.mrb[0].mxu0 %v1233
    %v1269 = vpop.f32.mrb[0].mxu0
    %v1270 = vadd.f32 %v1219, %v1269
    %v1271 = vpop.f32.mrb[0].mxu0
    %v1272 = vpop.f32.mrb[0].mxu0
    %v1273 = vadd.f32 %v1219, %v1272
    %v1274 = vpop.f32.mrb[0].mxu0
    %1275 = vdwg.mxu0
    %v1276 = vadd.f32 %v146, %v1270
    %v1277 = vadd.f32 %v147, %v1273
    %v1278 = vsel %vm108, %v1276, 0.0
    %1279 = vadd.xlane.f32.xlu0 %v1278
    %v1280 = vpop.xlane.xlu0 %1279
    %v1281 = vsel %vm108, %v1277, 0.0
    %1282 = vadd.xlane.f32.xlu0 %v1281
    %v1283 = vpop.xlane.xlu0 %1282
    %v1284 = vmul.f32 %v1280, %v115
    %v1285 = vmul.f32 %v1283, %v115
    %v1286 = vsub.f32 %v1276, %v1284
    %v1287 = vsub.f32 %v1277, %v1285
    %v1288 = vmul.f32 %v1286, %v1286
    %v1289 = vmul.f32 %v1287, %v1287
    %v1290 = vsel %vm108, %v1288, 0.0
    %1291 = vadd.xlane.f32.xlu0 %v1290
    %v1292 = vpop.xlane.xlu0 %1291
    %v1293 = vsel %vm108, %v1289, 0.0
    %1294 = vadd.xlane.f32.xlu0 %v1293
    %v1295 = vpop.xlane.xlu0 %1294
    %v1296 = vmul.f32 %v1292, %v115
    %v1297 = vmul.f32 %v1295, %v115
    %v1298 = vadd.f32 %v1296, 1e-12
    %v1299 = vadd.f32 %v1297, 1e-12
    %v1300 = vrsqrt.pop %v1298
    %v1301 = vrsqrt.pop %v1299
    %v1302 = vmul.f32 %v1286, %v1300
    %v1303 = vmul.f32 %v1287, %v1301
    %v1304 = vlaneseq
    %v1305 = vshrl.u32 %v1304, 7
    %v1306 = vsub.s32 4, %v1305
    %v1307 = vrot.slane %v103, %v1306
    %v1308 = vmul.f32 %v1302, %v1307
    %v1309 = vmul.f32 %v1303, %v1307
    %v1310 = vlaneseq
    %v1311 = vshrl.u32 %v1310, 7
    %v1312 = vsub.s32 5, %v1311
    %v1313 = vrot.slane %v103, %v1312
    %v1314 = vadd.f32 %v1308, %v1313
    %v1315 = vadd.f32 %v1309, %v1313
    %v1316 = vpack.c.bf16 %v1315, %v1314
    %v1317 = vlaneseq
    %v1318 = vshrl.u32 %v1317, 7
    %v1319 = vsub.s32 6, %v1318
    %v1320 = vrot.slane %v103, %v1319
    %v1325 = vunpack.c.l.b16 %v75
    %v1326 = vunpack.c.l.b16 %v76
    %v1327 = vunpack.c.l.b16 %v77
    %v1328 = vunpack.c.l.b16 %v78
    %v1329 = vpack.c.b16 %v1326, %v1325
    %v1330 = vpack.c.b16 %v1328, %v1327
    %v1334 = vsel %vm108, %v1316, 0
    %1336 = vmatprep.subr.bf16.mxu0 0
    %1337 = vmatpush1.bf16.msra.mxu0 %v1329
    %1338 = vmatprep.subr.bf16.mxu0 0
    %1339 = vmatpush1.bf16.msra.mxu0 %v1330
    %1340 = vmatprep.subr.bf16.mxu0 0
    %1341 = vmatpush1.bf16.msra.mxu0 0
    %1342 = vmatprep.subr.bf16.mxu0 0
    %1343 = vmatpush1.bf16.msra.mxu0 0
    %1344 = vmatprep.subr.bf16.mxu0 0
    %1345 = vmatpush1.bf16.msra.mxu0 0
    %1346 = vmatprep.subr.bf16.mxu0 0
    %1347 = vmatpush1.bf16.msra.mxu0 0
    %1348 = vmatprep.subr.bf16.mxu0 0
    %1349 = vmatpush1.bf16.msra.mxu0 0
    %1350 = vmatprep.subr.bf16.mxu0 0
    %1351 = vmatpush1.bf16.msra.mxu0 0
    %1352 = vmatprep.subr.bf16.mxu0 0
    %1353 = vmatpush1.bf16.msra.mxu0 0
    %1354 = vmatprep.subr.bf16.mxu0 0
    %1355 = vmatpush1.bf16.msra.mxu0 0
    %1356 = vmatprep.subr.bf16.mxu0 0
    %1357 = vmatpush1.bf16.msra.mxu0 0
    %1358 = vmatprep.subr.bf16.mxu0 0
    %1359 = vmatpush1.bf16.msra.mxu0 0
    %1360 = vmatprep.subr.bf16.mxu0 0
    %1361 = vmatpush1.bf16.msra.mxu0 0
    %1362 = vmatprep.subr.bf16.mxu0 0
    %1363 = vmatpush1.bf16.msra.mxu0 0
    %1364 = vmatprep.subr.bf16.mxu0 0
    %1365 = vmatpush1.bf16.msra.mxu0 0
    %1366 = vmatprep.subr.bf16.mxu0 0
    %1367 = vmatpush1.bf16.msra.mxu0 0
    %1368 = vmatprep.mubr.bf16.mxu0 0
    %1369 = vmatmul.mubr.bf16.gmra.mrb[0].mxu0 %v1334
    %v1370 = vpop.f32.mrb[0].mxu0
    %v1371 = vadd.f32 %v1320, %v1370
    %v1372 = vpop.f32.mrb[0].mxu0
    %v1373 = vpop.f32.mrb[0].mxu0
    %v1374 = vadd.f32 %v1320, %v1373
    %v1375 = vpop.f32.mrb[0].mxu0
    %1376 = vdwg.mxu0
    %v1377 = vmul.f32 %v1371, 0.5
    %v1378 = vmul.f32 %v1374, 0.5
    %v1379 = vmul.f32 %v1371, 0.044715
    %v1380 = vmul.f32 %v1374, 0.044715
    %v1381 = vmul.f32 %v1379, %v1371
    %v1382 = vmul.f32 %v1380, %v1374
    %v1383 = vmul.f32 %v1381, %v1371
    %v1384 = vmul.f32 %v1382, %v1374
    %v1385 = vadd.f32 %v1371, %v1383
    %v1386 = vadd.f32 %v1374, %v1384
    %v1387 = vmul.f32 %v1385, 0.7978846
    %v1388 = vmul.f32 %v1386, 0.7978846
    %v1389 = vtanh.pop %v1387
    %v1390 = vtanh.pop %v1388
    %v1391 = vadd.f32 %v1389, 1.0
    %v1392 = vadd.f32 %v1390, 1.0
    %v1393 = vmul.f32 %v1377, %v1391
    %v1394 = vmul.f32 %v1378, %v1392
    %v1395 = vpack.c.bf16 %v1394, %v1393
    %v1396 = vlaneseq
    %v1397 = vshrl.u32 %v1396, 7
    %v1398 = vsub.s32 7, %v1397
    %v1399 = vrot.slane %v103, %v1398
    %v1408 = vunpack.c.l.b16 %v83
    %v1409 = vunpack.c.l.b16 %v84
    %v1410 = vunpack.c.l.b16 %v85
    %v1411 = vunpack.c.l.b16 %v86
    %v1412 = vunpack.c.l.b16 %v87
    %v1413 = vunpack.c.l.b16 %v88
    %v1414 = vunpack.c.l.b16 %v89
    %v1415 = vunpack.c.l.b16 %v90
    %v1416 = vpack.c.b16 %v1409, %v1408
    %v1417 = vpack.c.b16 %v1411, %v1410
    %v1418 = vpack.c.b16 %v1413, %v1412
    %v1419 = vpack.c.b16 %v1415, %v1414
    %vm1424 = vcmask 523264
    %v1426 = vsel %vm1424, %v1395, 0
    %1428 = vmatprep.subr.bf16.mxu0 0
    %1429 = vmatpush1.bf16.msra.mxu0 %v1416
    %1430 = vmatprep.subr.bf16.mxu0 0
    %1431 = vmatpush1.bf16.msra.mxu0 %v1417
    %1432 = vmatprep.subr.bf16.mxu0 0
    %1433 = vmatpush1.bf16.msra.mxu0 %v1418
    %1434 = vmatprep.subr.bf16.mxu0 0
    %1435 = vmatpush1.bf16.msra.mxu0 %v1419
    %1436 = vmatprep.subr.bf16.mxu0 0
    %1437 = vmatpush1.bf16.msra.mxu0 0
    %1438 = vmatprep.subr.bf16.mxu0 0
    %1439 = vmatpush1.bf16.msra.mxu0 0
    %1440 = vmatprep.subr.bf16.mxu0 0
    %1441 = vmatpush1.bf16.msra.mxu0 0
    %1442 = vmatprep.subr.bf16.mxu0 0
    %1443 = vmatpush1.bf16.msra.mxu0 0
    %1444 = vmatprep.subr.bf16.mxu0 0
    %1445 = vmatpush1.bf16.msra.mxu0 0
    %1446 = vmatprep.subr.bf16.mxu0 0
    %1447 = vmatpush1.bf16.msra.mxu0 0
    %1448 = vmatprep.subr.bf16.mxu0 0
    %1449 = vmatpush1.bf16.msra.mxu0 0
    %1450 = vmatprep.subr.bf16.mxu0 0
    %1451 = vmatpush1.bf16.msra.mxu0 0
    %1452 = vmatprep.subr.bf16.mxu0 0
    %1453 = vmatpush1.bf16.msra.mxu0 0
    %1454 = vmatprep.subr.bf16.mxu0 0
    %1455 = vmatpush1.bf16.msra.mxu0 0
    %1456 = vmatprep.subr.bf16.mxu0 0
    %1457 = vmatpush1.bf16.msra.mxu0 0
    %1458 = vmatprep.subr.bf16.mxu0 0
    %1459 = vmatpush1.bf16.msra.mxu0 0
    %1460 = vmatprep.mubr.bf16.mxu0 0
    %1461 = vmatmul.mubr.bf16.gmra.mrb[0].mxu0 %v1426
    %v1462 = vpop.f32.mrb[0].mxu0
    %v1463 = vadd.f32 %v1399, %v1462
    %v1464 = vpop.f32.mrb[0].mxu0
    %v1465 = vpop.f32.mrb[0].mxu0
    %v1466 = vadd.f32 %v1399, %v1465
    %v1467 = vpop.f32.mrb[0].mxu0
    %1468 = vdwg.mxu0
    %v1469 = vadd.f32 %v1314, %v1463
    %v1470 = vadd.f32 %v1315, %v1466
    %v1471 = vsel %vm108, %v1469, 0.0
    %1472 = vadd.xlane.f32.xlu0 %v1471
    %v1473 = vpop.xlane.xlu0 %1472
    %v1474 = vsel %vm108, %v1470, 0.0
    %1475 = vadd.xlane.f32.xlu0 %v1474
    %v1476 = vpop.xlane.xlu0 %1475
    %v1477 = vmul.f32 %v1473, %v115
    %v1478 = vmul.f32 %v1476, %v115
    %v1479 = vsub.f32 %v1469, %v1477
    %v1480 = vsub.f32 %v1470, %v1478
    %v1481 = vmul.f32 %v1479, %v1479
    %v1482 = vmul.f32 %v1480, %v1480
    %v1483 = vsel %vm108, %v1481, 0.0
    %1484 = vadd.xlane.f32.xlu0 %v1483
    %v1485 = vpop.xlane.xlu0 %1484
    %v1486 = vsel %vm108, %v1482, 0.0
    %1487 = vadd.xlane.f32.xlu0 %v1486
    %v1488 = vpop.xlane.xlu0 %1487
    %v1489 = vmul.f32 %v1485, %v115
    %v1490 = vmul.f32 %v1488, %v115
    %v1491 = vadd.f32 %v1489, 1e-12
    %v1492 = vadd.f32 %v1490, 1e-12
    %v1493 = vrsqrt.pop %v1491
    %v1494 = vrsqrt.pop %v1492
    %v1495 = vmul.f32 %v1479, %v1493
    %v1496 = vmul.f32 %v1480, %v1494
    %v1497 = vlaneseq
    %v1498 = vshrl.u32 %v1497, 7
    %v1499 = vsub.s32 0, %v1498
    %v1500 = vrot.slane %v104, %v1499
    %v1501 = vmul.f32 %v1495, %v1500
    %v1502 = vmul.f32 %v1496, %v1500
    %v1503 = vlaneseq
    %v1504 = vshrl.u32 %v1503, 7
    %v1505 = vsub.s32 1, %v1504
    %v1506 = vrot.slane %v104, %v1505
    %v1507 = vadd.f32 %v1501, %v1506
    %v1508 = vadd.f32 %v1502, %v1506
    %v1509 = vpack.c.bf16 %v1508, %v1507
    %v1510 = vlaneseq
    %v1511 = vshrl.u32 %v1510, 7
    %v1512 = vsub.s32 2, %v1511
    %v1513 = vrot.slane %v104, %v1512
    %v1518 = vunpack.c.l.b16 %v63
    %v1519 = vunpack.c.l.b16 %v64
    %v1520 = vunpack.c.l.b16 %v65
    %v1521 = vunpack.c.l.b16 %v66
    %v1522 = vpack.c.b16 %v1519, %v1518
    %v1523 = vpack.c.b16 %v1521, %v1520
    %v1527 = vsel %vm108, %v1509, 0
    %1529 = vmatprep.subr.bf16.mxu0 0
    %1530 = vmatpush1.bf16.msra.mxu0 %v1522
    %1531 = vmatprep.subr.bf16.mxu0 0
    %1532 = vmatpush1.bf16.msra.mxu0 %v1523
    %1533 = vmatprep.subr.bf16.mxu0 0
    %1534 = vmatpush1.bf16.msra.mxu0 0
    %1535 = vmatprep.subr.bf16.mxu0 0
    %1536 = vmatpush1.bf16.msra.mxu0 0
    %1537 = vmatprep.subr.bf16.mxu0 0
    %1538 = vmatpush1.bf16.msra.mxu0 0
    %1539 = vmatprep.subr.bf16.mxu0 0
    %1540 = vmatpush1.bf16.msra.mxu0 0
    %1541 = vmatprep.subr.bf16.mxu0 0
    %1542 = vmatpush1.bf16.msra.mxu0 0
    %1543 = vmatprep.subr.bf16.mxu0 0
    %1544 = vmatpush1.bf16.msra.mxu0 0
    %1545 = vmatprep.subr.bf16.mxu0 0
    %1546 = vmatpush1.bf16.msra.mxu0 0
    %1547 = vmatprep.subr.bf16.mxu0 0
    %1548 = vmatpush1.bf16.msra.mxu0 0
    %1549 = vmatprep.subr.bf16.mxu0 0
    %1550 = vmatpush1.bf16.msra.mxu0 0
    %1551 = vmatprep.subr.bf16.mxu0 0
    %1552 = vmatpush1.bf16.msra.mxu0 0
    %1553 = vmatprep.subr.bf16.mxu0 0
    %1554 = vmatpush1.bf16.msra.mxu0 0
    %1555 = vmatprep.subr.bf16.mxu0 0
    %1556 = vmatpush1.bf16.msra.mxu0 0
    %1557 = vmatprep.subr.bf16.mxu0 0
    %1558 = vmatpush1.bf16.msra.mxu0 0
    %1559 = vmatprep.subr.bf16.mxu0 0
    %1560 = vmatpush1.bf16.msra.mxu0 0
    %1561 = vmatprep.mubr.bf16.mxu0 0
    %1562 = vmatmul.mubr.bf16.gmra.mrb[0].mxu0 %v1527
    %v1563 = vpop.f32.mrb[0].mxu0
    %v1564 = vadd.f32 %v1513, %v1563
    %v1565 = vpop.f32.mrb[0].mxu0
    %v1566 = vpop.f32.mrb[0].mxu0
    %v1567 = vadd.f32 %v1513, %v1566
    %v1568 = vpop.f32.mrb[0].mxu0
    %1569 = vdwg.mxu0
    %v1570 = vmul.f32 %v1564, 0.35355338
    %v1571 = vmul.f32 %v1567, 0.35355338
    %1574 = vrot.lane.b32.xlu0 %v1570, 120
    %v1575 = vpop.permute.xlu0 %1574
    %1576 = vrot.lane.b32.xlu0 %v1571, 120
    %v1577 = vpop.permute.xlu0 %1576
    %1580 = vrot.lane.b32.xlu0 %v1570, 112
    %v1581 = vpop.permute.xlu0 %1580
    %1582 = vrot.lane.b32.xlu0 %v1571, 112
    %v1583 = vpop.permute.xlu0 %1582
    %1586 = vrot.lane.b32.xlu0 %v1570, 104
    %v1587 = vpop.permute.xlu0 %1586
    %1588 = vrot.lane.b32.xlu0 %v1571, 104
    %v1589 = vpop.permute.xlu0 %1588
    %v1592 = vpack.c.bf16 %v1570, %v1570
    %v1593 = vpack.c.bf16 %v1571, %v1571
    %v1594 = vpack.c.bf16 %v1575, %v1575
    %v1595 = vpack.c.bf16 %v1577, %v1577
    %v1596 = vpack.c.bf16 %v1581, %v1581
    %v1597 = vpack.c.bf16 %v1583, %v1583
    %v1598 = vpack.c.bf16 %v1587, %v1587
    %v1599 = vpack.c.bf16 %v1589, %v1589
    %1602 = vrot.lane.b32.xlu0 %v1564, 120
    %v1603 = vpop.permute.xlu0 %1602
    %1604 = vrot.lane.b32.xlu0 %v1567, 120
    %v1605 = vpop.permute.xlu0 %1604
    %1608 = vrot.lane.b32.xlu0 %v1564, 112
    %v1609 = vpop.permute.xlu0 %1608
    %1610 = vrot.lane.b32.xlu0 %v1567, 112
    %v1611 = vpop.permute.xlu0 %1610
    %1614 = vrot.lane.b32.xlu0 %v1564, 104
    %v1615 = vpop.permute.xlu0 %1614
    %1616 = vrot.lane.b32.xlu0 %v1567, 104
    %v1617 = vpop.permute.xlu0 %1616
    %v1620 = vpack.c.bf16 %v1564, %v1564
    %v1621 = vpack.c.bf16 %v1567, %v1567
    %v1622 = vpack.c.bf16 %v1603, %v1603
    %v1623 = vpack.c.bf16 %v1605, %v1605
    %v1624 = vpack.c.bf16 %v1609, %v1609
    %v1625 = vpack.c.bf16 %v1611, %v1611
    %v1626 = vpack.c.bf16 %v1615, %v1615
    %v1627 = vpack.c.bf16 %v1617, %v1617
    %1629 = vrot.lane.b32.xlu0 %v1620, 96
    %v1630 = vpop.permute.xlu0 %1629
    %v1632 = vsel %vm304, %v1592, 0
    %v1635 = vsel %vm304, %v1630, 0
    %1637 = vmatprep.subr.bf16.mxu0 0
    %1638 = vmatpush1.bf16.xpose.msra.mxu0 %v1635
    %1639 = vmatprep.subr.bf16.mxu0 0
    %1640 = vmatpush1.bf16.xpose.msra.mxu0 0
    %1641 = vmatprep.subr.bf16.mxu0 0
    %1642 = vmatpush1.bf16.xpose.msra.mxu0 0
    %1643 = vmatprep.subr.bf16.mxu0 0
    %1644 = vmatpush1.bf16.xpose.msra.mxu0 0
    %1645 = vmatprep.subr.bf16.mxu0 0
    %1646 = vmatpush1.bf16.xpose.msra.mxu0 0
    %1647 = vmatprep.subr.bf16.mxu0 0
    %1648 = vmatpush1.bf16.xpose.msra.mxu0 0
    %1649 = vmatprep.subr.bf16.mxu0 0
    %1650 = vmatpush1.bf16.xpose.msra.mxu0 0
    %1651 = vmatprep.subr.bf16.mxu0 0
    %1652 = vmatpush1.bf16.xpose.msra.mxu0 0
    %1653 = vmatprep.subr.bf16.mxu0 0
    %1654 = vmatpush1.bf16.xpose.msra.mxu0 0
    %1655 = vmatprep.subr.bf16.mxu0 0
    %1656 = vmatpush1.bf16.xpose.msra.mxu0 0
    %1657 = vmatprep.subr.bf16.mxu0 0
    %1658 = vmatpush1.bf16.xpose.msra.mxu0 0
    %1659 = vmatprep.subr.bf16.mxu0 0
    %1660 = vmatpush1.bf16.xpose.msra.mxu0 0
    %1661 = vmatprep.subr.bf16.mxu0 0
    %1662 = vmatpush1.bf16.xpose.msra.mxu0 0
    %1663 = vmatprep.subr.bf16.mxu0 0
    %1664 = vmatpush1.bf16.xpose.msra.mxu0 0
    %1665 = vmatprep.subr.bf16.mxu0 0
    %1666 = vmatpush1.bf16.xpose.msra.mxu0 0
    %1667 = vmatprep.subr.bf16.mxu0 0
    %1668 = vmatpush1.bf16.xpose.msra.mxu0 0
    %1669 = vmatprep.mubr.bf16.mxu0 0
    %1670 = vmatmul.mubr.bf16.gmra.mrb[0].mxu0 %v1632
    %v1671 = vpop.f32.mrb[0].mxu0
    %v1672 = vadd.f32 %v175, %v1671
    %v1673 = vpop.f32.mrb[0].mxu0
    %v1674 = vpop.f32.mrb[0].mxu0
    %v1675 = vpop.f32.mrb[0].mxu0
    %1676 = vdwg.mxu0
    %1678 = vrot.lane.b32.xlu0 %v1621, 96
    %v1679 = vpop.permute.xlu0 %1678
    %v1681 = vsel %vm304, %v1593, 0
    %v1684 = vsel %vm304, %v1679, 0
    %1686 = vmatprep.subr.bf16.mxu0 0
    %1687 = vmatpush1.bf16.xpose.msra.mxu0 %v1684
    %1688 = vmatprep.subr.bf16.mxu0 0
    %1689 = vmatpush1.bf16.xpose.msra.mxu0 0
    %1690 = vmatprep.subr.bf16.mxu0 0
    %1691 = vmatpush1.bf16.xpose.msra.mxu0 0
    %1692 = vmatprep.subr.bf16.mxu0 0
    %1693 = vmatpush1.bf16.xpose.msra.mxu0 0
    %1694 = vmatprep.subr.bf16.mxu0 0
    %1695 = vmatpush1.bf16.xpose.msra.mxu0 0
    %1696 = vmatprep.subr.bf16.mxu0 0
    %1697 = vmatpush1.bf16.xpose.msra.mxu0 0
    %1698 = vmatprep.subr.bf16.mxu0 0
    %1699 = vmatpush1.bf16.xpose.msra.mxu0 0
    %1700 = vmatprep.subr.bf16.mxu0 0
    %1701 = vmatpush1.bf16.xpose.msra.mxu0 0
    %1702 = vmatprep.subr.bf16.mxu0 0
    %1703 = vmatpush1.bf16.xpose.msra.mxu0 0
    %1704 = vmatprep.subr.bf16.mxu0 0
    %1705 = vmatpush1.bf16.xpose.msra.mxu0 0
    %1706 = vmatprep.subr.bf16.mxu0 0
    %1707 = vmatpush1.bf16.xpose.msra.mxu0 0
    %1708 = vmatprep.subr.bf16.mxu0 0
    %1709 = vmatpush1.bf16.xpose.msra.mxu0 0
    %1710 = vmatprep.subr.bf16.mxu0 0
    %1711 = vmatpush1.bf16.xpose.msra.mxu0 0
    %1712 = vmatprep.subr.bf16.mxu0 0
    %1713 = vmatpush1.bf16.xpose.msra.mxu0 0
    %1714 = vmatprep.subr.bf16.mxu0 0
    %1715 = vmatpush1.bf16.xpose.msra.mxu0 0
    %1716 = vmatprep.subr.bf16.mxu0 0
    %1717 = vmatpush1.bf16.xpose.msra.mxu0 0
    %1718 = vmatprep.mubr.bf16.mxu0 0
    %1719 = vmatmul.mubr.bf16.gmra.mrb[0].mxu0 %v1681
    %v1720 = vpop.f32.mrb[0].mxu0
    %v1721 = vadd.f32 %v179, %v1720
    %v1722 = vpop.f32.mrb[0].mxu0
    %v1723 = vpop.f32.mrb[0].mxu0
    %v1724 = vpop.f32.mrb[0].mxu0
    %1725 = vdwg.mxu0
    %1727 = vrot.lane.b32.xlu0 %v1622, 96
    %v1728 = vpop.permute.xlu0 %1727
    %v1730 = vsel %vm304, %v1594, 0
    %v1733 = vsel %vm304, %v1728, 0
    %1735 = vmatprep.subr.bf16.mxu0 0
    %1736 = vmatpush1.bf16.xpose.msra.mxu0 %v1733
    %1737 = vmatprep.subr.bf16.mxu0 0
    %1738 = vmatpush1.bf16.xpose.msra.mxu0 0
    %1739 = vmatprep.subr.bf16.mxu0 0
    %1740 = vmatpush1.bf16.xpose.msra.mxu0 0
    %1741 = vmatprep.subr.bf16.mxu0 0
    %1742 = vmatpush1.bf16.xpose.msra.mxu0 0
    %1743 = vmatprep.subr.bf16.mxu0 0
    %1744 = vmatpush1.bf16.xpose.msra.mxu0 0
    %1745 = vmatprep.subr.bf16.mxu0 0
    %1746 = vmatpush1.bf16.xpose.msra.mxu0 0
    %1747 = vmatprep.subr.bf16.mxu0 0
    %1748 = vmatpush1.bf16.xpose.msra.mxu0 0
    %1749 = vmatprep.subr.bf16.mxu0 0
    %1750 = vmatpush1.bf16.xpose.msra.mxu0 0
    %1751 = vmatprep.subr.bf16.mxu0 0
    %1752 = vmatpush1.bf16.xpose.msra.mxu0 0
    %1753 = vmatprep.subr.bf16.mxu0 0
    %1754 = vmatpush1.bf16.xpose.msra.mxu0 0
    %1755 = vmatprep.subr.bf16.mxu0 0
    %1756 = vmatpush1.bf16.xpose.msra.mxu0 0
    %1757 = vmatprep.subr.bf16.mxu0 0
    %1758 = vmatpush1.bf16.xpose.msra.mxu0 0
    %1759 = vmatprep.subr.bf16.mxu0 0
    %1760 = vmatpush1.bf16.xpose.msra.mxu0 0
    %1761 = vmatprep.subr.bf16.mxu0 0
    %1762 = vmatpush1.bf16.xpose.msra.mxu0 0
    %1763 = vmatprep.subr.bf16.mxu0 0
    %1764 = vmatpush1.bf16.xpose.msra.mxu0 0
    %1765 = vmatprep.subr.bf16.mxu0 0
    %1766 = vmatpush1.bf16.xpose.msra.mxu0 0
    %1767 = vmatprep.mubr.bf16.mxu0 0
    %1768 = vmatmul.mubr.bf16.gmra.mrb[0].mxu0 %v1730
    %v1769 = vpop.f32.mrb[0].mxu0
    %v1770 = vadd.f32 %v175, %v1769
    %v1771 = vpop.f32.mrb[0].mxu0
    %v1772 = vpop.f32.mrb[0].mxu0
    %v1773 = vpop.f32.mrb[0].mxu0
    %1774 = vdwg.mxu0
    %1776 = vrot.lane.b32.xlu0 %v1623, 96
    %v1777 = vpop.permute.xlu0 %1776
    %v1779 = vsel %vm304, %v1595, 0
    %v1782 = vsel %vm304, %v1777, 0
    %1784 = vmatprep.subr.bf16.mxu0 0
    %1785 = vmatpush1.bf16.xpose.msra.mxu0 %v1782
    %1786 = vmatprep.subr.bf16.mxu0 0
    %1787 = vmatpush1.bf16.xpose.msra.mxu0 0
    %1788 = vmatprep.subr.bf16.mxu0 0
    %1789 = vmatpush1.bf16.xpose.msra.mxu0 0
    %1790 = vmatprep.subr.bf16.mxu0 0
    %1791 = vmatpush1.bf16.xpose.msra.mxu0 0
    %1792 = vmatprep.subr.bf16.mxu0 0
    %1793 = vmatpush1.bf16.xpose.msra.mxu0 0
    %1794 = vmatprep.subr.bf16.mxu0 0
    %1795 = vmatpush1.bf16.xpose.msra.mxu0 0
    %1796 = vmatprep.subr.bf16.mxu0 0
    %1797 = vmatpush1.bf16.xpose.msra.mxu0 0
    %1798 = vmatprep.subr.bf16.mxu0 0
    %1799 = vmatpush1.bf16.xpose.msra.mxu0 0
    %1800 = vmatprep.subr.bf16.mxu0 0
    %1801 = vmatpush1.bf16.xpose.msra.mxu0 0
    %1802 = vmatprep.subr.bf16.mxu0 0
    %1803 = vmatpush1.bf16.xpose.msra.mxu0 0
    %1804 = vmatprep.subr.bf16.mxu0 0
    %1805 = vmatpush1.bf16.xpose.msra.mxu0 0
    %1806 = vmatprep.subr.bf16.mxu0 0
    %1807 = vmatpush1.bf16.xpose.msra.mxu0 0
    %1808 = vmatprep.subr.bf16.mxu0 0
    %1809 = vmatpush1.bf16.xpose.msra.mxu0 0
    %1810 = vmatprep.subr.bf16.mxu0 0
    %1811 = vmatpush1.bf16.xpose.msra.mxu0 0
    %1812 = vmatprep.subr.bf16.mxu0 0
    %1813 = vmatpush1.bf16.xpose.msra.mxu0 0
    %1814 = vmatprep.subr.bf16.mxu0 0
    %1815 = vmatpush1.bf16.xpose.msra.mxu0 0
    %1816 = vmatprep.mubr.bf16.mxu0 0
    %1817 = vmatmul.mubr.bf16.gmra.mrb[0].mxu0 %v1779
    %v1818 = vpop.f32.mrb[0].mxu0
    %v1819 = vadd.f32 %v179, %v1818
    %v1820 = vpop.f32.mrb[0].mxu0
    %v1821 = vpop.f32.mrb[0].mxu0
    %v1822 = vpop.f32.mrb[0].mxu0
    %1823 = vdwg.mxu0
    %1825 = vrot.lane.b32.xlu0 %v1624, 96
    %v1826 = vpop.permute.xlu0 %1825
    %v1828 = vsel %vm304, %v1596, 0
    %v1831 = vsel %vm304, %v1826, 0
    %1833 = vmatprep.subr.bf16.mxu0 0
    %1834 = vmatpush1.bf16.xpose.msra.mxu0 %v1831
    %1835 = vmatprep.subr.bf16.mxu0 0
    %1836 = vmatpush1.bf16.xpose.msra.mxu0 0
    %1837 = vmatprep.subr.bf16.mxu0 0
    %1838 = vmatpush1.bf16.xpose.msra.mxu0 0
    %1839 = vmatprep.subr.bf16.mxu0 0
    %1840 = vmatpush1.bf16.xpose.msra.mxu0 0
    %1841 = vmatprep.subr.bf16.mxu0 0
    %1842 = vmatpush1.bf16.xpose.msra.mxu0 0
    %1843 = vmatprep.subr.bf16.mxu0 0
    %1844 = vmatpush1.bf16.xpose.msra.mxu0 0
    %1845 = vmatprep.subr.bf16.mxu0 0
    %1846 = vmatpush1.bf16.xpose.msra.mxu0 0
    %1847 = vmatprep.subr.bf16.mxu0 0
    %1848 = vmatpush1.bf16.xpose.msra.mxu0 0
    %1849 = vmatprep.subr.bf16.mxu0 0
    %1850 = vmatpush1.bf16.xpose.msra.mxu0 0
    %1851 = vmatprep.subr.bf16.mxu0 0
    %1852 = vmatpush1.bf16.xpose.msra.mxu0 0
    %1853 = vmatprep.subr.bf16.mxu0 0
    %1854 = vmatpush1.bf16.xpose.msra.mxu0 0
    %1855 = vmatprep.subr.bf16.mxu0 0
    %1856 = vmatpush1.bf16.xpose.msra.mxu0 0
    %1857 = vmatprep.subr.bf16.mxu0 0
    %1858 = vmatpush1.bf16.xpose.msra.mxu0 0
    %1859 = vmatprep.subr.bf16.mxu0 0
    %1860 = vmatpush1.bf16.xpose.msra.mxu0 0
    %1861 = vmatprep.subr.bf16.mxu0 0
    %1862 = vmatpush1.bf16.xpose.msra.mxu0 0
    %1863 = vmatprep.subr.bf16.mxu0 0
    %1864 = vmatpush1.bf16.xpose.msra.mxu0 0
    %1865 = vmatprep.mubr.bf16.mxu0 0
    %1866 = vmatmul.mubr.bf16.gmra.mrb[0].mxu0 %v1828
    %v1867 = vpop.f32.mrb[0].mxu0
    %v1868 = vadd.f32 %v175, %v1867
    %v1869 = vpop.f32.mrb[0].mxu0
    %v1870 = vpop.f32.mrb[0].mxu0
    %v1871 = vpop.f32.mrb[0].mxu0
    %1872 = vdwg.mxu0
    %1874 = vrot.lane.b32.xlu0 %v1625, 96
    %v1875 = vpop.permute.xlu0 %1874
    %v1877 = vsel %vm304, %v1597, 0
    %v1880 = vsel %vm304, %v1875, 0
    %1882 = vmatprep.subr.bf16.mxu0 0
    %1883 = vmatpush1.bf16.xpose.msra.mxu0 %v1880
    %1884 = vmatprep.subr.bf16.mxu0 0
    %1885 = vmatpush1.bf16.xpose.msra.mxu0 0
    %1886 = vmatprep.subr.bf16.mxu0 0
    %1887 = vmatpush1.bf16.xpose.msra.mxu0 0
    %1888 = vmatprep.subr.bf16.mxu0 0
    %1889 = vmatpush1.bf16.xpose.msra.mxu0 0
    %1890 = vmatprep.subr.bf16.mxu0 0
    %1891 = vmatpush1.bf16.xpose.msra.mxu0 0
    %1892 = vmatprep.subr.bf16.mxu0 0
    %1893 = vmatpush1.bf16.xpose.msra.mxu0 0
    %1894 = vmatprep.subr.bf16.mxu0 0
    %1895 = vmatpush1.bf16.xpose.msra.mxu0 0
    %1896 = vmatprep.subr.bf16.mxu0 0
    %1897 = vmatpush1.bf16.xpose.msra.mxu0 0
    %1898 = vmatprep.subr.bf16.mxu0 0
    %1899 = vmatpush1.bf16.xpose.msra.mxu0 0
    %1900 = vmatprep.subr.bf16.mxu0 0
    %1901 = vmatpush1.bf16.xpose.msra.mxu0 0
    %1902 = vmatprep.subr.bf16.mxu0 0
    %1903 = vmatpush1.bf16.xpose.msra.mxu0 0
    %1904 = vmatprep.subr.bf16.mxu0 0
    %1905 = vmatpush1.bf16.xpose.msra.mxu0 0
    %1906 = vmatprep.subr.bf16.mxu0 0
    %1907 = vmatpush1.bf16.xpose.msra.mxu0 0
    %1908 = vmatprep.subr.bf16.mxu0 0
    %1909 = vmatpush1.bf16.xpose.msra.mxu0 0
    %1910 = vmatprep.subr.bf16.mxu0 0
    %1911 = vmatpush1.bf16.xpose.msra.mxu0 0
    %1912 = vmatprep.subr.bf16.mxu0 0
    %1913 = vmatpush1.bf16.xpose.msra.mxu0 0
    %1914 = vmatprep.mubr.bf16.mxu0 0
    %1915 = vmatmul.mubr.bf16.gmra.mrb[0].mxu0 %v1877
    %v1916 = vpop.f32.mrb[0].mxu0
    %v1917 = vadd.f32 %v179, %v1916
    %v1918 = vpop.f32.mrb[0].mxu0
    %v1919 = vpop.f32.mrb[0].mxu0
    %v1920 = vpop.f32.mrb[0].mxu0
    %1921 = vdwg.mxu0
    %1923 = vrot.lane.b32.xlu0 %v1626, 96
    %v1924 = vpop.permute.xlu0 %1923
    %v1926 = vsel %vm304, %v1598, 0
    %v1929 = vsel %vm304, %v1924, 0
    %1931 = vmatprep.subr.bf16.mxu0 0
    %1932 = vmatpush1.bf16.xpose.msra.mxu0 %v1929
    %1933 = vmatprep.subr.bf16.mxu0 0
    %1934 = vmatpush1.bf16.xpose.msra.mxu0 0
    %1935 = vmatprep.subr.bf16.mxu0 0
    %1936 = vmatpush1.bf16.xpose.msra.mxu0 0
    %1937 = vmatprep.subr.bf16.mxu0 0
    %1938 = vmatpush1.bf16.xpose.msra.mxu0 0
    %1939 = vmatprep.subr.bf16.mxu0 0
    %1940 = vmatpush1.bf16.xpose.msra.mxu0 0
    %1941 = vmatprep.subr.bf16.mxu0 0
    %1942 = vmatpush1.bf16.xpose.msra.mxu0 0
    %1943 = vmatprep.subr.bf16.mxu0 0
    %1944 = vmatpush1.bf16.xpose.msra.mxu0 0
    %1945 = vmatprep.subr.bf16.mxu0 0
    %1946 = vmatpush1.bf16.xpose.msra.mxu0 0
    %1947 = vmatprep.subr.bf16.mxu0 0
    %1948 = vmatpush1.bf16.xpose.msra.mxu0 0
    %1949 = vmatprep.subr.bf16.mxu0 0
    %1950 = vmatpush1.bf16.xpose.msra.mxu0 0
    %1951 = vmatprep.subr.bf16.mxu0 0
    %1952 = vmatpush1.bf16.xpose.msra.mxu0 0
    %1953 = vmatprep.subr.bf16.mxu0 0
    %1954 = vmatpush1.bf16.xpose.msra.mxu0 0
    %1955 = vmatprep.subr.bf16.mxu0 0
    %1956 = vmatpush1.bf16.xpose.msra.mxu0 0
    %1957 = vmatprep.subr.bf16.mxu0 0
    %1958 = vmatpush1.bf16.xpose.msra.mxu0 0
    %1959 = vmatprep.subr.bf16.mxu0 0
    %1960 = vmatpush1.bf16.xpose.msra.mxu0 0
    %1961 = vmatprep.subr.bf16.mxu0 0
    %1962 = vmatpush1.bf16.xpose.msra.mxu0 0
    %1963 = vmatprep.mubr.bf16.mxu0 0
    %1964 = vmatmul.mubr.bf16.gmra.mrb[0].mxu0 %v1926
    %v1965 = vpop.f32.mrb[0].mxu0
    %v1966 = vadd.f32 %v175, %v1965
    %v1967 = vpop.f32.mrb[0].mxu0
    %v1968 = vpop.f32.mrb[0].mxu0
    %v1969 = vpop.f32.mrb[0].mxu0
    %1970 = vdwg.mxu0
    %1972 = vrot.lane.b32.xlu0 %v1627, 96
    %v1973 = vpop.permute.xlu0 %1972
    %v1975 = vsel %vm304, %v1599, 0
    %v1978 = vsel %vm304, %v1973, 0
    %1980 = vmatprep.subr.bf16.mxu0 0
    %1981 = vmatpush1.bf16.xpose.msra.mxu0 %v1978
    %1982 = vmatprep.subr.bf16.mxu0 0
    %1983 = vmatpush1.bf16.xpose.msra.mxu0 0
    %1984 = vmatprep.subr.bf16.mxu0 0
    %1985 = vmatpush1.bf16.xpose.msra.mxu0 0
    %1986 = vmatprep.subr.bf16.mxu0 0
    %1987 = vmatpush1.bf16.xpose.msra.mxu0 0
    %1988 = vmatprep.subr.bf16.mxu0 0
    %1989 = vmatpush1.bf16.xpose.msra.mxu0 0
    %1990 = vmatprep.subr.bf16.mxu0 0
    %1991 = vmatpush1.bf16.xpose.msra.mxu0 0
    %1992 = vmatprep.subr.bf16.mxu0 0
    %1993 = vmatpush1.bf16.xpose.msra.mxu0 0
    %1994 = vmatprep.subr.bf16.mxu0 0
    %1995 = vmatpush1.bf16.xpose.msra.mxu0 0
    %1996 = vmatprep.subr.bf16.mxu0 0
    %1997 = vmatpush1.bf16.xpose.msra.mxu0 0
    %1998 = vmatprep.subr.bf16.mxu0 0
    %1999 = vmatpush1.bf16.xpose.msra.mxu0 0
    %2000 = vmatprep.subr.bf16.mxu0 0
    %2001 = vmatpush1.bf16.xpose.msra.mxu0 0
    %2002 = vmatprep.subr.bf16.mxu0 0
    %2003 = vmatpush1.bf16.xpose.msra.mxu0 0
    %2004 = vmatprep.subr.bf16.mxu0 0
    %2005 = vmatpush1.bf16.xpose.msra.mxu0 0
    %2006 = vmatprep.subr.bf16.mxu0 0
    %2007 = vmatpush1.bf16.xpose.msra.mxu0 0
    %2008 = vmatprep.subr.bf16.mxu0 0
    %2009 = vmatpush1.bf16.xpose.msra.mxu0 0
    %2010 = vmatprep.subr.bf16.mxu0 0
    %2011 = vmatpush1.bf16.xpose.msra.mxu0 0
    %2012 = vmatprep.mubr.bf16.mxu0 0
    %2013 = vmatmul.mubr.bf16.gmra.mrb[0].mxu0 %v1975
    %v2014 = vpop.f32.mrb[0].mxu0
    %v2015 = vadd.f32 %v179, %v2014
    %v2016 = vpop.f32.mrb[0].mxu0
    %v2017 = vpop.f32.mrb[0].mxu0
    %v2018 = vpop.f32.mrb[0].mxu0
    %2019 = vdwg.mxu0
    %v2020 = vsel %vm304, %v1672, -inf
    %2021 = vmax.xlane.f32.xlu0 %v2020
    %v2022 = vpop.xlane.xlu0 %2021
    %v2023 = vsel %vm304, %v1721, -inf
    %2024 = vmax.xlane.f32.xlu0 %v2023
    %v2025 = vpop.xlane.xlu0 %2024
    %v2026 = vsel %vm304, %v1770, -inf
    %2027 = vmax.xlane.f32.xlu0 %v2026
    %v2028 = vpop.xlane.xlu0 %2027
    %v2029 = vsel %vm304, %v1819, -inf
    %2030 = vmax.xlane.f32.xlu0 %v2029
    %v2031 = vpop.xlane.xlu0 %2030
    %v2032 = vsel %vm304, %v1868, -inf
    %2033 = vmax.xlane.f32.xlu0 %v2032
    %v2034 = vpop.xlane.xlu0 %2033
    %v2035 = vsel %vm304, %v1917, -inf
    %2036 = vmax.xlane.f32.xlu0 %v2035
    %v2037 = vpop.xlane.xlu0 %2036
    %v2038 = vsel %vm304, %v1966, -inf
    %2039 = vmax.xlane.f32.xlu0 %v2038
    %v2040 = vpop.xlane.xlu0 %2039
    %v2041 = vsel %vm304, %v2015, -inf
    %2042 = vmax.xlane.f32.xlu0 %v2041
    %v2043 = vpop.xlane.xlu0 %2042
    %v2044 = vsub.f32 %v1672, %v2022
    %v2045 = vsub.f32 %v1721, %v2025
    %v2046 = vsub.f32 %v1770, %v2028
    %v2047 = vsub.f32 %v1819, %v2031
    %v2048 = vsub.f32 %v1868, %v2034
    %v2049 = vsub.f32 %v1917, %v2037
    %v2050 = vsub.f32 %v1966, %v2040
    %v2051 = vsub.f32 %v2015, %v2043
    %v2052 = vmul.f32 %v2044, 1.442695
    %v2053 = vpow.pop %v2052
    %v2054 = vmul.f32 %v2045, 1.442695
    %v2055 = vpow.pop %v2054
    %v2056 = vmul.f32 %v2046, 1.442695
    %v2057 = vpow.pop %v2056
    %v2058 = vmul.f32 %v2047, 1.442695
    %v2059 = vpow.pop %v2058
    %v2060 = vmul.f32 %v2048, 1.442695
    %v2061 = vpow.pop %v2060
    %v2062 = vmul.f32 %v2049, 1.442695
    %v2063 = vpow.pop %v2062
    %v2064 = vmul.f32 %v2050, 1.442695
    %v2065 = vpow.pop %v2064
    %v2066 = vmul.f32 %v2051, 1.442695
    %v2067 = vpow.pop %v2066
    %v2068 = vsel %vm304, %v2053, 0.0
    %2069 = vadd.xlane.f32.xlu0 %v2068
    %v2070 = vpop.xlane.xlu0 %2069
    %v2071 = vsel %vm304, %v2055, 0.0
    %2072 = vadd.xlane.f32.xlu0 %v2071
    %v2073 = vpop.xlane.xlu0 %2072
    %v2074 = vsel %vm304, %v2057, 0.0
    %2075 = vadd.xlane.f32.xlu0 %v2074
    %v2076 = vpop.xlane.xlu0 %2075
    %v2077 = vsel %vm304, %v2059, 0.0
    %2078 = vadd.xlane.f32.xlu0 %v2077
    %v2079 = vpop.xlane.xlu0 %2078
    %v2080 = vsel %vm304, %v2061, 0.0
    %2081 = vadd.xlane.f32.xlu0 %v2080
    %v2082 = vpop.xlane.xlu0 %2081
    %v2083 = vsel %vm304, %v2063, 0.0
    %2084 = vadd.xlane.f32.xlu0 %v2083
    %v2085 = vpop.xlane.xlu0 %2084
    %v2086 = vsel %vm304, %v2065, 0.0
    %2087 = vadd.xlane.f32.xlu0 %v2086
    %v2088 = vpop.xlane.xlu0 %2087
    %v2089 = vsel %vm304, %v2067, 0.0
    %2090 = vadd.xlane.f32.xlu0 %v2089
    %v2091 = vpop.xlane.xlu0 %2090
    %v2092 = vrcp.pop %v2070
    %v2093 = vmul.f32 1.0, %v2092
    %v2094 = vrcp.pop %v2073
    %v2095 = vmul.f32 1.0, %v2094
    %v2096 = vrcp.pop %v2076
    %v2097 = vmul.f32 1.0, %v2096
    %v2098 = vrcp.pop %v2079
    %v2099 = vmul.f32 1.0, %v2098
    %v2100 = vrcp.pop %v2082
    %v2101 = vmul.f32 1.0, %v2100
    %v2102 = vrcp.pop %v2085
    %v2103 = vmul.f32 1.0, %v2102
    %v2104 = vrcp.pop %v2088
    %v2105 = vmul.f32 1.0, %v2104
    %v2106 = vrcp.pop %v2091
    %v2107 = vmul.f32 1.0, %v2106
    %v2108 = vmul.f32 %v2053, %v2093
    %v2109 = vmul.f32 %v2055, %v2095
    %v2110 = vmul.f32 %v2057, %v2097
    %v2111 = vmul.f32 %v2059, %v2099
    %v2112 = vmul.f32 %v2061, %v2101
    %v2113 = vmul.f32 %v2063, %v2103
    %v2114 = vmul.f32 %v2065, %v2105
    %v2115 = vmul.f32 %v2067, %v2107
    %v2116 = vpack.c.bf16 %v2108, %v2108
    %v2117 = vpack.c.bf16 %v2109, %v2109
    %v2118 = vpack.c.bf16 %v2110, %v2110
    %v2119 = vpack.c.bf16 %v2111, %v2111
    %v2120 = vpack.c.bf16 %v2112, %v2112
    %v2121 = vpack.c.bf16 %v2113, %v2113
    %v2122 = vpack.c.bf16 %v2114, %v2114
    %v2123 = vpack.c.bf16 %v2115, %v2115
    %2124 = vrot.lane.b32.xlu0 %v1620, 64
    %v2125 = vpop.permute.xlu0 %2124
    %v2127 = vsel %vm304, %v2116, 0
    %v2130 = vsel %vm803, %v2125, 0
    %2132 = vmatprep.subr.bf16.mxu0 0
    %2133 = vmatpush1.bf16.msra.mxu0 %v2130
    %2134 = vmatprep.subr.bf16.mxu0 0
    %2135 = vmatpush1.bf16.msra.mxu0 0
    %2136 = vmatprep.subr.bf16.mxu0 0
    %2137 = vmatpush1.bf16.msra.mxu0 0
    %2138 = vmatprep.subr.bf16.mxu0 0
    %2139 = vmatpush1.bf16.msra.mxu0 0
    %2140 = vmatprep.subr.bf16.mxu0 0
    %2141 = vmatpush1.bf16.msra.mxu0 0
    %2142 = vmatprep.subr.bf16.mxu0 0
    %2143 = vmatpush1.bf16.msra.mxu0 0
    %2144 = vmatprep.subr.bf16.mxu0 0
    %2145 = vmatpush1.bf16.msra.mxu0 0
    %2146 = vmatprep.subr.bf16.mxu0 0
    %2147 = vmatpush1.bf16.msra.mxu0 0
    %2148 = vmatprep.subr.bf16.mxu0 0
    %2149 = vmatpush1.bf16.msra.mxu0 0
    %2150 = vmatprep.subr.bf16.mxu0 0
    %2151 = vmatpush1.bf16.msra.mxu0 0
    %2152 = vmatprep.subr.bf16.mxu0 0
    %2153 = vmatpush1.bf16.msra.mxu0 0
    %2154 = vmatprep.subr.bf16.mxu0 0
    %2155 = vmatpush1.bf16.msra.mxu0 0
    %2156 = vmatprep.subr.bf16.mxu0 0
    %2157 = vmatpush1.bf16.msra.mxu0 0
    %2158 = vmatprep.subr.bf16.mxu0 0
    %2159 = vmatpush1.bf16.msra.mxu0 0
    %2160 = vmatprep.subr.bf16.mxu0 0
    %2161 = vmatpush1.bf16.msra.mxu0 0
    %2162 = vmatprep.subr.bf16.mxu0 0
    %2163 = vmatpush1.bf16.msra.mxu0 0
    %2164 = vmatprep.mubr.bf16.mxu0 0
    %2165 = vmatmul.mubr.bf16.gmra.mrb[0].mxu0 %v2127
    %v2166 = vpop.f32.mrb[0].mxu0
    %v2167 = vadd.f32 0.0, %v2166
    %v2168 = vpop.f32.mrb[0].mxu0
    %v2169 = vpop.f32.mrb[0].mxu0
    %v2170 = vpop.f32.mrb[0].mxu0
    %2171 = vdwg.mxu0
    %2172 = vrot.lane.b32.xlu0 %v1621, 64
    %v2173 = vpop.permute.xlu0 %2172
    %v2175 = vsel %vm304, %v2117, 0
    %v2178 = vsel %vm803, %v2173, 0
    %2180 = vmatprep.subr.bf16.mxu0 0
    %2181 = vmatpush1.bf16.msra.mxu0 %v2178
    %2182 = vmatprep.subr.bf16.mxu0 0
    %2183 = vmatpush1.bf16.msra.mxu0 0
    %2184 = vmatprep.subr.bf16.mxu0 0
    %2185 = vmatpush1.bf16.msra.mxu0 0
    %2186 = vmatprep.subr.bf16.mxu0 0
    %2187 = vmatpush1.bf16.msra.mxu0 0
    %2188 = vmatprep.subr.bf16.mxu0 0
    %2189 = vmatpush1.bf16.msra.mxu0 0
    %2190 = vmatprep.subr.bf16.mxu0 0
    %2191 = vmatpush1.bf16.msra.mxu0 0
    %2192 = vmatprep.subr.bf16.mxu0 0
    %2193 = vmatpush1.bf16.msra.mxu0 0
    %2194 = vmatprep.subr.bf16.mxu0 0
    %2195 = vmatpush1.bf16.msra.mxu0 0
    %2196 = vmatprep.subr.bf16.mxu0 0
    %2197 = vmatpush1.bf16.msra.mxu0 0
    %2198 = vmatprep.subr.bf16.mxu0 0
    %2199 = vmatpush1.bf16.msra.mxu0 0
    %2200 = vmatprep.subr.bf16.mxu0 0
    %2201 = vmatpush1.bf16.msra.mxu0 0
    %2202 = vmatprep.subr.bf16.mxu0 0
    %2203 = vmatpush1.bf16.msra.mxu0 0
    %2204 = vmatprep.subr.bf16.mxu0 0
    %2205 = vmatpush1.bf16.msra.mxu0 0
    %2206 = vmatprep.subr.bf16.mxu0 0
    %2207 = vmatpush1.bf16.msra.mxu0 0
    %2208 = vmatprep.subr.bf16.mxu0 0
    %2209 = vmatpush1.bf16.msra.mxu0 0
    %2210 = vmatprep.subr.bf16.mxu0 0
    %2211 = vmatpush1.bf16.msra.mxu0 0
    %2212 = vmatprep.mubr.bf16.mxu0 0
    %2213 = vmatmul.mubr.bf16.gmra.mrb[0].mxu0 %v2175
    %v2214 = vpop.f32.mrb[0].mxu0
    %v2215 = vadd.f32 0.0, %v2214
    %v2216 = vpop.f32.mrb[0].mxu0
    %v2217 = vpop.f32.mrb[0].mxu0
    %v2218 = vpop.f32.mrb[0].mxu0
    %2219 = vdwg.mxu0
    %2220 = vrot.lane.b32.xlu0 %v1622, 64
    %v2221 = vpop.permute.xlu0 %2220
    %v2223 = vsel %vm304, %v2118, 0
    %v2226 = vsel %vm803, %v2221, 0
    %2228 = vmatprep.subr.bf16.mxu0 0
    %2229 = vmatpush1.bf16.msra.mxu0 %v2226
    %2230 = vmatprep.subr.bf16.mxu0 0
    %2231 = vmatpush1.bf16.msra.mxu0 0
    %2232 = vmatprep.subr.bf16.mxu0 0
    %2233 = vmatpush1.bf16.msra.mxu0 0
    %2234 = vmatprep.subr.bf16.mxu0 0
    %2235 = vmatpush1.bf16.msra.mxu0 0
    %2236 = vmatprep.subr.bf16.mxu0 0
    %2237 = vmatpush1.bf16.msra.mxu0 0
    %2238 = vmatprep.subr.bf16.mxu0 0
    %2239 = vmatpush1.bf16.msra.mxu0 0
    %2240 = vmatprep.subr.bf16.mxu0 0
    %2241 = vmatpush1.bf16.msra.mxu0 0
    %2242 = vmatprep.subr.bf16.mxu0 0
    %2243 = vmatpush1.bf16.msra.mxu0 0
    %2244 = vmatprep.subr.bf16.mxu0 0
    %2245 = vmatpush1.bf16.msra.mxu0 0
    %2246 = vmatprep.subr.bf16.mxu0 0
    %2247 = vmatpush1.bf16.msra.mxu0 0
    %2248 = vmatprep.subr.bf16.mxu0 0
    %2249 = vmatpush1.bf16.msra.mxu0 0
    %2250 = vmatprep.subr.bf16.mxu0 0
    %2251 = vmatpush1.bf16.msra.mxu0 0
    %2252 = vmatprep.subr.bf16.mxu0 0
    %2253 = vmatpush1.bf16.msra.mxu0 0
    %2254 = vmatprep.subr.bf16.mxu0 0
    %2255 = vmatpush1.bf16.msra.mxu0 0
    %2256 = vmatprep.subr.bf16.mxu0 0
    %2257 = vmatpush1.bf16.msra.mxu0 0
    %2258 = vmatprep.subr.bf16.mxu0 0
    %2259 = vmatpush1.bf16.msra.mxu0 0
    %2260 = vmatprep.mubr.bf16.mxu0 0
    %2261 = vmatmul.mubr.bf16.gmra.mrb[0].mxu0 %v2223
    %v2262 = vpop.f32.mrb[0].mxu0
    %v2263 = vadd.f32 0.0, %v2262
    %v2264 = vpop.f32.mrb[0].mxu0
    %v2265 = vpop.f32.mrb[0].mxu0
    %v2266 = vpop.f32.mrb[0].mxu0
    %2267 = vdwg.mxu0
    %2268 = vrot.lane.b32.xlu0 %v1623, 64
    %v2269 = vpop.permute.xlu0 %2268
    %v2271 = vsel %vm304, %v2119, 0
    %v2274 = vsel %vm803, %v2269, 0
    %2276 = vmatprep.subr.bf16.mxu0 0
    %2277 = vmatpush1.bf16.msra.mxu0 %v2274
    %2278 = vmatprep.subr.bf16.mxu0 0
    %2279 = vmatpush1.bf16.msra.mxu0 0
    %2280 = vmatprep.subr.bf16.mxu0 0
    %2281 = vmatpush1.bf16.msra.mxu0 0
    %2282 = vmatprep.subr.bf16.mxu0 0
    %2283 = vmatpush1.bf16.msra.mxu0 0
    %2284 = vmatprep.subr.bf16.mxu0 0
    %2285 = vmatpush1.bf16.msra.mxu0 0
    %2286 = vmatprep.subr.bf16.mxu0 0
    %2287 = vmatpush1.bf16.msra.mxu0 0
    %2288 = vmatprep.subr.bf16.mxu0 0
    %2289 = vmatpush1.bf16.msra.mxu0 0
    %2290 = vmatprep.subr.bf16.mxu0 0
    %2291 = vmatpush1.bf16.msra.mxu0 0
    %2292 = vmatprep.subr.bf16.mxu0 0
    %2293 = vmatpush1.bf16.msra.mxu0 0
    %2294 = vmatprep.subr.bf16.mxu0 0
    %2295 = vmatpush1.bf16.msra.mxu0 0
    %2296 = vmatprep.subr.bf16.mxu0 0
    %2297 = vmatpush1.bf16.msra.mxu0 0
    %2298 = vmatprep.subr.bf16.mxu0 0
    %2299 = vmatpush1.bf16.msra.mxu0 0
    %2300 = vmatprep.subr.bf16.mxu0 0
    %2301 = vmatpush1.bf16.msra.mxu0 0
    %2302 = vmatprep.subr.bf16.mxu0 0
    %2303 = vmatpush1.bf16.msra.mxu0 0
    %2304 = vmatprep.subr.bf16.mxu0 0
    %2305 = vmatpush1.bf16.msra.mxu0 0
    %2306 = vmatprep.subr.bf16.mxu0 0
    %2307 = vmatpush1.bf16.msra.mxu0 0
    %2308 = vmatprep.mubr.bf16.mxu0 0
    %2309 = vmatmul.mubr.bf16.gmra.mrb[0].mxu0 %v2271
    %v2310 = vpop.f32.mrb[0].mxu0
    %v2311 = vadd.f32 0.0, %v2310
    %v2312 = vpop.f32.mrb[0].mxu0
    %v2313 = vpop.f32.mrb[0].mxu0
    %v2314 = vpop.f32.mrb[0].mxu0
    %2315 = vdwg.mxu0
    %2316 = vrot.lane.b32.xlu0 %v1624, 64
    %v2317 = vpop.permute.xlu0 %2316
    %v2319 = vsel %vm304, %v2120, 0
    %v2322 = vsel %vm803, %v2317, 0
    %2324 = vmatprep.subr.bf16.mxu0 0
    %2325 = vmatpush1.bf16.msra.mxu0 %v2322
    %2326 = vmatprep.subr.bf16.mxu0 0
    %2327 = vmatpush1.bf16.msra.mxu0 0
    %2328 = vmatprep.subr.bf16.mxu0 0
    %2329 = vmatpush1.bf16.msra.mxu0 0
    %2330 = vmatprep.subr.bf16.mxu0 0
    %2331 = vmatpush1.bf16.msra.mxu0 0
    %2332 = vmatprep.subr.bf16.mxu0 0
    %2333 = vmatpush1.bf16.msra.mxu0 0
    %2334 = vmatprep.subr.bf16.mxu0 0
    %2335 = vmatpush1.bf16.msra.mxu0 0
    %2336 = vmatprep.subr.bf16.mxu0 0
    %2337 = vmatpush1.bf16.msra.mxu0 0
    %2338 = vmatprep.subr.bf16.mxu0 0
    %2339 = vmatpush1.bf16.msra.mxu0 0
    %2340 = vmatprep.subr.bf16.mxu0 0
    %2341 = vmatpush1.bf16.msra.mxu0 0
    %2342 = vmatprep.subr.bf16.mxu0 0
    %2343 = vmatpush1.bf16.msra.mxu0 0
    %2344 = vmatprep.subr.bf16.mxu0 0
    %2345 = vmatpush1.bf16.msra.mxu0 0
    %2346 = vmatprep.subr.bf16.mxu0 0
    %2347 = vmatpush1.bf16.msra.mxu0 0
    %2348 = vmatprep.subr.bf16.mxu0 0
    %2349 = vmatpush1.bf16.msra.mxu0 0
    %2350 = vmatprep.subr.bf16.mxu0 0
    %2351 = vmatpush1.bf16.msra.mxu0 0
    %2352 = vmatprep.subr.bf16.mxu0 0
    %2353 = vmatpush1.bf16.msra.mxu0 0
    %2354 = vmatprep.subr.bf16.mxu0 0
    %2355 = vmatpush1.bf16.msra.mxu0 0
    %2356 = vmatprep.mubr.bf16.mxu0 0
    %2357 = vmatmul.mubr.bf16.gmra.mrb[0].mxu0 %v2319
    %v2358 = vpop.f32.mrb[0].mxu0
    %v2359 = vadd.f32 0.0, %v2358
    %v2360 = vpop.f32.mrb[0].mxu0
    %v2361 = vpop.f32.mrb[0].mxu0
    %v2362 = vpop.f32.mrb[0].mxu0
    %2363 = vdwg.mxu0
    %2364 = vrot.lane.b32.xlu0 %v1625, 64
    %v2365 = vpop.permute.xlu0 %2364
    %v2367 = vsel %vm304, %v2121, 0
    %v2370 = vsel %vm803, %v2365, 0
    %2372 = vmatprep.subr.bf16.mxu0 0
    %2373 = vmatpush1.bf16.msra.mxu0 %v2370
    %2374 = vmatprep.subr.bf16.mxu0 0
    %2375 = vmatpush1.bf16.msra.mxu0 0
    %2376 = vmatprep.subr.bf16.mxu0 0
    %2377 = vmatpush1.bf16.msra.mxu0 0
    %2378 = vmatprep.subr.bf16.mxu0 0
    %2379 = vmatpush1.bf16.msra.mxu0 0
    %2380 = vmatprep.subr.bf16.mxu0 0
    %2381 = vmatpush1.bf16.msra.mxu0 0
    %2382 = vmatprep.subr.bf16.mxu0 0
    %2383 = vmatpush1.bf16.msra.mxu0 0
    %2384 = vmatprep.subr.bf16.mxu0 0
    %2385 = vmatpush1.bf16.msra.mxu0 0
    %2386 = vmatprep.subr.bf16.mxu0 0
    %2387 = vmatpush1.bf16.msra.mxu0 0
    %2388 = vmatprep.subr.bf16.mxu0 0
    %2389 = vmatpush1.bf16.msra.mxu0 0
    %2390 = vmatprep.subr.bf16.mxu0 0
    %2391 = vmatpush1.bf16.msra.mxu0 0
    %2392 = vmatprep.subr.bf16.mxu0 0
    %2393 = vmatpush1.bf16.msra.mxu0 0
    %2394 = vmatprep.subr.bf16.mxu0 0
    %2395 = vmatpush1.bf16.msra.mxu0 0
    %2396 = vmatprep.subr.bf16.mxu0 0
    %2397 = vmatpush1.bf16.msra.mxu0 0
    %2398 = vmatprep.subr.bf16.mxu0 0
    %2399 = vmatpush1.bf16.msra.mxu0 0
    %2400 = vmatprep.subr.bf16.mxu0 0
    %2401 = vmatpush1.bf16.msra.mxu0 0
    %2402 = vmatprep.subr.bf16.mxu0 0
    %2403 = vmatpush1.bf16.msra.mxu0 0
    %2404 = vmatprep.mubr.bf16.mxu0 0
    %2405 = vmatmul.mubr.bf16.gmra.mrb[0].mxu0 %v2367
    %v2406 = vpop.f32.mrb[0].mxu0
    %v2407 = vadd.f32 0.0, %v2406
    %v2408 = vpop.f32.mrb[0].mxu0
    %v2409 = vpop.f32.mrb[0].mxu0
    %v2410 = vpop.f32.mrb[0].mxu0
    %2411 = vdwg.mxu0
    %2412 = vrot.lane.b32.xlu0 %v1626, 64
    %v2413 = vpop.permute.xlu0 %2412
    %v2415 = vsel %vm304, %v2122, 0
    %v2418 = vsel %vm803, %v2413, 0
    %2420 = vmatprep.subr.bf16.mxu0 0
    %2421 = vmatpush1.bf16.msra.mxu0 %v2418
    %2422 = vmatprep.subr.bf16.mxu0 0
    %2423 = vmatpush1.bf16.msra.mxu0 0
    %2424 = vmatprep.subr.bf16.mxu0 0
    %2425 = vmatpush1.bf16.msra.mxu0 0
    %2426 = vmatprep.subr.bf16.mxu0 0
    %2427 = vmatpush1.bf16.msra.mxu0 0
    %2428 = vmatprep.subr.bf16.mxu0 0
    %2429 = vmatpush1.bf16.msra.mxu0 0
    %2430 = vmatprep.subr.bf16.mxu0 0
    %2431 = vmatpush1.bf16.msra.mxu0 0
    %2432 = vmatprep.subr.bf16.mxu0 0
    %2433 = vmatpush1.bf16.msra.mxu0 0
    %2434 = vmatprep.subr.bf16.mxu0 0
    %2435 = vmatpush1.bf16.msra.mxu0 0
    %2436 = vmatprep.subr.bf16.mxu0 0
    %2437 = vmatpush1.bf16.msra.mxu0 0
    %2438 = vmatprep.subr.bf16.mxu0 0
    %2439 = vmatpush1.bf16.msra.mxu0 0
    %2440 = vmatprep.subr.bf16.mxu0 0
    %2441 = vmatpush1.bf16.msra.mxu0 0
    %2442 = vmatprep.subr.bf16.mxu0 0
    %2443 = vmatpush1.bf16.msra.mxu0 0
    %2444 = vmatprep.subr.bf16.mxu0 0
    %2445 = vmatpush1.bf16.msra.mxu0 0
    %2446 = vmatprep.subr.bf16.mxu0 0
    %2447 = vmatpush1.bf16.msra.mxu0 0
    %2448 = vmatprep.subr.bf16.mxu0 0
    %2449 = vmatpush1.bf16.msra.mxu0 0
    %2450 = vmatprep.subr.bf16.mxu0 0
    %2451 = vmatpush1.bf16.msra.mxu0 0
    %2452 = vmatprep.mubr.bf16.mxu0 0
    %2453 = vmatmul.mubr.bf16.gmra.mrb[0].mxu0 %v2415
    %v2454 = vpop.f32.mrb[0].mxu0
    %v2455 = vadd.f32 0.0, %v2454
    %v2456 = vpop.f32.mrb[0].mxu0
    %v2457 = vpop.f32.mrb[0].mxu0
    %v2458 = vpop.f32.mrb[0].mxu0
    %2459 = vdwg.mxu0
    %2460 = vrot.lane.b32.xlu0 %v1627, 64
    %v2461 = vpop.permute.xlu0 %2460
    %v2463 = vsel %vm304, %v2123, 0
    %v2466 = vsel %vm803, %v2461, 0
    %2468 = vmatprep.subr.bf16.mxu0 0
    %2469 = vmatpush1.bf16.msra.mxu0 %v2466
    %2470 = vmatprep.subr.bf16.mxu0 0
    %2471 = vmatpush1.bf16.msra.mxu0 0
    %2472 = vmatprep.subr.bf16.mxu0 0
    %2473 = vmatpush1.bf16.msra.mxu0 0
    %2474 = vmatprep.subr.bf16.mxu0 0
    %2475 = vmatpush1.bf16.msra.mxu0 0
    %2476 = vmatprep.subr.bf16.mxu0 0
    %2477 = vmatpush1.bf16.msra.mxu0 0
    %2478 = vmatprep.subr.bf16.mxu0 0
    %2479 = vmatpush1.bf16.msra.mxu0 0
    %2480 = vmatprep.subr.bf16.mxu0 0
    %2481 = vmatpush1.bf16.msra.mxu0 0
    %2482 = vmatprep.subr.bf16.mxu0 0
    %2483 = vmatpush1.bf16.msra.mxu0 0
    %2484 = vmatprep.subr.bf16.mxu0 0
    %2485 = vmatpush1.bf16.msra.mxu0 0
    %2486 = vmatprep.subr.bf16.mxu0 0
    %2487 = vmatpush1.bf16.msra.mxu0 0
    %2488 = vmatprep.subr.bf16.mxu0 0
    %2489 = vmatpush1.bf16.msra.mxu0 0
    %2490 = vmatprep.subr.bf16.mxu0 0
    %2491 = vmatpush1.bf16.msra.mxu0 0
    %2492 = vmatprep.subr.bf16.mxu0 0
    %2493 = vmatpush1.bf16.msra.mxu0 0
    %2494 = vmatprep.subr.bf16.mxu0 0
    %2495 = vmatpush1.bf16.msra.mxu0 0
    %2496 = vmatprep.subr.bf16.mxu0 0
    %2497 = vmatpush1.bf16.msra.mxu0 0
    %2498 = vmatprep.subr.bf16.mxu0 0
    %2499 = vmatpush1.bf16.msra.mxu0 0
    %2500 = vmatprep.mubr.bf16.mxu0 0
    %2501 = vmatmul.mubr.bf16.gmra.mrb[0].mxu0 %v2463
    %v2502 = vpop.f32.mrb[0].mxu0
    %v2503 = vadd.f32 0.0, %v2502
    %v2504 = vpop.f32.mrb[0].mxu0
    %v2505 = vpop.f32.mrb[0].mxu0
    %v2506 = vpop.f32.mrb[0].mxu0
    %2507 = vdwg.mxu0
    %2510 = vrot.lane.b32.xlu0 %v2263, 8
    %v2511 = vpop.permute.xlu0 %2510
    %2512 = vrot.lane.b32.xlu0 %v2311, 8
    %v2513 = vpop.permute.xlu0 %2512
    %2518 = vrot.lane.b32.xlu0 %v2359, 16
    %v2519 = vpop.permute.xlu0 %2518
    %2520 = vrot.lane.b32.xlu0 %v2407, 16
    %v2521 = vpop.permute.xlu0 %2520
    %2526 = vrot.lane.b32.xlu0 %v2455, 24
    %v2527 = vpop.permute.xlu0 %2526
    %2528 = vrot.lane.b32.xlu0 %v2503, 24
    %v2529 = vpop.permute.xlu0 %2528
    %v2532 = vsel %vm304, %v2167, %v2511
    %v2533 = vsel %vm304, %v2215, %v2513
    %v2534 = vsel %vm1209, %v2532, %v2519
    %v2535 = vsel %vm1209, %v2533, %v2521
    %v2536 = vsel %vm1212, %v2534, %v2527
    %v2537 = vsel %vm1212, %v2535, %v2529
    %v2538 = vpack.c.bf16 %v2537, %v2536
    %v2539 = vlaneseq
    %v2540 = vshrl.u32 %v2539, 7
    %v2541 = vsub.s32 3, %v2540
    %v2542 = vrot.slane %v104, %v2541
    %v2547 = vunpack.c.l.b16 %v71
    %v2548 = vunpack.c.l.b16 %v72
    %v2549 = vunpack.c.l.b16 %v73
    %v2550 = vunpack.c.l.b16 %v74
    %v2551 = vpack.c.b16 %v2548, %v2547
    %v2552 = vpack.c.b16 %v2550, %v2549
    %v2556 = vsel %vm108, %v2538, 0
    %2558 = vmatprep.subr.bf16.mxu0 0
    %2559 = vmatpush1.bf16.msra.mxu0 %v2551
    %2560 = vmatprep.subr.bf16.mxu0 0
    %2561 = vmatpush1.bf16.msra.mxu0 %v2552
    %2562 = vmatprep.subr.bf16.mxu0 0
    %2563 = vmatpush1.bf16.msra.mxu0 0
    %2564 = vmatprep.subr.bf16.mxu0 0
    %2565 = vmatpush1.bf16.msra.mxu0 0
    %2566 = vmatprep.subr.bf16.mxu0 0
    %2567 = vmatpush1.bf16.msra.mxu0 0
    %2568 = vmatprep.subr.bf16.mxu0 0
    %2569 = vmatpush1.bf16.msra.mxu0 0
    %2570 = vmatprep.subr.bf16.mxu0 0
    %2571 = vmatpush1.bf16.msra.mxu0 0
    %2572 = vmatprep.subr.bf16.mxu0 0
    %2573 = vmatpush1.bf16.msra.mxu0 0
    %2574 = vmatprep.subr.bf16.mxu0 0
    %2575 = vmatpush1.bf16.msra.mxu0 0
    %2576 = vmatprep.subr.bf16.mxu0 0
    %2577 = vmatpush1.bf16.msra.mxu0 0
    %2578 = vmatprep.subr.bf16.mxu0 0
    %2579 = vmatpush1.bf16.msra.mxu0 0
    %2580 = vmatprep.subr.bf16.mxu0 0
    %2581 = vmatpush1.bf16.msra.mxu0 0
    %2582 = vmatprep.subr.bf16.mxu0 0
    %2583 = vmatpush1.bf16.msra.mxu0 0
    %2584 = vmatprep.subr.bf16.mxu0 0
    %2585 = vmatpush1.bf16.msra.mxu0 0
    %2586 = vmatprep.subr.bf16.mxu0 0
    %2587 = vmatpush1.bf16.msra.mxu0 0
    %2588 = vmatprep.subr.bf16.mxu0 0
    %2589 = vmatpush1.bf16.msra.mxu0 0
    %2590 = vmatprep.mubr.bf16.mxu0 0
    %2591 = vmatmul.mubr.bf16.gmra.mrb[0].mxu0 %v2556
    %v2592 = vpop.f32.mrb[0].mxu0
    %v2593 = vadd.f32 %v2542, %v2592
    %v2594 = vpop.f32.mrb[0].mxu0
    %v2595 = vpop.f32.mrb[0].mxu0
    %v2596 = vadd.f32 %v2542, %v2595
    %v2597 = vpop.f32.mrb[0].mxu0
    %2598 = vdwg.mxu0
    %v2599 = vadd.f32 %v1507, %v2593
    %v2600 = vadd.f32 %v1508, %v2596
    %v2601 = vsel %vm108, %v2599, 0.0
    %2602 = vadd.xlane.f32.xlu0 %v2601
    %v2603 = vpop.xlane.xlu0 %2602
    %v2604 = vsel %vm108, %v2600, 0.0
    %2605 = vadd.xlane.f32.xlu0 %v2604
    %v2606 = vpop.xlane.xlu0 %2605
    %v2607 = vmul.f32 %v2603, %v115
    %v2608 = vmul.f32 %v2606, %v115
    %v2609 = vsub.f32 %v2599, %v2607
    %v2610 = vsub.f32 %v2600, %v2608
    %v2611 = vmul.f32 %v2609, %v2609
    %v2612 = vmul.f32 %v2610, %v2610
    %v2613 = vsel %vm108, %v2611, 0.0
    %2614 = vadd.xlane.f32.xlu0 %v2613
    %v2615 = vpop.xlane.xlu0 %2614
    %v2616 = vsel %vm108, %v2612, 0.0
    %2617 = vadd.xlane.f32.xlu0 %v2616
    %v2618 = vpop.xlane.xlu0 %2617
    %v2619 = vmul.f32 %v2615, %v115
    %v2620 = vmul.f32 %v2618, %v115
    %v2621 = vadd.f32 %v2619, 1e-12
    %v2622 = vadd.f32 %v2620, 1e-12
    %v2623 = vrsqrt.pop %v2621
    %v2624 = vrsqrt.pop %v2622
    %v2625 = vmul.f32 %v2609, %v2623
    %v2626 = vmul.f32 %v2610, %v2624
    %v2627 = vlaneseq
    %v2628 = vshrl.u32 %v2627, 7
    %v2629 = vsub.s32 4, %v2628
    %v2630 = vrot.slane %v104, %v2629
    %v2631 = vmul.f32 %v2625, %v2630
    %v2632 = vmul.f32 %v2626, %v2630
    %v2633 = vlaneseq
    %v2634 = vshrl.u32 %v2633, 7
    %v2635 = vsub.s32 5, %v2634
    %v2636 = vrot.slane %v104, %v2635
    %v2637 = vadd.f32 %v2631, %v2636
    %v2638 = vadd.f32 %v2632, %v2636
    %v2639 = vpack.c.bf16 %v2638, %v2637
    %v2640 = vlaneseq
    %v2641 = vshrl.u32 %v2640, 7
    %v2642 = vsub.s32 6, %v2641
    %v2643 = vrot.slane %v104, %v2642
    %v2648 = vunpack.c.l.b16 %v79
    %v2649 = vunpack.c.l.b16 %v80
    %v2650 = vunpack.c.l.b16 %v81
    %v2651 = vunpack.c.l.b16 %v82
    %v2652 = vpack.c.b16 %v2649, %v2648
    %v2653 = vpack.c.b16 %v2651, %v2650
    %v2657 = vsel %vm108, %v2639, 0
    %2659 = vmatprep.subr.bf16.mxu0 0
    %2660 = vmatpush1.bf16.msra.mxu0 %v2652
    %2661 = vmatprep.subr.bf16.mxu0 0
    %2662 = vmatpush1.bf16.msra.mxu0 %v2653
    %2663 = vmatprep.subr.bf16.mxu0 0
    %2664 = vmatpush1.bf16.msra.mxu0 0
    %2665 = vmatprep.subr.bf16.mxu0 0
    %2666 = vmatpush1.bf16.msra.mxu0 0
    %2667 = vmatprep.subr.bf16.mxu0 0
    %2668 = vmatpush1.bf16.msra.mxu0 0
    %2669 = vmatprep.subr.bf16.mxu0 0
    %2670 = vmatpush1.bf16.msra.mxu0 0
    %2671 = vmatprep.subr.bf16.mxu0 0
    %2672 = vmatpush1.bf16.msra.mxu0 0
    %2673 = vmatprep.subr.bf16.mxu0 0
    %2674 = vmatpush1.bf16.msra.mxu0 0
    %2675 = vmatprep.subr.bf16.mxu0 0
    %2676 = vmatpush1.bf16.msra.mxu0 0
    %2677 = vmatprep.subr.bf16.mxu0 0
    %2678 = vmatpush1.bf16.msra.mxu0 0
    %2679 = vmatprep.subr.bf16.mxu0 0
    %2680 = vmatpush1.bf16.msra.mxu0 0
    %2681 = vmatprep.subr.bf16.mxu0 0
    %2682 = vmatpush1.bf16.msra.mxu0 0
    %2683 = vmatprep.subr.bf16.mxu0 0
    %2684 = vmatpush1.bf16.msra.mxu0 0
    %2685 = vmatprep.subr.bf16.mxu0 0
    %2686 = vmatpush1.bf16.msra.mxu0 0
    %2687 = vmatprep.subr.bf16.mxu0 0
    %2688 = vmatpush1.bf16.msra.mxu0 0
    %2689 = vmatprep.subr.bf16.mxu0 0
    %2690 = vmatpush1.bf16.msra.mxu0 0
    %2691 = vmatprep.mubr.bf16.mxu0 0
    %2692 = vmatmul.mubr.bf16.gmra.mrb[0].mxu0 %v2657
    %v2693 = vpop.f32.mrb[0].mxu0
    %v2694 = vadd.f32 %v2643, %v2693
    %v2695 = vpop.f32.mrb[0].mxu0
    %v2696 = vpop.f32.mrb[0].mxu0
    %v2697 = vadd.f32 %v2643, %v2696
    %v2698 = vpop.f32.mrb[0].mxu0
    %2699 = vdwg.mxu0
    %v2700 = vmul.f32 %v2694, 0.5
    %v2701 = vmul.f32 %v2697, 0.5
    %v2702 = vmul.f32 %v2694, 0.044715
    %v2703 = vmul.f32 %v2697, 0.044715
    %v2704 = vmul.f32 %v2702, %v2694
    %v2705 = vmul.f32 %v2703, %v2697
    %v2706 = vmul.f32 %v2704, %v2694
    %v2707 = vmul.f32 %v2705, %v2697
    %v2708 = vadd.f32 %v2694, %v2706
    %v2709 = vadd.f32 %v2697, %v2707
    %v2710 = vmul.f32 %v2708, 0.7978846
    %v2711 = vmul.f32 %v2709, 0.7978846
    %v2712 = vtanh.pop %v2710
    %v2713 = vtanh.pop %v2711
    %v2714 = vadd.f32 %v2712, 1.0
    %v2715 = vadd.f32 %v2713, 1.0
    %v2716 = vmul.f32 %v2700, %v2714
    %v2717 = vmul.f32 %v2701, %v2715
    %v2718 = vpack.c.bf16 %v2717, %v2716
    %v2719 = vlaneseq
    %v2720 = vshrl.u32 %v2719, 7
    %v2721 = vsub.s32 7, %v2720
    %v2722 = vrot.slane %v104, %v2721
    %v2731 = vunpack.c.l.b16 %v91
    %v2732 = vunpack.c.l.b16 %v92
    %v2733 = vunpack.c.l.b16 %v93
    %v2734 = vunpack.c.l.b16 %v94
    %v2735 = vunpack.c.l.b16 %v95
    %v2736 = vunpack.c.l.b16 %v96
    %v2737 = vunpack.c.l.b16 %v97
    %v2738 = vunpack.c.l.b16 %v98
    %v2739 = vpack.c.b16 %v2732, %v2731
    %v2740 = vpack.c.b16 %v2734, %v2733
    %v2741 = vpack.c.b16 %v2736, %v2735
    %v2742 = vpack.c.b16 %v2738, %v2737
    %v2748 = vsel %vm1424, %v2718, 0
    %2750 = vmatprep.subr.bf16.mxu0 0
    %2751 = vmatpush1.bf16.msra.mxu0 %v2739
    %2752 = vmatprep.subr.bf16.mxu0 0
    %2753 = vmatpush1.bf16.msra.mxu0 %v2740
    %2754 = vmatprep.subr.bf16.mxu0 0
    %2755 = vmatpush1.bf16.msra.mxu0 %v2741
    %2756 = vmatprep.subr.bf16.mxu0 0
    %2757 = vmatpush1.bf16.msra.mxu0 %v2742
    %2758 = vmatprep.subr.bf16.mxu0 0
    %2759 = vmatpush1.bf16.msra.mxu0 0
    %2760 = vmatprep.subr.bf16.mxu0 0
    %2761 = vmatpush1.bf16.msra.mxu0 0
    %2762 = vmatprep.subr.bf16.mxu0 0
    %2763 = vmatpush1.bf16.msra.mxu0 0
    %2764 = vmatprep.subr.bf16.mxu0 0
    %2765 = vmatpush1.bf16.msra.mxu0 0
    %2766 = vmatprep.subr.bf16.mxu0 0
    %2767 = vmatpush1.bf16.msra.mxu0 0
    %2768 = vmatprep.subr.bf16.mxu0 0
    %2769 = vmatpush1.bf16.msra.mxu0 0
    %2770 = vmatprep.subr.bf16.mxu0 0
    %2771 = vmatpush1.bf16.msra.mxu0 0
    %2772 = vmatprep.subr.bf16.mxu0 0
    %2773 = vmatpush1.bf16.msra.mxu0 0
    %2774 = vmatprep.subr.bf16.mxu0 0
    %2775 = vmatpush1.bf16.msra.mxu0 0
    %2776 = vmatprep.subr.bf16.mxu0 0
    %2777 = vmatpush1.bf16.msra.mxu0 0
    %2778 = vmatprep.subr.bf16.mxu0 0
    %2779 = vmatpush1.bf16.msra.mxu0 0
    %2780 = vmatprep.subr.bf16.mxu0 0
    %2781 = vmatpush1.bf16.msra.mxu0 0
    %2782 = vmatprep.mubr.bf16.mxu0 0
    %2783 = vmatmul.mubr.bf16.gmra.mrb[0].mxu0 %v2748
    %v2784 = vpop.f32.mrb[0].mxu0
    %v2785 = vadd.f32 %v2722, %v2784
    %v2786 = vpop.f32.mrb[0].mxu0
    %v2787 = vpop.f32.mrb[0].mxu0
    %v2788 = vadd.f32 %v2722, %v2787
    %v2789 = vpop.f32.mrb[0].mxu0
    %2790 = vdwg.mxu0
    %v2791 = vadd.f32 %v2637, %v2785
    %v2792 = vadd.f32 %v2638, %v2788
    %v2793 = vsel %vm108, %v2791, 0.0
    %2794 = vadd.xlane.f32.xlu0 %v2793
    %v2795 = vpop.xlane.xlu0 %2794
    %v2796 = vsel %vm108, %v2792, 0.0
    %2797 = vadd.xlane.f32.xlu0 %v2796
    %v2798 = vpop.xlane.xlu0 %2797
    %v2799 = vmul.f32 %v2795, %v115
    %v2800 = vmul.f32 %v2798, %v115
    %v2801 = vsub.f32 %v2791, %v2799
    %v2802 = vsub.f32 %v2792, %v2800
    %v2803 = vmul.f32 %v2801, %v2801
    %v2804 = vmul.f32 %v2802, %v2802
    %v2805 = vsel %vm108, %v2803, 0.0
    %2806 = vadd.xlane.f32.xlu0 %v2805
    %v2807 = vpop.xlane.xlu0 %2806
    %v2808 = vsel %vm108, %v2804, 0.0
    %2809 = vadd.xlane.f32.xlu0 %v2808
    %v2810 = vpop.xlane.xlu0 %2809
    %v2811 = vmul.f32 %v2807, %v115
    %v2812 = vmul.f32 %v2810, %v115
    %v2813 = vadd.f32 %v2811, 1e-12
    %v2814 = vadd.f32 %v2812, 1e-12
    %v2815 = vrsqrt.pop %v2813
    %v2816 = vrsqrt.pop %v2814
    %v2817 = vmul.f32 %v2801, %v2815
    %v2818 = vmul.f32 %v2802, %v2816
    %v2819 = vlaneseq
    %v2820 = vshrl.u32 %v2819, 7
    %v2821 = vsub.s32 0, %v2820
    %v2822 = vrot.slane %v105, %v2821
    %v2823 = vmul.f32 %v2817, %v2822
    %v2824 = vmul.f32 %v2818, %v2822
    %v2825 = vlaneseq
    %v2826 = vshrl.u32 %v2825, 7
    %v2827 = vsub.s32 1, %v2826
    %v2828 = vrot.slane %v105, %v2827
    %v2829 = vadd.f32 %v2823, %v2828
    %v2830 = vadd.f32 %v2824, %v2828
    %v2831 = vpack.c.bf16 %v2830, %v2829
    %v2832 = vlaneseq
    %v2833 = vshrl.u32 %v2832, 7
    %v2834 = vsub.s32 2, %v2833
    %v2835 = vrot.slane %v105, %v2834
    %v2840 = vunpack.c.h.b16 %v99
    %v2841 = vunpack.c.h.b16 %v100
    %v2842 = vunpack.c.h.b16 %v101
    %v2843 = vunpack.c.h.b16 %v102
    %v2844 = vpack.c.b16 %v2841, %v2840
    %v2845 = vpack.c.b16 %v2843, %v2842
    %v2849 = vsel %vm108, %v2831, 0
    %2851 = vmatprep.subr.bf16.mxu0 0
    %2852 = vmatpush1.bf16.msra.mxu0 %v2844
    %2853 = vmatprep.subr.bf16.mxu0 0
    %2854 = vmatpush1.bf16.msra.mxu0 %v2845
    %2855 = vmatprep.subr.bf16.mxu0 0
    %2856 = vmatpush1.bf16.msra.mxu0 0
    %2857 = vmatprep.subr.bf16.mxu0 0
    %2858 = vmatpush1.bf16.msra.mxu0 0
    %2859 = vmatprep.subr.bf16.mxu0 0
    %2860 = vmatpush1.bf16.msra.mxu0 0
    %2861 = vmatprep.subr.bf16.mxu0 0
    %2862 = vmatpush1.bf16.msra.mxu0 0
    %2863 = vmatprep.subr.bf16.mxu0 0
    %2864 = vmatpush1.bf16.msra.mxu0 0
    %2865 = vmatprep.subr.bf16.mxu0 0
    %2866 = vmatpush1.bf16.msra.mxu0 0
    %2867 = vmatprep.subr.bf16.mxu0 0
    %2868 = vmatpush1.bf16.msra.mxu0 0
    %2869 = vmatprep.subr.bf16.mxu0 0
    %2870 = vmatpush1.bf16.msra.mxu0 0
    %2871 = vmatprep.subr.bf16.mxu0 0
    %2872 = vmatpush1.bf16.msra.mxu0 0
    %2873 = vmatprep.subr.bf16.mxu0 0
    %2874 = vmatpush1.bf16.msra.mxu0 0
    %2875 = vmatprep.subr.bf16.mxu0 0
    %2876 = vmatpush1.bf16.msra.mxu0 0
    %2877 = vmatprep.subr.bf16.mxu0 0
    %2878 = vmatpush1.bf16.msra.mxu0 0
    %2879 = vmatprep.subr.bf16.mxu0 0
    %2880 = vmatpush1.bf16.msra.mxu0 0
    %2881 = vmatprep.subr.bf16.mxu0 0
    %2882 = vmatpush1.bf16.msra.mxu0 0
    %2883 = vmatprep.mubr.bf16.mxu0 0
    %2884 = vmatmul.mubr.bf16.gmra.mrb[0].mxu0 %v2849
    %v2885 = vpop.f32.mrb[0].mxu0
    %v2886 = vadd.f32 %v2835, %v2885
    %v2887 = vpop.f32.mrb[0].mxu0
    %v2888 = vpop.f32.mrb[0].mxu0
    %v2889 = vadd.f32 %v2835, %v2888
    %v2890 = vpop.f32.mrb[0].mxu0
    %2891 = vdwg.mxu0
    %v2892 = vtanh.pop %v2886
    %v2893 = vtanh.pop %v2889
    %v2894 = vlaneseq
    %v2895 = vshrl.u32 %v2894, 7
    %v2896 = vsub.s32 3, %v2895
    %v2897 = vrot.slane %v105, %v2896
    %v2898 = vmul.f32 %v2892, %v2897
    %v2899 = vmul.f32 %v2893, %v2897
    %v2900 = vsel %vm108, %v2898, 0.0
    %2901 = vadd.xlane.f32.xlu0 %v2900
    %v2902 = vpop.xlane.xlu0 %2901
    %v2903 = vsel %vm108, %v2899, 0.0
    %2904 = vadd.xlane.f32.xlu0 %v2903
    %v2905 = vpop.xlane.xlu0 %2904
    %v2908 = vlaneseq
    %v2909 = vand.u32 %v2908, 127
    %v2910 = vlaneseq
    %v2911 = vshrl.u32 %v2910, 7
    %v2912 = vsub.s32 %v2909, %v2911
    %v2913 = vrot.slane %v2902, %v2912
    %v2914 = vlaneseq
    %v2915 = vshrl.u32 %v2914, 7
    %v2916 = vsub.s32 %v2909, %v2915
    %v2917 = vrot.slane %v2905, %v2916
    %vm2918 = vcmask 1041409
    %v2919 = vsel %vm2918, %v2917, %v2913
    %vm2921 = vcmask 58368
    %v2922 = vsel %vm2921, %v2919, -inf
    %2923 = vmax.xlane.f32.xlu0 %v2922
    %v2924 = vpop.xlane.xlu0 %2923
    %v2926 = vlaneseq
    %v2927 = vshrl.u32 %v2926, 7
    %v2928 = vsub.s32 0, %v2927
    %v2929 = vrot.slane %v2924, %v2928
    %v2930 = vlaneseq
    %v2931 = vshrl.u32 %v2930, 7
    %v2932 = vsub.s32 1, %v2931
    %v2933 = vrot.slane %v2924, %v2932
    %v2936 = vsub.f32 %v2902, %v2929
    %v2937 = vsub.f32 %v2905, %v2933
    %v2938 = vmul.f32 %v2936, 1.442695
    %v2939 = vpow.pop %v2938
    %v2940 = vmul.f32 %v2937, 1.442695
    %v2941 = vpow.pop %v2940
    %2944 = vset.pattern.permute.xlu0 0
    %2945 = vperm.xlu0 %2944, %v2939
    %v2946 = vpop.permute.xlu0 %2945
    %2947 = vset.pattern.permute.xlu0 0
    %2948 = vperm.xlu0 %2947, %v2941
    %v2949 = vpop.permute.xlu0 %2948
    %v2950 = vlaneseq
    %v2951 = vshrl.u32 %v2950, 7
    %v2952 = vsub.s32 %v2909, %v2951
    %v2953 = vrot.slane %v2946, %v2952
    %v2954 = vlaneseq
    %v2955 = vshrl.u32 %v2954, 7
    %v2956 = vsub.s32 %v2909, %v2955
    %v2957 = vrot.slane %v2949, %v2956
    %v2958 = vsel %vm2918, %v2957, %v2953
    %v2960 = vsel %vm2921, %v2958, 0.0
    %2961 = vadd.xlane.f32.xlu0 %v2960
    %v2962 = vpop.xlane.xlu0 %2961
    %v2963 = vrcp.pop %v2962
    %v2964 = vmul.f32 1.0, %v2963
    %v2966 = vlaneseq
    %v2967 = vshrl.u32 %v2966, 7
    %v2968 = vsub.s32 0, %v2967
    %v2969 = vrot.slane %v2964, %v2968
    %v2970 = vlaneseq
    %v2971 = vshrl.u32 %v2970, 7
    %v2972 = vsub.s32 1, %v2971
    %v2973 = vrot.slane %v2964, %v2972
    %v2976 = vmul.f32 %v2939, %v2969
    %v2977 = vmul.f32 %v2941, %v2973
    %v2978 = vpack.c.bf16 %v2976, %v2976
    %v2979 = vpack.c.bf16 %v2977, %v2977
    %v2980 = vpack.c.bf16 %v2829, %v2829
    %v2981 = vpack.c.bf16 %v2830, %v2830
    %v2983 = vunpack.c.l.b16 %v2978
    %2984 = vset.pattern.permute.xlu0 0
    %2985 = vperm.xlu0 %2984, %v2983
    %v2986 = vpop.permute.xlu0 %2985
    %v2987 = vlaneseq
    %v2988 = vshrl.u32 %v2987, 7
    %v2989 = vsub.s32 %v2909, %v2988
    %v2990 = vrot.slane %v2986, %v2989
    %v2991 = vpack.c.b16 %v2990, %v2990
    %v2993 = vsel %vm304, %v2991, 0
    %v2996 = vsel %vm803, %v2980, 0
    %2998 = vmatprep.subr.bf16.mxu0 0
    %2999 = vmatpush1.bf16.msra.mxu0 %v2996
    %3000 = vmatprep.subr.bf16.mxu0 0
    %3001 = vmatpush1.bf16.msra.mxu0 0
    %3002 = vmatprep.subr.bf16.mxu0 0
    %3003 = vmatpush1.bf16.msra.mxu0 0
    %3004 = vmatprep.subr.bf16.mxu0 0
    %3005 = vmatpush1.bf16.msra.mxu0 0
    %3006 = vmatprep.subr.bf16.mxu0 0
    %3007 = vmatpush1.bf16.msra.mxu0 0
    %3008 = vmatprep.subr.bf16.mxu0 0
    %3009 = vmatpush1.bf16.msra.mxu0 0
    %3010 = vmatprep.subr.bf16.mxu0 0
    %3011 = vmatpush1.bf16.msra.mxu0 0
    %3012 = vmatprep.subr.bf16.mxu0 0
    %3013 = vmatpush1.bf16.msra.mxu0 0
    %3014 = vmatprep.subr.bf16.mxu0 0
    %3015 = vmatpush1.bf16.msra.mxu0 0
    %3016 = vmatprep.subr.bf16.mxu0 0
    %3017 = vmatpush1.bf16.msra.mxu0 0
    %3018 = vmatprep.subr.bf16.mxu0 0
    %3019 = vmatpush1.bf16.msra.mxu0 0
    %3020 = vmatprep.subr.bf16.mxu0 0
    %3021 = vmatpush1.bf16.msra.mxu0 0
    %3022 = vmatprep.subr.bf16.mxu0 0
    %3023 = vmatpush1.bf16.msra.mxu0 0
    %3024 = vmatprep.subr.bf16.mxu0 0
    %3025 = vmatpush1.bf16.msra.mxu0 0
    %3026 = vmatprep.subr.bf16.mxu0 0
    %3027 = vmatpush1.bf16.msra.mxu0 0
    %3028 = vmatprep.subr.bf16.mxu0 0
    %3029 = vmatpush1.bf16.msra.mxu0 0
    %3030 = vmatprep.mubr.bf16.mxu0 0
    %3031 = vmatmul.mubr.bf16.gmra.mrb[0].mxu0 %v2993
    %v3032 = vpop.f32.mrb[0].mxu0
    %v3033 = vadd.f32 0.0, %v3032
    %v3034 = vpop.f32.mrb[0].mxu0
    %v3035 = vpop.f32.mrb[0].mxu0
    %v3036 = vpop.f32.mrb[0].mxu0
    %3037 = vdwg.mxu0
    %v3039 = vunpack.c.l.b16 %v2979
    %3040 = vset.pattern.permute.xlu0 0
    %3041 = vperm.xlu0 %3040, %v3039
    %v3042 = vpop.permute.xlu0 %3041
    %v3043 = vlaneseq
    %v3044 = vshrl.u32 %v3043, 7
    %v3045 = vsub.s32 %v2909, %v3044
    %v3046 = vrot.slane %v3042, %v3045
    %v3047 = vpack.c.b16 %v3046, %v3046
    %v3049 = vsel %vm304, %v3047, 0
    %v3052 = vsel %vm803, %v2981, 0
    %3054 = vmatprep.subr.bf16.mxu0 0
    %3055 = vmatpush1.bf16.msra.mxu0 %v3052
    %3056 = vmatprep.subr.bf16.mxu0 0
    %3057 = vmatpush1.bf16.msra.mxu0 0
    %3058 = vmatprep.subr.bf16.mxu0 0
    %3059 = vmatpush1.bf16.msra.mxu0 0
    %3060 = vmatprep.subr.bf16.mxu0 0
    %3061 = vmatpush1.bf16.msra.mxu0 0
    %3062 = vmatprep.subr.bf16.mxu0 0
    %3063 = vmatpush1.bf16.msra.mxu0 0
    %3064 = vmatprep.subr.bf16.mxu0 0
    %3065 = vmatpush1.bf16.msra.mxu0 0
    %3066 = vmatprep.subr.bf16.mxu0 0
    %3067 = vmatpush1.bf16.msra.mxu0 0
    %3068 = vmatprep.subr.bf16.mxu0 0
    %3069 = vmatpush1.bf16.msra.mxu0 0
    %3070 = vmatprep.subr.bf16.mxu0 0
    %3071 = vmatpush1.bf16.msra.mxu0 0
    %3072 = vmatprep.subr.bf16.mxu0 0
    %3073 = vmatpush1.bf16.msra.mxu0 0
    %3074 = vmatprep.subr.bf16.mxu0 0
    %3075 = vmatpush1.bf16.msra.mxu0 0
    %3076 = vmatprep.subr.bf16.mxu0 0
    %3077 = vmatpush1.bf16.msra.mxu0 0
    %3078 = vmatprep.subr.bf16.mxu0 0
    %3079 = vmatpush1.bf16.msra.mxu0 0
    %3080 = vmatprep.subr.bf16.mxu0 0
    %3081 = vmatpush1.bf16.msra.mxu0 0
    %3082 = vmatprep.subr.bf16.mxu0 0
    %3083 = vmatpush1.bf16.msra.mxu0 0
    %3084 = vmatprep.subr.bf16.mxu0 0
    %3085 = vmatpush1.bf16.msra.mxu0 0
    %3086 = vmatprep.mubr.bf16.mxu0 0
    %3087 = vmatmul.mubr.bf16.gmra.mrb[0].mxu0 %v3049
    %v3088 = vpop.f32.mrb[0].mxu0
    %v3089 = vadd.f32 0.0, %v3088
    %v3090 = vpop.f32.mrb[0].mxu0
    %v3091 = vpop.f32.mrb[0].mxu0
    %v3092 = vpop.f32.mrb[0].mxu0
    %3093 = vdwg.mxu0
    %v3094 = vpack.c.bf16 %v3033, %v3033
    %v3095 = vpack.c.bf16 %v3089, %v3089
    %v3096 = vlaneseq
    %v3097 = vshrl.u32 %v3096, 7
    %v3098 = vsub.s32 4, %v3097
    %v3099 = vrot.slane %v105, %v3098
    %v3102 = vunpack.c.l.b16 %v3094
    %v3103 = vunpack.c.l.b16 %v3095
    %v3104 = vrot.slane %v3103, 7
    %v3105 = vsel %vm2918, %v3104, %v3102
    %v3106 = vpack.c.b16 %v3105, %v3105
    %3107 = vrot.lane.b32.xlu0 %v2844, 96
    %v3108 = vpop.permute.xlu0 %3107
    %3109 = vrot.lane.b32.xlu0 %v2845, 96
    %v3110 = vpop.permute.xlu0 %3109
    %v3114 = vsel %vm108, %v3106, 0
    %3116 = vmatprep.subr.bf16.mxu0 0
    %3117 = vmatpush1.bf16.msra.mxu0 %v3108
    %3118 = vmatprep.subr.bf16.mxu0 0
    %3119 = vmatpush1.bf16.msra.mxu0 %v3110
    %3120 = vmatprep.subr.bf16.mxu0 0
    %3121 = vmatpush1.bf16.msra.mxu0 0
    %3122 = vmatprep.subr.bf16.mxu0 0
    %3123 = vmatpush1.bf16.msra.mxu0 0
    %3124 = vmatprep.subr.bf16.mxu0 0
    %3125 = vmatpush1.bf16.msra.mxu0 0
    %3126 = vmatprep.subr.bf16.mxu0 0
    %3127 = vmatpush1.bf16.msra.mxu0 0
    %3128 = vmatprep.subr.bf16.mxu0 0
    %3129 = vmatpush1.bf16.msra.mxu0 0
    %3130 = vmatprep.subr.bf16.mxu0 0
    %3131 = vmatpush1.bf16.msra.mxu0 0
    %3132 = vmatprep.subr.bf16.mxu0 0
    %3133 = vmatpush1.bf16.msra.mxu0 0
    %3134 = vmatprep.subr.bf16.mxu0 0
    %3135 = vmatpush1.bf16.msra.mxu0 0
    %3136 = vmatprep.subr.bf16.mxu0 0
    %3137 = vmatpush1.bf16.msra.mxu0 0
    %3138 = vmatprep.subr.bf16.mxu0 0
    %3139 = vmatpush1.bf16.msra.mxu0 0
    %3140 = vmatprep.subr.bf16.mxu0 0
    %3141 = vmatpush1.bf16.msra.mxu0 0
    %3142 = vmatprep.subr.bf16.mxu0 0
    %3143 = vmatpush1.bf16.msra.mxu0 0
    %3144 = vmatprep.subr.bf16.mxu0 0
    %3145 = vmatpush1.bf16.msra.mxu0 0
    %3146 = vmatprep.subr.bf16.mxu0 0
    %3147 = vmatpush1.bf16.msra.mxu0 0
    %3148 = vmatprep.mubr.bf16.mxu0 0
    %3149 = vmatmul.mubr.bf16.gmra.mrb[0].mxu0 %v3114
    %v3150 = vpop.f32.mrb[0].mxu0
    %v3151 = vadd.f32 %v3099, %v3150
    %v3152 = vpop.f32.mrb[0].mxu0
    %v3153 = vpop.f32.mrb[0].mxu0
    %v3154 = vpop.f32.mrb[0].mxu0
    %3155 = vdwg.mxu0
    %v3156 = vmax.f32 %v3151, 0.0
    %v3157 = vpack.c.bf16 %v3156, %v3156
    %v3158 = vlaneseq
    %v3159 = vshrl.u32 %v3158, 7
    %v3160 = vsub.s32 5, %v3159
    %v3161 = vrot.slane %v105, %v3160
    %v3162 = vunpack.c.l.b16 %v99
    %v3163 = vunpack.c.l.b16 %v100
    %v3164 = vunpack.c.l.b16 %v101
    %v3165 = vunpack.c.l.b16 %v102
    %v3166 = vpack.c.b16 %v3163, %v3162
    %v3167 = vpack.c.b16 %v3165, %v3164
    %v3171 = vsel %vm108, %v3157, 0
    %3173 = vmatprep.subr.bf16.mxu0 0
    %3174 = vmatpush1.bf16.msra.mxu0 %v3166
    %3175 = vmatprep.subr.bf16.mxu0 0
    %3176 = vmatpush1.bf16.msra.mxu0 %v3167
    %3177 = vmatprep.subr.bf16.mxu0 0
    %3178 = vmatpush1.bf16.msra.mxu0 0
    %3179 = vmatprep.subr.bf16.mxu0 0
    %3180 = vmatpush1.bf16.msra.mxu0 0
    %3181 = vmatprep.subr.bf16.mxu0 0
    %3182 = vmatpush1.bf16.msra.mxu0 0
    %3183 = vmatprep.subr.bf16.mxu0 0
    %3184 = vmatpush1.bf16.msra.mxu0 0
    %3185 = vmatprep.subr.bf16.mxu0 0
    %3186 = vmatpush1.bf16.msra.mxu0 0
    %3187 = vmatprep.subr.bf16.mxu0 0
    %3188 = vmatpush1.bf16.msra.mxu0 0
    %3189 = vmatprep.subr.bf16.mxu0 0
    %3190 = vmatpush1.bf16.msra.mxu0 0
    %3191 = vmatprep.subr.bf16.mxu0 0
    %3192 = vmatpush1.bf16.msra.mxu0 0
    %3193 = vmatprep.subr.bf16.mxu0 0
    %3194 = vmatpush1.bf16.msra.mxu0 0
    %3195 = vmatprep.subr.bf16.mxu0 0
    %3196 = vmatpush1.bf16.msra.mxu0 0
    %3197 = vmatprep.subr.bf16.mxu0 0
    %3198 = vmatpush1.bf16.msra.mxu0 0
    %3199 = vmatprep.subr.bf16.mxu0 0
    %3200 = vmatpush1.bf16.msra.mxu0 0
    %3201 = vmatprep.subr.bf16.mxu0 0
    %3202 = vmatpush1.bf16.msra.mxu0 0
    %3203 = vmatprep.subr.bf16.mxu0 0
    %3204 = vmatpush1.bf16.msra.mxu0 0
    %3205 = vmatprep.mubr.bf16.mxu0 0
    %3206 = vmatmul.mubr.bf16.gmra.mrb[0].mxu0 %v3171
    %v3207 = vpop.f32.mrb[0].mxu0
    %v3208 = vadd.f32 %v3161, %v3207
    %v3209 = vpop.f32.mrb[0].mxu0
    %v3210 = vpop.f32.mrb[0].mxu0
    %v3211 = vpop.f32.mrb[0].mxu0
    %3212 = vdwg.mxu0
    %3213 = vst [vmem:[#allocation7] sm:$0x3] %v3208
    // Predicated region
    $region42: #{tpu_custom_call.1} parent=1 // pred_check
      _
    $region43: #{tpu_custom_call.1} parent=1 // pred_check_branch
      %3215 = sbr.rel (0) target = $region45
    $region44: #{tpu_custom_call.1} parent=1 // pred_region
      %s3217 = ssub.s32 32, 32
      %3218 = vsyncadd [#allocation4], %s3217
      %s3220 = sshll.u32 [#allocation7], 4
      %s3221 = int_to_ptr.vmem [resolvable:$true] %s3220
      %3223 = dma.vmem_to_hbm [thread:$0]  %s3221, 32, %s8, [#allocation4]
    $region45: #{tpu_custom_call.1} parent=1 // pred_fallthru
      _
    // Predicated region
    $region46: #{tpu_custom_call.1} parent=1 // pred_check
      _
    $region47: #{tpu_custom_call.1} parent=1 // pred_check_branch
      %3225 = sbr.rel (0) target = $region49
    $region48: #{tpu_custom_call.1} parent=1 // pred_region
      %3226 = dma.done [#allocation4], 32
    $region49: #{tpu_custom_call.1} parent=1 // pred_fallthru
      _
    %3227 = vsyncpa [#allocation3], 1
    %3228 = vsyncpa [#allocation6], 1
    %3229 = vsyncpa [#allocation4], 1

</llo_original>
